<compile_context>
chip_gen: v7x
topology: tpu7x:2x2x1
jax: 0.10.0
libtpu: 0.0.40
codegen_flags: <defaults>
</compile_context>

<pallas_src>
import math
import jax
import jax.numpy as jnp
from jax import lax
from jax.experimental import pallas as pl
from jax.experimental.pallas import tpu as pltpu


# ----------------------------------------------------------------------------
# Synthetic small-BERT config
# ----------------------------------------------------------------------------
VOCAB = 64
MAX_POS = 16
TYPE_VOCAB = 2
HIDDEN = 32
N_HEADS = 4
HEAD_DIM = HIDDEN // N_HEADS
INTERMEDIATE = 64
N_LAYERS = 2
N_CLASSES = 3
LANE_PAD = 128                       # lane-dense classifier output width
ATTN_SCALE = 1.0 / math.sqrt(HEAD_DIM)


# ----------------------------------------------------------------------------
# Fused model kernel (runs once per batch element)
# ----------------------------------------------------------------------------
def _layer_norm(x, g, b):
    mu = jnp.mean(x, axis=-1, keepdims=True)
    xc = x - mu
    var = jnp.mean(xc * xc, axis=-1, keepdims=True)
    return xc * lax.rsqrt(var + 1e-12) * g + b      # BERT LayerNorm eps


def _gelu(y):                                        # exact (erf) GELU, as in BERT
    return 0.5 * y * (1.0 + lax.erf(y * 0.7071067811865476))


def _fused_bert_kernel(
    x_ref, mask_ref,
    wqkv_ref, bqkv_ref, wo_ref, bo_ref, ln1g_ref, ln1b_ref,
    w1_ref, b1_ref, w2_ref, b2_ref, ln2g_ref, ln2b_ref,
    embg_ref, embb_ref, poolw_ref, poolb_ref, clsw_ref, clsb_ref,
    o_ref,
):
    x = x_ref[0]                 # (S, H)  raw embeddings for this batch element
    mask = mask_ref[0]           # (1, S)  additive mask, broadcast over query rows

    # embedding LayerNorm
    x2 = _layer_norm(x, embg_ref[...], embb_ref[...])

    # ---- encoder layers (unrolled; weights stay resident in VMEM) ----
    for l in range(N_LAYERS):
        qkv = jnp.dot(x2, wqkv_ref[l],
                      preferred_element_type=jnp.float32) + bqkv_ref[l]  # (S, 3H)

        ctx_heads = []
        for h in range(N_HEADS):
            lo = h * HEAD_DIM
            qh = qkv[:, lo:lo + HEAD_DIM]                         # (S, d)
            kh = qkv[:, HIDDEN + lo:HIDDEN + lo + HEAD_DIM]       # (S, d)
            vh = qkv[:, 2 * HIDDEN + lo:2 * HIDDEN + lo + HEAD_DIM]
            # contract last dims of q and k -> no explicit k transpose
            s = lax.dot_general(qh, kh, (((1,), (1,)), ((), ())),
                                preferred_element_type=jnp.float32)
            s = s * ATTN_SCALE + mask
            s = s - jnp.max(s, axis=-1, keepdims=True)
            p = jnp.exp(s)
            p = p * pl.reciprocal(jnp.sum(p, axis=-1, keepdims=True), approx=True)
            ctx_heads.append(jnp.dot(p, vh, preferred_element_type=jnp.float32))
        ctx = jnp.concatenate(ctx_heads, axis=1)                  # (S, H)

        attn_out = jnp.dot(ctx, wo_ref[l],
                           preferred_element_type=jnp.float32) + bo_ref[l]
        x2 = _layer_norm(x2 + attn_out, ln1g_ref[l], ln1b_ref[l])

        hmid = jnp.dot(x2, w1_ref[l],
                       preferred_element_type=jnp.float32) + b1_ref[l]
        hmid = _gelu(hmid)
        ffn = jnp.dot(hmid, w2_ref[l],
                      preferred_element_type=jnp.float32) + b2_ref[l]
        x2 = _layer_norm(x2 + ffn, ln2g_ref[l], ln2b_ref[l])

    # ---- pooler: tanh(Linear(CLS token)) == bert_output[1] ----
    cls_vec = x2[0:1, :]                                          # (1, H)
    pooled = jnp.tanh(jnp.dot(cls_vec, poolw_ref[...],
                              preferred_element_type=jnp.float32) + poolb_ref[...])

    # ---- dropout(p=0.5): identity in eval/inference mode ----
    # TODO(synk): training-mode dropout would need pltpu.prng_random_bits masking.

    # ---- classification head (lane-dense 128-wide padded output) ----
    logits = jnp.dot(pooled, clsw_ref[...],
                     preferred_element_type=jnp.float32) + clsb_ref[...]
    o_ref[0] = logits.astype(o_ref.dtype)                         # (1, 128)


# ----------------------------------------------------------------------------
# Parameter init (deterministic) + stacking for the fused kernel
# ----------------------------------------------------------------------------
def init_params(key):
    def nrm(k, shape, scale=0.02):
        return scale * jax.random.normal(k, shape, dtype=jnp.float32)

    keys = iter(jax.random.split(key, 8 + N_LAYERS * 16))
    p = {
        "word_emb": nrm(next(keys), (VOCAB, HIDDEN)),
        "pos_emb": nrm(next(keys), (MAX_POS, HIDDEN)),
        "type_emb": nrm(next(keys), (TYPE_VOCAB, HIDDEN)),
        "emb_ln_g": jnp.ones((HIDDEN,), jnp.float32),
        "emb_ln_b": jnp.zeros((HIDDEN,), jnp.float32),
        "pool_w": nrm(next(keys), (HIDDEN, HIDDEN)),
        "pool_b": jnp.zeros((HIDDEN,), jnp.float32),
        "cls_w": nrm(next(keys), (HIDDEN, N_CLASSES)),
        "cls_b": jnp.zeros((N_CLASSES,), jnp.float32),
        "layers": [],
    }
    for _ in range(N_LAYERS):
        lp = {
            "wq": nrm(next(keys), (HIDDEN, HIDDEN)), "bq": jnp.zeros((HIDDEN,), jnp.float32),
            "wk": nrm(next(keys), (HIDDEN, HIDDEN)), "bk": jnp.zeros((HIDDEN,), jnp.float32),
            "wv": nrm(next(keys), (HIDDEN, HIDDEN)), "bv": jnp.zeros((HIDDEN,), jnp.float32),
            "wo": nrm(next(keys), (HIDDEN, HIDDEN)), "bo": jnp.zeros((HIDDEN,), jnp.float32),
            "ln1_g": jnp.ones((HIDDEN,), jnp.float32), "ln1_b": jnp.zeros((HIDDEN,), jnp.float32),
            "w1": nrm(next(keys), (HIDDEN, INTERMEDIATE)), "b1": jnp.zeros((INTERMEDIATE,), jnp.float32),
            "w2": nrm(next(keys), (INTERMEDIATE, HIDDEN)), "b2": jnp.zeros((HIDDEN,), jnp.float32),
            "ln2_g": jnp.ones((HIDDEN,), jnp.float32), "ln2_b": jnp.zeros((HIDDEN,), jnp.float32),
        }
        p["layers"].append(lp)
    return p


def pack_params(p):
    """Stack per-layer weights, fuse QKV, pad classifier to a lane-dense width."""
    ls = p["layers"]
    stk = lambda f: jnp.stack([f(lp) for lp in ls], axis=0)
    packed = {
        "wqkv": stk(lambda lp: jnp.concatenate([lp["wq"], lp["wk"], lp["wv"]], axis=1)),
        "bqkv": stk(lambda lp: jnp.concatenate([lp["bq"], lp["bk"], lp["bv"]]).reshape(1, 3 * HIDDEN)),
        "wo":   stk(lambda lp: lp["wo"]),
        "bo":   stk(lambda lp: lp["bo"].reshape(1, HIDDEN)),
        "ln1g": stk(lambda lp: lp["ln1_g"].reshape(1, HIDDEN)),
        "ln1b": stk(lambda lp: lp["ln1_b"].reshape(1, HIDDEN)),
        "w1":   stk(lambda lp: lp["w1"]),
        "b1":   stk(lambda lp: lp["b1"].reshape(1, INTERMEDIATE)),
        "w2":   stk(lambda lp: lp["w2"]),
        "b2":   stk(lambda lp: lp["b2"].reshape(1, HIDDEN)),
        "ln2g": stk(lambda lp: lp["ln2_g"].reshape(1, HIDDEN)),
        "ln2b": stk(lambda lp: lp["ln2_b"].reshape(1, HIDDEN)),
        "embg": p["emb_ln_g"].reshape(1, HIDDEN),
        "embb": p["emb_ln_b"].reshape(1, HIDDEN),
        "poolw": p["pool_w"],
        "poolb": p["pool_b"].reshape(1, HIDDEN),
        # pad classifier to 128 lanes -> unmasked full-lane stores in the kernel
        "clsw": jnp.zeros((HIDDEN, LANE_PAD), jnp.float32).at[:, :N_CLASSES].set(p["cls_w"]),
        "clsb": jnp.zeros((1, LANE_PAD), jnp.float32).at[:, :N_CLASSES].set(p["cls_b"]),
    }
    return packed


# ----------------------------------------------------------------------------
# Forward pass (mirrors SentimentBERT.forward)
# ----------------------------------------------------------------------------
def sentiment_bert_forward(params, input_ids, attention_mask):
    B, S = input_ids.shape

    # ---- embeddings (gathers = JAX glue) ----
    pos_ids = jnp.arange(S, dtype=jnp.int32)
    x = (params["word_emb"][input_ids]
         + params["pos_emb"][pos_ids][None, :, :]
         + params["type_emb"][jnp.zeros_like(input_ids)])          # (B, S, H)

    # extended attention mask: (1 - mask) * -10000, shape (B, 1, S)
    add_mask = ((1.0 - attention_mask.astype(jnp.float32)) * -10000.0)[:, None, :]

    pk = pack_params(params)

    full3 = lambda arr: pl.BlockSpec(arr.shape, lambda b: (0, 0, 0))
    full2 = lambda arr: pl.BlockSpec(arr.shape, lambda b: (0, 0))

    weight_order = ["wqkv", "bqkv", "wo", "bo", "ln1g", "ln1b",
                    "w1", "b1", "w2", "b2", "ln2g", "ln2b",
                    "embg", "embb", "poolw", "poolb", "clsw", "clsb"]
    weight_args = [pk[name] for name in weight_order]
    weight_specs = [full3(a) if a.ndim == 3 else full2(a) for a in weight_args]

    out_padded = pl.pallas_call(
        _fused_bert_kernel,
        out_shape=jax.ShapeDtypeStruct((B, 1, LANE_PAD), jnp.float32),
        grid=(B,),
        in_specs=[
            pl.BlockSpec((1, S, HIDDEN), lambda b: (b, 0, 0)),     # x embeddings
            pl.BlockSpec((1, 1, S), lambda b: (b, 0, 0)),          # additive mask
        ] + weight_specs,
        out_specs=pl.BlockSpec((1, 1, LANE_PAD), lambda b: (b, 0, 0)),
        compiler_params=pltpu.CompilerParams(
            dimension_semantics=("parallel",)),
    )(x, add_mask, *weight_args)

    return out_padded[:, 0, :N_CLASSES]                            # (B, n_classes)


# ----------------------------------------------------------------------------
if __name__ == "__main__":
    key = jax.random.PRNGKey(0)
    pkey, ikey = jax.random.split(key)
    params = init_params(pkey)

    B, S = 2, 8
    input_ids = jax.random.randint(ikey, (B, S), 0, VOCAB, dtype=jnp.int32)
    attention_mask = jnp.array(
        [[1, 1, 1, 1, 1, 1, 1, 1],
         [1, 1, 1, 1, 1, 0, 0, 0]], dtype=jnp.int32)

    logits = sentiment_bert_forward(params, input_ids, attention_mask)
    logits = jax.block_until_ready(logits)
    assert logits.shape == (B, N_CLASSES)
    assert bool(jnp.all(jnp.isfinite(logits)))
    print("KERNEL_OK")
</pallas_src>

<mosaic_0001>
module attributes {stable_mosaic.version = 11 : i64} {
  func.func @_fused_bert_kernel(%arg0: i32, %arg1: memref<1x8x32xf32, #tpu.memory_space<vmem>>, %arg2: memref<1x1x8xf32, #tpu.memory_space<vmem>>, %arg3: memref<2x32x96xf32, #tpu.memory_space<vmem>>, %arg4: memref<2x1x96xf32, #tpu.memory_space<vmem>>, %arg5: memref<2x32x32xf32, #tpu.memory_space<vmem>>, %arg6: memref<2x1x32xf32, #tpu.memory_space<vmem>>, %arg7: memref<2x1x32xf32, #tpu.memory_space<vmem>>, %arg8: memref<2x1x32xf32, #tpu.memory_space<vmem>>, %arg9: memref<2x32x64xf32, #tpu.memory_space<vmem>>, %arg10: memref<2x1x64xf32, #tpu.memory_space<vmem>>, %arg11: memref<2x64x32xf32, #tpu.memory_space<vmem>>, %arg12: memref<2x1x32xf32, #tpu.memory_space<vmem>>, %arg13: memref<2x1x32xf32, #tpu.memory_space<vmem>>, %arg14: memref<2x1x32xf32, #tpu.memory_space<vmem>>, %arg15: memref<1x32xf32, #tpu.memory_space<vmem>>, %arg16: memref<1x32xf32, #tpu.memory_space<vmem>>, %arg17: memref<32x32xf32, #tpu.memory_space<vmem>>, %arg18: memref<1x32xf32, #tpu.memory_space<vmem>>, %arg19: memref<32x128xf32, #tpu.memory_space<vmem>>, %arg20: memref<1x128xf32, #tpu.memory_space<vmem>>, %arg21: memref<1x1x128xf32, #tpu.memory_space<vmem>>) attributes {dimension_semantics = [#tpu.dimension_semantics<parallel>], iteration_bounds = array<i64: 2>, scalar_prefetch = 0 : i64, scratch_operands = 0 : i64, tpu.core_type = #tpu.core_type<tc>, window_params = [{transform_indices = @transform_0, window_bounds = array<i64: 1, 8, 32>}, {transform_indices = @transform_1, window_bounds = array<i64: 1, 1, 8>}, {pipeline_mode = #tpu.pipeline_mode<synchronous>, transform_indices = @transform_2, window_bounds = array<i64: 2, 32, 96>}, {pipeline_mode = #tpu.pipeline_mode<synchronous>, transform_indices = @transform_3, window_bounds = array<i64: 2, 1, 96>}, {pipeline_mode = #tpu.pipeline_mode<synchronous>, transform_indices = @transform_4, window_bounds = array<i64: 2, 32, 32>}, {pipeline_mode = #tpu.pipeline_mode<synchronous>, transform_indices = @transform_5, window_bounds = array<i64: 2, 1, 32>}, {pipeline_mode = #tpu.pipeline_mode<synchronous>, transform_indices = @transform_6, window_bounds = array<i64: 2, 1, 32>}, {pipeline_mode = #tpu.pipeline_mode<synchronous>, transform_indices = @transform_7, window_bounds = array<i64: 2, 1, 32>}, {pipeline_mode = #tpu.pipeline_mode<synchronous>, transform_indices = @transform_8, window_bounds = array<i64: 2, 32, 64>}, {pipeline_mode = #tpu.pipeline_mode<synchronous>, transform_indices = @transform_9, window_bounds = array<i64: 2, 1, 64>}, {pipeline_mode = #tpu.pipeline_mode<synchronous>, transform_indices = @transform_10, window_bounds = array<i64: 2, 64, 32>}, {pipeline_mode = #tpu.pipeline_mode<synchronous>, transform_indices = @transform_11, window_bounds = array<i64: 2, 1, 32>}, {pipeline_mode = #tpu.pipeline_mode<synchronous>, transform_indices = @transform_12, window_bounds = array<i64: 2, 1, 32>}, {pipeline_mode = #tpu.pipeline_mode<synchronous>, transform_indices = @transform_13, window_bounds = array<i64: 2, 1, 32>}, {pipeline_mode = #tpu.pipeline_mode<synchronous>, transform_indices = @transform_14, window_bounds = array<i64: 1, 32>}, {pipeline_mode = #tpu.pipeline_mode<synchronous>, transform_indices = @transform_15, window_bounds = array<i64: 1, 32>}, {pipeline_mode = #tpu.pipeline_mode<synchronous>, transform_indices = @transform_16, window_bounds = array<i64: 32, 32>}, {pipeline_mode = #tpu.pipeline_mode<synchronous>, transform_indices = @transform_17, window_bounds = array<i64: 1, 32>}, {pipeline_mode = #tpu.pipeline_mode<synchronous>, transform_indices = @transform_18, window_bounds = array<i64: 32, 128>}, {pipeline_mode = #tpu.pipeline_mode<synchronous>, transform_indices = @transform_19, window_bounds = array<i64: 1, 128>}, {transform_indices = @transform_20, window_bounds = array<i64: 1, 1, 128>}]} {
    %c0 = arith.constant 0 : index
    %c0_0 = arith.constant 0 : index
    %c0_1 = arith.constant 0 : index
    %0 = vector.load %arg1[%c0, %c0_0, %c0_1] : memref<1x8x32xf32, #tpu.memory_space<vmem>>, vector<1x8x32xf32>
    %1 = vector.shape_cast %0 : vector<1x8x32xf32> to vector<8x32xf32>
    %c0_2 = arith.constant 0 : index
    %c0_3 = arith.constant 0 : index
    %c0_4 = arith.constant 0 : index
    %2 = vector.load %arg2[%c0_2, %c0_3, %c0_4] : memref<1x1x8xf32, #tpu.memory_space<vmem>>, vector<1x1x8xf32>
    %3 = vector.shape_cast %2 : vector<1x1x8xf32> to vector<1x8xf32>
    %c0_5 = arith.constant 0 : index
    %c0_6 = arith.constant 0 : index
    %4 = vector.load %arg15[%c0_5, %c0_6] : memref<1x32xf32, #tpu.memory_space<vmem>>, vector<1x32xf32>
    %c0_7 = arith.constant 0 : index
    %c0_8 = arith.constant 0 : index
    %5 = vector.load %arg16[%c0_7, %c0_8] : memref<1x32xf32, #tpu.memory_space<vmem>>, vector<1x32xf32>
    %cst = arith.constant dense<0.000000e+00> : vector<8xf32>
    %6 = vector.multi_reduction <add>, %1, %cst [1] : vector<8x32xf32> to vector<8xf32>
    %7 = vector.shape_cast %6 : vector<8xf32> to vector<8x1xf32>
    %cst_9 = arith.constant 3.200000e+01 : f32
    %8 = vector.broadcast %cst_9 : f32 to vector<8x1xf32>
    %9 = arith.divf %7, %8 : vector<8x1xf32>
    %10 = vector.broadcast %9 : vector<8x1xf32> to vector<8x32xf32>
    %11 = arith.subf %1, %10 : vector<8x32xf32>
    %12 = arith.mulf %11, %11 : vector<8x32xf32>
    %cst_10 = arith.constant dense<0.000000e+00> : vector<8xf32>
    %13 = vector.multi_reduction <add>, %12, %cst_10 [1] : vector<8x32xf32> to vector<8xf32>
    %14 = vector.shape_cast %13 : vector<8xf32> to vector<8x1xf32>
    %cst_11 = arith.constant 3.200000e+01 : f32
    %15 = vector.broadcast %cst_11 : f32 to vector<8x1xf32>
    %16 = arith.divf %14, %15 : vector<8x1xf32>
    %cst_12 = arith.constant 9.99999996E-13 : f32
    %17 = vector.broadcast %cst_12 : f32 to vector<8x1xf32>
    %18 = arith.addf %16, %17 : vector<8x1xf32>
    %19 = math.rsqrt %18 : vector<8x1xf32>
    %20 = vector.broadcast %19 : vector<8x1xf32> to vector<8x32xf32>
    %21 = arith.mulf %11, %20 : vector<8x32xf32>
    %22 = vector.broadcast %4 : vector<1x32xf32> to vector<8x32xf32>
    %23 = arith.mulf %21, %22 : vector<8x32xf32>
    %24 = vector.broadcast %5 : vector<1x32xf32> to vector<8x32xf32>
    %25 = arith.addf %23, %24 : vector<8x32xf32>
    %c0_13 = arith.constant 0 : index
    %c0_14 = arith.constant 0 : index
    %c0_15 = arith.constant 0 : index
    %26 = vector.load %arg3[%c0_13, %c0_14, %c0_15] : memref<2x32x96xf32, #tpu.memory_space<vmem>>, vector<1x32x96xf32>
    %27 = vector.shape_cast %26 : vector<1x32x96xf32> to vector<32x96xf32>
    %cst_16 = arith.constant dense<0.000000e+00> : vector<8x96xf32>
    %28 = tpu.matmul %25, %27, %cst_16 {dimension_numbers = #tpu.dot_dimension_numbers<[1], [0], [0], [1], [0, 0, 1, 1], [], []>} : vector<8x32xf32>, vector<32x96xf32>, vector<8x96xf32> -> vector<8x96xf32>
    %c0_17 = arith.constant 0 : index
    %c0_18 = arith.constant 0 : index
    %c0_19 = arith.constant 0 : index
    %29 = vector.load %arg4[%c0_17, %c0_18, %c0_19] : memref<2x1x96xf32, #tpu.memory_space<vmem>>, vector<1x1x96xf32>
    %30 = vector.shape_cast %29 : vector<1x1x96xf32> to vector<1x96xf32>
    %31 = vector.broadcast %30 : vector<1x96xf32> to vector<8x96xf32>
    %32 = arith.addf %28, %31 : vector<8x96xf32>
    %33 = vector.extract_strided_slice %32 {offsets = [0, 0], sizes = [8, 8], strides = [1, 1]} : vector<8x96xf32> to vector<8x8xf32>
    %34 = vector.extract_strided_slice %32 {offsets = [0, 32], sizes = [8, 8], strides = [1, 1]} : vector<8x96xf32> to vector<8x8xf32>
    %35 = vector.extract_strided_slice %32 {offsets = [0, 64], sizes = [8, 8], strides = [1, 1]} : vector<8x96xf32> to vector<8x8xf32>
    %cst_20 = arith.constant dense<0.000000e+00> : vector<8x8xf32>
    %36 = tpu.matmul %33, %34, %cst_20 {dimension_numbers = #tpu.dot_dimension_numbers<[1], [1], [0], [0], [0, 0, 1, 0], [], []>} : vector<8x8xf32>, vector<8x8xf32>, vector<8x8xf32> -> vector<8x8xf32>
    %cst_21 = arith.constant 0.353553385 : f32
    %37 = vector.broadcast %cst_21 : f32 to vector<8x8xf32>
    %38 = arith.mulf %36, %37 : vector<8x8xf32>
    %39 = vector.broadcast %3 : vector<1x8xf32> to vector<8x8xf32>
    %40 = arith.addf %38, %39 : vector<8x8xf32>
    %cst_22 = arith.constant dense<0xFF800000> : vector<8xf32>
    %41 = vector.multi_reduction <maximumf>, %40, %cst_22 [1] : vector<8x8xf32> to vector<8xf32>
    %42 = vector.shape_cast %41 : vector<8xf32> to vector<8x1xf32>
    %43 = vector.broadcast %42 : vector<8x1xf32> to vector<8x8xf32>
    %44 = arith.subf %40, %43 : vector<8x8xf32>
    %45 = math.exp %44 : vector<8x8xf32>
    %cst_23 = arith.constant dense<0.000000e+00> : vector<8xf32>
    %46 = vector.multi_reduction <add>, %45, %cst_23 [1] : vector<8x8xf32> to vector<8xf32>
    %47 = vector.shape_cast %46 : vector<8xf32> to vector<8x1xf32>
    %48 = tpu.reciprocal %47 {approx = true} : vector<8x1xf32> -> vector<8x1xf32>
    %49 = vector.broadcast %48 : vector<8x1xf32> to vector<8x8xf32>
    %50 = arith.mulf %45, %49 : vector<8x8xf32>
    %cst_24 = arith.constant dense<0.000000e+00> : vector<8x8xf32>
    %51 = tpu.matmul %50, %35, %cst_24 {dimension_numbers = #tpu.dot_dimension_numbers<[1], [0], [0], [1], [0, 0, 1, 1], [], []>} : vector<8x8xf32>, vector<8x8xf32>, vector<8x8xf32> -> vector<8x8xf32>
    %52 = vector.extract_strided_slice %32 {offsets = [0, 8], sizes = [8, 8], strides = [1, 1]} : vector<8x96xf32> to vector<8x8xf32>
    %53 = vector.extract_strided_slice %32 {offsets = [0, 40], sizes = [8, 8], strides = [1, 1]} : vector<8x96xf32> to vector<8x8xf32>
    %54 = vector.extract_strided_slice %32 {offsets = [0, 72], sizes = [8, 8], strides = [1, 1]} : vector<8x96xf32> to vector<8x8xf32>
    %cst_25 = arith.constant dense<0.000000e+00> : vector<8x8xf32>
    %55 = tpu.matmul %52, %53, %cst_25 {dimension_numbers = #tpu.dot_dimension_numbers<[1], [1], [0], [0], [0, 0, 1, 0], [], []>} : vector<8x8xf32>, vector<8x8xf32>, vector<8x8xf32> -> vector<8x8xf32>
    %cst_26 = arith.constant 0.353553385 : f32
    %56 = vector.broadcast %cst_26 : f32 to vector<8x8xf32>
    %57 = arith.mulf %55, %56 : vector<8x8xf32>
    %58 = vector.broadcast %3 : vector<1x8xf32> to vector<8x8xf32>
    %59 = arith.addf %57, %58 : vector<8x8xf32>
    %cst_27 = arith.constant dense<0xFF800000> : vector<8xf32>
    %60 = vector.multi_reduction <maximumf>, %59, %cst_27 [1] : vector<8x8xf32> to vector<8xf32>
    %61 = vector.shape_cast %60 : vector<8xf32> to vector<8x1xf32>
    %62 = vector.broadcast %61 : vector<8x1xf32> to vector<8x8xf32>
    %63 = arith.subf %59, %62 : vector<8x8xf32>
    %64 = math.exp %63 : vector<8x8xf32>
    %cst_28 = arith.constant dense<0.000000e+00> : vector<8xf32>
    %65 = vector.multi_reduction <add>, %64, %cst_28 [1] : vector<8x8xf32> to vector<8xf32>
    %66 = vector.shape_cast %65 : vector<8xf32> to vector<8x1xf32>
    %67 = tpu.reciprocal %66 {approx = true} : vector<8x1xf32> -> vector<8x1xf32>
    %68 = vector.broadcast %67 : vector<8x1xf32> to vector<8x8xf32>
    %69 = arith.mulf %64, %68 : vector<8x8xf32>
    %cst_29 = arith.constant dense<0.000000e+00> : vector<8x8xf32>
    %70 = tpu.matmul %69, %54, %cst_29 {dimension_numbers = #tpu.dot_dimension_numbers<[1], [0], [0], [1], [0, 0, 1, 1], [], []>} : vector<8x8xf32>, vector<8x8xf32>, vector<8x8xf32> -> vector<8x8xf32>
    %71 = vector.extract_strided_slice %32 {offsets = [0, 16], sizes = [8, 8], strides = [1, 1]} : vector<8x96xf32> to vector<8x8xf32>
    %72 = vector.extract_strided_slice %32 {offsets = [0, 48], sizes = [8, 8], strides = [1, 1]} : vector<8x96xf32> to vector<8x8xf32>
    %73 = vector.extract_strided_slice %32 {offsets = [0, 80], sizes = [8, 8], strides = [1, 1]} : vector<8x96xf32> to vector<8x8xf32>
    %cst_30 = arith.constant dense<0.000000e+00> : vector<8x8xf32>
    %74 = tpu.matmul %71, %72, %cst_30 {dimension_numbers = #tpu.dot_dimension_numbers<[1], [1], [0], [0], [0, 0, 1, 0], [], []>} : vector<8x8xf32>, vector<8x8xf32>, vector<8x8xf32> -> vector<8x8xf32>
    %cst_31 = arith.constant 0.353553385 : f32
    %75 = vector.broadcast %cst_31 : f32 to vector<8x8xf32>
    %76 = arith.mulf %74, %75 : vector<8x8xf32>
    %77 = vector.broadcast %3 : vector<1x8xf32> to vector<8x8xf32>
    %78 = arith.addf %76, %77 : vector<8x8xf32>
    %cst_32 = arith.constant dense<0xFF800000> : vector<8xf32>
    %79 = vector.multi_reduction <maximumf>, %78, %cst_32 [1] : vector<8x8xf32> to vector<8xf32>
    %80 = vector.shape_cast %79 : vector<8xf32> to vector<8x1xf32>
    %81 = vector.broadcast %80 : vector<8x1xf32> to vector<8x8xf32>
    %82 = arith.subf %78, %81 : vector<8x8xf32>
    %83 = math.exp %82 : vector<8x8xf32>
    %cst_33 = arith.constant dense<0.000000e+00> : vector<8xf32>
    %84 = vector.multi_reduction <add>, %83, %cst_33 [1] : vector<8x8xf32> to vector<8xf32>
    %85 = vector.shape_cast %84 : vector<8xf32> to vector<8x1xf32>
    %86 = tpu.reciprocal %85 {approx = true} : vector<8x1xf32> -> vector<8x1xf32>
    %87 = vector.broadcast %86 : vector<8x1xf32> to vector<8x8xf32>
    %88 = arith.mulf %83, %87 : vector<8x8xf32>
    %cst_34 = arith.constant dense<0.000000e+00> : vector<8x8xf32>
    %89 = tpu.matmul %88, %73, %cst_34 {dimension_numbers = #tpu.dot_dimension_numbers<[1], [0], [0], [1], [0, 0, 1, 1], [], []>} : vector<8x8xf32>, vector<8x8xf32>, vector<8x8xf32> -> vector<8x8xf32>
    %90 = vector.extract_strided_slice %32 {offsets = [0, 24], sizes = [8, 8], strides = [1, 1]} : vector<8x96xf32> to vector<8x8xf32>
    %91 = vector.extract_strided_slice %32 {offsets = [0, 56], sizes = [8, 8], strides = [1, 1]} : vector<8x96xf32> to vector<8x8xf32>
    %92 = vector.extract_strided_slice %32 {offsets = [0, 88], sizes = [8, 8], strides = [1, 1]} : vector<8x96xf32> to vector<8x8xf32>
    %cst_35 = arith.constant dense<0.000000e+00> : vector<8x8xf32>
    %93 = tpu.matmul %90, %91, %cst_35 {dimension_numbers = #tpu.dot_dimension_numbers<[1], [1], [0], [0], [0, 0, 1, 0], [], []>} : vector<8x8xf32>, vector<8x8xf32>, vector<8x8xf32> -> vector<8x8xf32>
    %cst_36 = arith.constant 0.353553385 : f32
    %94 = vector.broadcast %cst_36 : f32 to vector<8x8xf32>
    %95 = arith.mulf %93, %94 : vector<8x8xf32>
    %96 = vector.broadcast %3 : vector<1x8xf32> to vector<8x8xf32>
    %97 = arith.addf %95, %96 : vector<8x8xf32>
    %cst_37 = arith.constant dense<0xFF800000> : vector<8xf32>
    %98 = vector.multi_reduction <maximumf>, %97, %cst_37 [1] : vector<8x8xf32> to vector<8xf32>
    %99 = vector.shape_cast %98 : vector<8xf32> to vector<8x1xf32>
    %100 = vector.broadcast %99 : vector<8x1xf32> to vector<8x8xf32>
    %101 = arith.subf %97, %100 : vector<8x8xf32>
    %102 = math.exp %101 : vector<8x8xf32>
    %cst_38 = arith.constant dense<0.000000e+00> : vector<8xf32>
    %103 = vector.multi_reduction <add>, %102, %cst_38 [1] : vector<8x8xf32> to vector<8xf32>
    %104 = vector.shape_cast %103 : vector<8xf32> to vector<8x1xf32>
    %105 = tpu.reciprocal %104 {approx = true} : vector<8x1xf32> -> vector<8x1xf32>
    %106 = vector.broadcast %105 : vector<8x1xf32> to vector<8x8xf32>
    %107 = arith.mulf %102, %106 : vector<8x8xf32>
    %cst_39 = arith.constant dense<0.000000e+00> : vector<8x8xf32>
    %108 = tpu.matmul %107, %92, %cst_39 {dimension_numbers = #tpu.dot_dimension_numbers<[1], [0], [0], [1], [0, 0, 1, 1], [], []>} : vector<8x8xf32>, vector<8x8xf32>, vector<8x8xf32> -> vector<8x8xf32>
    %109 = tpu.concatenate %51, %70, %89, %108 in 1 : vector<8x8xf32>, vector<8x8xf32>, vector<8x8xf32>, vector<8x8xf32> -> vector<8x32xf32>
    %c0_40 = arith.constant 0 : index
    %c0_41 = arith.constant 0 : index
    %c0_42 = arith.constant 0 : index
    %110 = vector.load %arg5[%c0_40, %c0_41, %c0_42] : memref<2x32x32xf32, #tpu.memory_space<vmem>>, vector<1x32x32xf32>
    %111 = vector.shape_cast %110 : vector<1x32x32xf32> to vector<32x32xf32>
    %cst_43 = arith.constant dense<0.000000e+00> : vector<8x32xf32>
    %112 = tpu.matmul %109, %111, %cst_43 {dimension_numbers = #tpu.dot_dimension_numbers<[1], [0], [0], [1], [0, 0, 1, 1], [], []>} : vector<8x32xf32>, vector<32x32xf32>, vector<8x32xf32> -> vector<8x32xf32>
    %c0_44 = arith.constant 0 : index
    %c0_45 = arith.constant 0 : index
    %c0_46 = arith.constant 0 : index
    %113 = vector.load %arg6[%c0_44, %c0_45, %c0_46] : memref<2x1x32xf32, #tpu.memory_space<vmem>>, vector<1x1x32xf32>
    %114 = vector.shape_cast %113 : vector<1x1x32xf32> to vector<1x32xf32>
    %115 = vector.broadcast %114 : vector<1x32xf32> to vector<8x32xf32>
    %116 = arith.addf %112, %115 : vector<8x32xf32>
    %117 = arith.addf %25, %116 : vector<8x32xf32>
    %c0_47 = arith.constant 0 : index
    %c0_48 = arith.constant 0 : index
    %c0_49 = arith.constant 0 : index
    %118 = vector.load %arg7[%c0_47, %c0_48, %c0_49] : memref<2x1x32xf32, #tpu.memory_space<vmem>>, vector<1x1x32xf32>
    %119 = vector.shape_cast %118 : vector<1x1x32xf32> to vector<1x32xf32>
    %c0_50 = arith.constant 0 : index
    %c0_51 = arith.constant 0 : index
    %c0_52 = arith.constant 0 : index
    %120 = vector.load %arg8[%c0_50, %c0_51, %c0_52] : memref<2x1x32xf32, #tpu.memory_space<vmem>>, vector<1x1x32xf32>
    %121 = vector.shape_cast %120 : vector<1x1x32xf32> to vector<1x32xf32>
    %cst_53 = arith.constant dense<0.000000e+00> : vector<8xf32>
    %122 = vector.multi_reduction <add>, %117, %cst_53 [1] : vector<8x32xf32> to vector<8xf32>
    %123 = vector.shape_cast %122 : vector<8xf32> to vector<8x1xf32>
    %cst_54 = arith.constant 3.200000e+01 : f32
    %124 = vector.broadcast %cst_54 : f32 to vector<8x1xf32>
    %125 = arith.divf %123, %124 : vector<8x1xf32>
    %126 = vector.broadcast %125 : vector<8x1xf32> to vector<8x32xf32>
    %127 = arith.subf %117, %126 : vector<8x32xf32>
    %128 = arith.mulf %127, %127 : vector<8x32xf32>
    %cst_55 = arith.constant dense<0.000000e+00> : vector<8xf32>
    %129 = vector.multi_reduction <add>, %128, %cst_55 [1] : vector<8x32xf32> to vector<8xf32>
    %130 = vector.shape_cast %129 : vector<8xf32> to vector<8x1xf32>
    %cst_56 = arith.constant 3.200000e+01 : f32
    %131 = vector.broadcast %cst_56 : f32 to vector<8x1xf32>
    %132 = arith.divf %130, %131 : vector<8x1xf32>
    %cst_57 = arith.constant 9.99999996E-13 : f32
    %133 = vector.broadcast %cst_57 : f32 to vector<8x1xf32>
    %134 = arith.addf %132, %133 : vector<8x1xf32>
    %135 = math.rsqrt %134 : vector<8x1xf32>
    %136 = vector.broadcast %135 : vector<8x1xf32> to vector<8x32xf32>
    %137 = arith.mulf %127, %136 : vector<8x32xf32>
    %138 = vector.broadcast %119 : vector<1x32xf32> to vector<8x32xf32>
    %139 = arith.mulf %137, %138 : vector<8x32xf32>
    %140 = vector.broadcast %121 : vector<1x32xf32> to vector<8x32xf32>
    %141 = arith.addf %139, %140 : vector<8x32xf32>
    %c0_58 = arith.constant 0 : index
    %c0_59 = arith.constant 0 : index
    %c0_60 = arith.constant 0 : index
    %142 = vector.load %arg9[%c0_58, %c0_59, %c0_60] : memref<2x32x64xf32, #tpu.memory_space<vmem>>, vector<1x32x64xf32>
    %143 = vector.shape_cast %142 : vector<1x32x64xf32> to vector<32x64xf32>
    %cst_61 = arith.constant dense<0.000000e+00> : vector<8x64xf32>
    %144 = tpu.matmul %141, %143, %cst_61 {dimension_numbers = #tpu.dot_dimension_numbers<[1], [0], [0], [1], [0, 0, 1, 1], [], []>} : vector<8x32xf32>, vector<32x64xf32>, vector<8x64xf32> -> vector<8x64xf32>
    %c0_62 = arith.constant 0 : index
    %c0_63 = arith.constant 0 : index
    %c0_64 = arith.constant 0 : index
    %145 = vector.load %arg10[%c0_62, %c0_63, %c0_64] : memref<2x1x64xf32, #tpu.memory_space<vmem>>, vector<1x1x64xf32>
    %146 = vector.shape_cast %145 : vector<1x1x64xf32> to vector<1x64xf32>
    %147 = vector.broadcast %146 : vector<1x64xf32> to vector<8x64xf32>
    %148 = arith.addf %144, %147 : vector<8x64xf32>
    %cst_65 = arith.constant 5.000000e-01 : f32
    %149 = vector.broadcast %cst_65 : f32 to vector<8x64xf32>
    %150 = arith.mulf %149, %148 : vector<8x64xf32>
    %cst_66 = arith.constant 0.707106769 : f32
    %151 = vector.broadcast %cst_66 : f32 to vector<8x64xf32>
    %152 = arith.mulf %148, %151 : vector<8x64xf32>
    %153 = math.erf %152 : vector<8x64xf32>
    %cst_67 = arith.constant 1.000000e+00 : f32
    %154 = vector.broadcast %cst_67 : f32 to vector<8x64xf32>
    %155 = arith.addf %154, %153 : vector<8x64xf32>
    %156 = arith.mulf %150, %155 : vector<8x64xf32>
    %c0_68 = arith.constant 0 : index
    %c0_69 = arith.constant 0 : index
    %c0_70 = arith.constant 0 : index
    %157 = vector.load %arg11[%c0_68, %c0_69, %c0_70] : memref<2x64x32xf32, #tpu.memory_space<vmem>>, vector<1x64x32xf32>
    %158 = vector.shape_cast %157 : vector<1x64x32xf32> to vector<64x32xf32>
    %cst_71 = arith.constant dense<0.000000e+00> : vector<8x32xf32>
    %159 = tpu.matmul %156, %158, %cst_71 {dimension_numbers = #tpu.dot_dimension_numbers<[1], [0], [0], [1], [0, 0, 1, 1], [], []>} : vector<8x64xf32>, vector<64x32xf32>, vector<8x32xf32> -> vector<8x32xf32>
    %c0_72 = arith.constant 0 : index
    %c0_73 = arith.constant 0 : index
    %c0_74 = arith.constant 0 : index
    %160 = vector.load %arg12[%c0_72, %c0_73, %c0_74] : memref<2x1x32xf32, #tpu.memory_space<vmem>>, vector<1x1x32xf32>
    %161 = vector.shape_cast %160 : vector<1x1x32xf32> to vector<1x32xf32>
    %162 = vector.broadcast %161 : vector<1x32xf32> to vector<8x32xf32>
    %163 = arith.addf %159, %162 : vector<8x32xf32>
    %164 = arith.addf %141, %163 : vector<8x32xf32>
    %c0_75 = arith.constant 0 : index
    %c0_76 = arith.constant 0 : index
    %c0_77 = arith.constant 0 : index
    %165 = vector.load %arg13[%c0_75, %c0_76, %c0_77] : memref<2x1x32xf32, #tpu.memory_space<vmem>>, vector<1x1x32xf32>
    %166 = vector.shape_cast %165 : vector<1x1x32xf32> to vector<1x32xf32>
    %c0_78 = arith.constant 0 : index
    %c0_79 = arith.constant 0 : index
    %c0_80 = arith.constant 0 : index
    %167 = vector.load %arg14[%c0_78, %c0_79, %c0_80] : memref<2x1x32xf32, #tpu.memory_space<vmem>>, vector<1x1x32xf32>
    %168 = vector.shape_cast %167 : vector<1x1x32xf32> to vector<1x32xf32>
    %cst_81 = arith.constant dense<0.000000e+00> : vector<8xf32>
    %169 = vector.multi_reduction <add>, %164, %cst_81 [1] : vector<8x32xf32> to vector<8xf32>
    %170 = vector.shape_cast %169 : vector<8xf32> to vector<8x1xf32>
    %cst_82 = arith.constant 3.200000e+01 : f32
    %171 = vector.broadcast %cst_82 : f32 to vector<8x1xf32>
    %172 = arith.divf %170, %171 : vector<8x1xf32>
    %173 = vector.broadcast %172 : vector<8x1xf32> to vector<8x32xf32>
    %174 = arith.subf %164, %173 : vector<8x32xf32>
    %175 = arith.mulf %174, %174 : vector<8x32xf32>
    %cst_83 = arith.constant dense<0.000000e+00> : vector<8xf32>
    %176 = vector.multi_reduction <add>, %175, %cst_83 [1] : vector<8x32xf32> to vector<8xf32>
    %177 = vector.shape_cast %176 : vector<8xf32> to vector<8x1xf32>
    %cst_84 = arith.constant 3.200000e+01 : f32
    %178 = vector.broadcast %cst_84 : f32 to vector<8x1xf32>
    %179 = arith.divf %177, %178 : vector<8x1xf32>
    %cst_85 = arith.constant 9.99999996E-13 : f32
    %180 = vector.broadcast %cst_85 : f32 to vector<8x1xf32>
    %181 = arith.addf %179, %180 : vector<8x1xf32>
    %182 = math.rsqrt %181 : vector<8x1xf32>
    %183 = vector.broadcast %182 : vector<8x1xf32> to vector<8x32xf32>
    %184 = arith.mulf %174, %183 : vector<8x32xf32>
    %185 = vector.broadcast %166 : vector<1x32xf32> to vector<8x32xf32>
    %186 = arith.mulf %184, %185 : vector<8x32xf32>
    %187 = vector.broadcast %168 : vector<1x32xf32> to vector<8x32xf32>
    %188 = arith.addf %186, %187 : vector<8x32xf32>
    %c1 = arith.constant 1 : index
    %c0_86 = arith.constant 0 : index
    %c0_87 = arith.constant 0 : index
    %189 = vector.load %arg3[%c1, %c0_86, %c0_87] : memref<2x32x96xf32, #tpu.memory_space<vmem>>, vector<1x32x96xf32>
    %190 = vector.shape_cast %189 : vector<1x32x96xf32> to vector<32x96xf32>
    %cst_88 = arith.constant dense<0.000000e+00> : vector<8x96xf32>
    %191 = tpu.matmul %188, %190, %cst_88 {dimension_numbers = #tpu.dot_dimension_numbers<[1], [0], [0], [1], [0, 0, 1, 1], [], []>} : vector<8x32xf32>, vector<32x96xf32>, vector<8x96xf32> -> vector<8x96xf32>
    %c1_89 = arith.constant 1 : index
    %c0_90 = arith.constant 0 : index
    %c0_91 = arith.constant 0 : index
    %192 = vector.load %arg4[%c1_89, %c0_90, %c0_91] : memref<2x1x96xf32, #tpu.memory_space<vmem>>, vector<1x1x96xf32>
    %193 = vector.shape_cast %192 : vector<1x1x96xf32> to vector<1x96xf32>
    %194 = vector.broadcast %193 : vector<1x96xf32> to vector<8x96xf32>
    %195 = arith.addf %191, %194 : vector<8x96xf32>
    %196 = vector.extract_strided_slice %195 {offsets = [0, 0], sizes = [8, 8], strides = [1, 1]} : vector<8x96xf32> to vector<8x8xf32>
    %197 = vector.extract_strided_slice %195 {offsets = [0, 32], sizes = [8, 8], strides = [1, 1]} : vector<8x96xf32> to vector<8x8xf32>
    %198 = vector.extract_strided_slice %195 {offsets = [0, 64], sizes = [8, 8], strides = [1, 1]} : vector<8x96xf32> to vector<8x8xf32>
    %cst_92 = arith.constant dense<0.000000e+00> : vector<8x8xf32>
    %199 = tpu.matmul %196, %197, %cst_92 {dimension_numbers = #tpu.dot_dimension_numbers<[1], [1], [0], [0], [0, 0, 1, 0], [], []>} : vector<8x8xf32>, vector<8x8xf32>, vector<8x8xf32> -> vector<8x8xf32>
    %cst_93 = arith.constant 0.353553385 : f32
    %200 = vector.broadcast %cst_93 : f32 to vector<8x8xf32>
    %201 = arith.mulf %199, %200 : vector<8x8xf32>
    %202 = vector.broadcast %3 : vector<1x8xf32> to vector<8x8xf32>
    %203 = arith.addf %201, %202 : vector<8x8xf32>
    %cst_94 = arith.constant dense<0xFF800000> : vector<8xf32>
    %204 = vector.multi_reduction <maximumf>, %203, %cst_94 [1] : vector<8x8xf32> to vector<8xf32>
    %205 = vector.shape_cast %204 : vector<8xf32> to vector<8x1xf32>
    %206 = vector.broadcast %205 : vector<8x1xf32> to vector<8x8xf32>
    %207 = arith.subf %203, %206 : vector<8x8xf32>
    %208 = math.exp %207 : vector<8x8xf32>
    %cst_95 = arith.constant dense<0.000000e+00> : vector<8xf32>
    %209 = vector.multi_reduction <add>, %208, %cst_95 [1] : vector<8x8xf32> to vector<8xf32>
    %210 = vector.shape_cast %209 : vector<8xf32> to vector<8x1xf32>
    %211 = tpu.reciprocal %210 {approx = true} : vector<8x1xf32> -> vector<8x1xf32>
    %212 = vector.broadcast %211 : vector<8x1xf32> to vector<8x8xf32>
    %213 = arith.mulf %208, %212 : vector<8x8xf32>
    %cst_96 = arith.constant dense<0.000000e+00> : vector<8x8xf32>
    %214 = tpu.matmul %213, %198, %cst_96 {dimension_numbers = #tpu.dot_dimension_numbers<[1], [0], [0], [1], [0, 0, 1, 1], [], []>} : vector<8x8xf32>, vector<8x8xf32>, vector<8x8xf32> -> vector<8x8xf32>
    %215 = vector.extract_strided_slice %195 {offsets = [0, 8], sizes = [8, 8], strides = [1, 1]} : vector<8x96xf32> to vector<8x8xf32>
    %216 = vector.extract_strided_slice %195 {offsets = [0, 40], sizes = [8, 8], strides = [1, 1]} : vector<8x96xf32> to vector<8x8xf32>
    %217 = vector.extract_strided_slice %195 {offsets = [0, 72], sizes = [8, 8], strides = [1, 1]} : vector<8x96xf32> to vector<8x8xf32>
    %cst_97 = arith.constant dense<0.000000e+00> : vector<8x8xf32>
    %218 = tpu.matmul %215, %216, %cst_97 {dimension_numbers = #tpu.dot_dimension_numbers<[1], [1], [0], [0], [0, 0, 1, 0], [], []>} : vector<8x8xf32>, vector<8x8xf32>, vector<8x8xf32> -> vector<8x8xf32>
    %cst_98 = arith.constant 0.353553385 : f32
    %219 = vector.broadcast %cst_98 : f32 to vector<8x8xf32>
    %220 = arith.mulf %218, %219 : vector<8x8xf32>
    %221 = vector.broadcast %3 : vector<1x8xf32> to vector<8x8xf32>
    %222 = arith.addf %220, %221 : vector<8x8xf32>
    %cst_99 = arith.constant dense<0xFF800000> : vector<8xf32>
    %223 = vector.multi_reduction <maximumf>, %222, %cst_99 [1] : vector<8x8xf32> to vector<8xf32>
    %224 = vector.shape_cast %223 : vector<8xf32> to vector<8x1xf32>
    %225 = vector.broadcast %224 : vector<8x1xf32> to vector<8x8xf32>
    %226 = arith.subf %222, %225 : vector<8x8xf32>
    %227 = math.exp %226 : vector<8x8xf32>
    %cst_100 = arith.constant dense<0.000000e+00> : vector<8xf32>
    %228 = vector.multi_reduction <add>, %227, %cst_100 [1] : vector<8x8xf32> to vector<8xf32>
    %229 = vector.shape_cast %228 : vector<8xf32> to vector<8x1xf32>
    %230 = tpu.reciprocal %229 {approx = true} : vector<8x1xf32> -> vector<8x1xf32>
    %231 = vector.broadcast %230 : vector<8x1xf32> to vector<8x8xf32>
    %232 = arith.mulf %227, %231 : vector<8x8xf32>
    %cst_101 = arith.constant dense<0.000000e+00> : vector<8x8xf32>
    %233 = tpu.matmul %232, %217, %cst_101 {dimension_numbers = #tpu.dot_dimension_numbers<[1], [0], [0], [1], [0, 0, 1, 1], [], []>} : vector<8x8xf32>, vector<8x8xf32>, vector<8x8xf32> -> vector<8x8xf32>
    %234 = vector.extract_strided_slice %195 {offsets = [0, 16], sizes = [8, 8], strides = [1, 1]} : vector<8x96xf32> to vector<8x8xf32>
    %235 = vector.extract_strided_slice %195 {offsets = [0, 48], sizes = [8, 8], strides = [1, 1]} : vector<8x96xf32> to vector<8x8xf32>
    %236 = vector.extract_strided_slice %195 {offsets = [0, 80], sizes = [8, 8], strides = [1, 1]} : vector<8x96xf32> to vector<8x8xf32>
    %cst_102 = arith.constant dense<0.000000e+00> : vector<8x8xf32>
    %237 = tpu.matmul %234, %235, %cst_102 {dimension_numbers = #tpu.dot_dimension_numbers<[1], [1], [0], [0], [0, 0, 1, 0], [], []>} : vector<8x8xf32>, vector<8x8xf32>, vector<8x8xf32> -> vector<8x8xf32>
    %cst_103 = arith.constant 0.353553385 : f32
    %238 = vector.broadcast %cst_103 : f32 to vector<8x8xf32>
    %239 = arith.mulf %237, %238 : vector<8x8xf32>
    %240 = vector.broadcast %3 : vector<1x8xf32> to vector<8x8xf32>
    %241 = arith.addf %239, %240 : vector<8x8xf32>
    %cst_104 = arith.constant dense<0xFF800000> : vector<8xf32>
    %242 = vector.multi_reduction <maximumf>, %241, %cst_104 [1] : vector<8x8xf32> to vector<8xf32>
    %243 = vector.shape_cast %242 : vector<8xf32> to vector<8x1xf32>
    %244 = vector.broadcast %243 : vector<8x1xf32> to vector<8x8xf32>
    %245 = arith.subf %241, %244 : vector<8x8xf32>
    %246 = math.exp %245 : vector<8x8xf32>
    %cst_105 = arith.constant dense<0.000000e+00> : vector<8xf32>
    %247 = vector.multi_reduction <add>, %246, %cst_105 [1] : vector<8x8xf32> to vector<8xf32>
    %248 = vector.shape_cast %247 : vector<8xf32> to vector<8x1xf32>
    %249 = tpu.reciprocal %248 {approx = true} : vector<8x1xf32> -> vector<8x1xf32>
    %250 = vector.broadcast %249 : vector<8x1xf32> to vector<8x8xf32>
    %251 = arith.mulf %246, %250 : vector<8x8xf32>
    %cst_106 = arith.constant dense<0.000000e+00> : vector<8x8xf32>
    %252 = tpu.matmul %251, %236, %cst_106 {dimension_numbers = #tpu.dot_dimension_numbers<[1], [0], [0], [1], [0, 0, 1, 1], [], []>} : vector<8x8xf32>, vector<8x8xf32>, vector<8x8xf32> -> vector<8x8xf32>
    %253 = vector.extract_strided_slice %195 {offsets = [0, 24], sizes = [8, 8], strides = [1, 1]} : vector<8x96xf32> to vector<8x8xf32>
    %254 = vector.extract_strided_slice %195 {offsets = [0, 56], sizes = [8, 8], strides = [1, 1]} : vector<8x96xf32> to vector<8x8xf32>
    %255 = vector.extract_strided_slice %195 {offsets = [0, 88], sizes = [8, 8], strides = [1, 1]} : vector<8x96xf32> to vector<8x8xf32>
    %cst_107 = arith.constant dense<0.000000e+00> : vector<8x8xf32>
    %256 = tpu.matmul %253, %254, %cst_107 {dimension_numbers = #tpu.dot_dimension_numbers<[1], [1], [0], [0], [0, 0, 1, 0], [], []>} : vector<8x8xf32>, vector<8x8xf32>, vector<8x8xf32> -> vector<8x8xf32>
    %cst_108 = arith.constant 0.353553385 : f32
    %257 = vector.broadcast %cst_108 : f32 to vector<8x8xf32>
    %258 = arith.mulf %256, %257 : vector<8x8xf32>
    %259 = vector.broadcast %3 : vector<1x8xf32> to vector<8x8xf32>
    %260 = arith.addf %258, %259 : vector<8x8xf32>
    %cst_109 = arith.constant dense<0xFF800000> : vector<8xf32>
    %261 = vector.multi_reduction <maximumf>, %260, %cst_109 [1] : vector<8x8xf32> to vector<8xf32>
    %262 = vector.shape_cast %261 : vector<8xf32> to vector<8x1xf32>
    %263 = vector.broadcast %262 : vector<8x1xf32> to vector<8x8xf32>
    %264 = arith.subf %260, %263 : vector<8x8xf32>
    %265 = math.exp %264 : vector<8x8xf32>
    %cst_110 = arith.constant dense<0.000000e+00> : vector<8xf32>
    %266 = vector.multi_reduction <add>, %265, %cst_110 [1] : vector<8x8xf32> to vector<8xf32>
    %267 = vector.shape_cast %266 : vector<8xf32> to vector<8x1xf32>
    %268 = tpu.reciprocal %267 {approx = true} : vector<8x1xf32> -> vector<8x1xf32>
    %269 = vector.broadcast %268 : vector<8x1xf32> to vector<8x8xf32>
    %270 = arith.mulf %265, %269 : vector<8x8xf32>
    %cst_111 = arith.constant dense<0.000000e+00> : vector<8x8xf32>
    %271 = tpu.matmul %270, %255, %cst_111 {dimension_numbers = #tpu.dot_dimension_numbers<[1], [0], [0], [1], [0, 0, 1, 1], [], []>} : vector<8x8xf32>, vector<8x8xf32>, vector<8x8xf32> -> vector<8x8xf32>
    %272 = tpu.concatenate %214, %233, %252, %271 in 1 : vector<8x8xf32>, vector<8x8xf32>, vector<8x8xf32>, vector<8x8xf32> -> vector<8x32xf32>
    %c1_112 = arith.constant 1 : index
    %c0_113 = arith.constant 0 : index
    %c0_114 = arith.constant 0 : index
    %273 = vector.load %arg5[%c1_112, %c0_113, %c0_114] : memref<2x32x32xf32, #tpu.memory_space<vmem>>, vector<1x32x32xf32>
    %274 = vector.shape_cast %273 : vector<1x32x32xf32> to vector<32x32xf32>
    %cst_115 = arith.constant dense<0.000000e+00> : vector<8x32xf32>
    %275 = tpu.matmul %272, %274, %cst_115 {dimension_numbers = #tpu.dot_dimension_numbers<[1], [0], [0], [1], [0, 0, 1, 1], [], []>} : vector<8x32xf32>, vector<32x32xf32>, vector<8x32xf32> -> vector<8x32xf32>
    %c1_116 = arith.constant 1 : index
    %c0_117 = arith.constant 0 : index
    %c0_118 = arith.constant 0 : index
    %276 = vector.load %arg6[%c1_116, %c0_117, %c0_118] : memref<2x1x32xf32, #tpu.memory_space<vmem>>, vector<1x1x32xf32>
    %277 = vector.shape_cast %276 : vector<1x1x32xf32> to vector<1x32xf32>
    %278 = vector.broadcast %277 : vector<1x32xf32> to vector<8x32xf32>
    %279 = arith.addf %275, %278 : vector<8x32xf32>
    %280 = arith.addf %188, %279 : vector<8x32xf32>
    %c1_119 = arith.constant 1 : index
    %c0_120 = arith.constant 0 : index
    %c0_121 = arith.constant 0 : index
    %281 = vector.load %arg7[%c1_119, %c0_120, %c0_121] : memref<2x1x32xf32, #tpu.memory_space<vmem>>, vector<1x1x32xf32>
    %282 = vector.shape_cast %281 : vector<1x1x32xf32> to vector<1x32xf32>
    %c1_122 = arith.constant 1 : index
    %c0_123 = arith.constant 0 : index
    %c0_124 = arith.constant 0 : index
    %283 = vector.load %arg8[%c1_122, %c0_123, %c0_124] : memref<2x1x32xf32, #tpu.memory_space<vmem>>, vector<1x1x32xf32>
    %284 = vector.shape_cast %283 : vector<1x1x32xf32> to vector<1x32xf32>
    %cst_125 = arith.constant dense<0.000000e+00> : vector<8xf32>
    %285 = vector.multi_reduction <add>, %280, %cst_125 [1] : vector<8x32xf32> to vector<8xf32>
    %286 = vector.shape_cast %285 : vector<8xf32> to vector<8x1xf32>
    %cst_126 = arith.constant 3.200000e+01 : f32
    %287 = vector.broadcast %cst_126 : f32 to vector<8x1xf32>
    %288 = arith.divf %286, %287 : vector<8x1xf32>
    %289 = vector.broadcast %288 : vector<8x1xf32> to vector<8x32xf32>
    %290 = arith.subf %280, %289 : vector<8x32xf32>
    %291 = arith.mulf %290, %290 : vector<8x32xf32>
    %cst_127 = arith.constant dense<0.000000e+00> : vector<8xf32>
    %292 = vector.multi_reduction <add>, %291, %cst_127 [1] : vector<8x32xf32> to vector<8xf32>
    %293 = vector.shape_cast %292 : vector<8xf32> to vector<8x1xf32>
    %cst_128 = arith.constant 3.200000e+01 : f32
    %294 = vector.broadcast %cst_128 : f32 to vector<8x1xf32>
    %295 = arith.divf %293, %294 : vector<8x1xf32>
    %cst_129 = arith.constant 9.99999996E-13 : f32
    %296 = vector.broadcast %cst_129 : f32 to vector<8x1xf32>
    %297 = arith.addf %295, %296 : vector<8x1xf32>
    %298 = math.rsqrt %297 : vector<8x1xf32>
    %299 = vector.broadcast %298 : vector<8x1xf32> to vector<8x32xf32>
    %300 = arith.mulf %290, %299 : vector<8x32xf32>
    %301 = vector.broadcast %282 : vector<1x32xf32> to vector<8x32xf32>
    %302 = arith.mulf %300, %301 : vector<8x32xf32>
    %303 = vector.broadcast %284 : vector<1x32xf32> to vector<8x32xf32>
    %304 = arith.addf %302, %303 : vector<8x32xf32>
    %c1_130 = arith.constant 1 : index
    %c0_131 = arith.constant 0 : index
    %c0_132 = arith.constant 0 : index
    %305 = vector.load %arg9[%c1_130, %c0_131, %c0_132] : memref<2x32x64xf32, #tpu.memory_space<vmem>>, vector<1x32x64xf32>
    %306 = vector.shape_cast %305 : vector<1x32x64xf32> to vector<32x64xf32>
    %cst_133 = arith.constant dense<0.000000e+00> : vector<8x64xf32>
    %307 = tpu.matmul %304, %306, %cst_133 {dimension_numbers = #tpu.dot_dimension_numbers<[1], [0], [0], [1], [0, 0, 1, 1], [], []>} : vector<8x32xf32>, vector<32x64xf32>, vector<8x64xf32> -> vector<8x64xf32>
    %c1_134 = arith.constant 1 : index
    %c0_135 = arith.constant 0 : index
    %c0_136 = arith.constant 0 : index
    %308 = vector.load %arg10[%c1_134, %c0_135, %c0_136] : memref<2x1x64xf32, #tpu.memory_space<vmem>>, vector<1x1x64xf32>
    %309 = vector.shape_cast %308 : vector<1x1x64xf32> to vector<1x64xf32>
    %310 = vector.broadcast %309 : vector<1x64xf32> to vector<8x64xf32>
    %311 = arith.addf %307, %310 : vector<8x64xf32>
    %cst_137 = arith.constant 5.000000e-01 : f32
    %312 = vector.broadcast %cst_137 : f32 to vector<8x64xf32>
    %313 = arith.mulf %312, %311 : vector<8x64xf32>
    %cst_138 = arith.constant 0.707106769 : f32
    %314 = vector.broadcast %cst_138 : f32 to vector<8x64xf32>
    %315 = arith.mulf %311, %314 : vector<8x64xf32>
    %316 = math.erf %315 : vector<8x64xf32>
    %cst_139 = arith.constant 1.000000e+00 : f32
    %317 = vector.broadcast %cst_139 : f32 to vector<8x64xf32>
    %318 = arith.addf %317, %316 : vector<8x64xf32>
    %319 = arith.mulf %313, %318 : vector<8x64xf32>
    %c1_140 = arith.constant 1 : index
    %c0_141 = arith.constant 0 : index
    %c0_142 = arith.constant 0 : index
    %320 = vector.load %arg11[%c1_140, %c0_141, %c0_142] : memref<2x64x32xf32, #tpu.memory_space<vmem>>, vector<1x64x32xf32>
    %321 = vector.shape_cast %320 : vector<1x64x32xf32> to vector<64x32xf32>
    %cst_143 = arith.constant dense<0.000000e+00> : vector<8x32xf32>
    %322 = tpu.matmul %319, %321, %cst_143 {dimension_numbers = #tpu.dot_dimension_numbers<[1], [0], [0], [1], [0, 0, 1, 1], [], []>} : vector<8x64xf32>, vector<64x32xf32>, vector<8x32xf32> -> vector<8x32xf32>
    %c1_144 = arith.constant 1 : index
    %c0_145 = arith.constant 0 : index
    %c0_146 = arith.constant 0 : index
    %323 = vector.load %arg12[%c1_144, %c0_145, %c0_146] : memref<2x1x32xf32, #tpu.memory_space<vmem>>, vector<1x1x32xf32>
    %324 = vector.shape_cast %323 : vector<1x1x32xf32> to vector<1x32xf32>
    %325 = vector.broadcast %324 : vector<1x32xf32> to vector<8x32xf32>
    %326 = arith.addf %322, %325 : vector<8x32xf32>
    %327 = arith.addf %304, %326 : vector<8x32xf32>
    %c1_147 = arith.constant 1 : index
    %c0_148 = arith.constant 0 : index
    %c0_149 = arith.constant 0 : index
    %328 = vector.load %arg13[%c1_147, %c0_148, %c0_149] : memref<2x1x32xf32, #tpu.memory_space<vmem>>, vector<1x1x32xf32>
    %329 = vector.shape_cast %328 : vector<1x1x32xf32> to vector<1x32xf32>
    %c1_150 = arith.constant 1 : index
    %c0_151 = arith.constant 0 : index
    %c0_152 = arith.constant 0 : index
    %330 = vector.load %arg14[%c1_150, %c0_151, %c0_152] : memref<2x1x32xf32, #tpu.memory_space<vmem>>, vector<1x1x32xf32>
    %331 = vector.shape_cast %330 : vector<1x1x32xf32> to vector<1x32xf32>
    %cst_153 = arith.constant dense<0.000000e+00> : vector<8xf32>
    %332 = vector.multi_reduction <add>, %327, %cst_153 [1] : vector<8x32xf32> to vector<8xf32>
    %333 = vector.shape_cast %332 : vector<8xf32> to vector<8x1xf32>
    %cst_154 = arith.constant 3.200000e+01 : f32
    %334 = vector.broadcast %cst_154 : f32 to vector<8x1xf32>
    %335 = arith.divf %333, %334 : vector<8x1xf32>
    %336 = vector.broadcast %335 : vector<8x1xf32> to vector<8x32xf32>
    %337 = arith.subf %327, %336 : vector<8x32xf32>
    %338 = arith.mulf %337, %337 : vector<8x32xf32>
    %cst_155 = arith.constant dense<0.000000e+00> : vector<8xf32>
    %339 = vector.multi_reduction <add>, %338, %cst_155 [1] : vector<8x32xf32> to vector<8xf32>
    %340 = vector.shape_cast %339 : vector<8xf32> to vector<8x1xf32>
    %cst_156 = arith.constant 3.200000e+01 : f32
    %341 = vector.broadcast %cst_156 : f32 to vector<8x1xf32>
    %342 = arith.divf %340, %341 : vector<8x1xf32>
    %cst_157 = arith.constant 9.99999996E-13 : f32
    %343 = vector.broadcast %cst_157 : f32 to vector<8x1xf32>
    %344 = arith.addf %342, %343 : vector<8x1xf32>
    %345 = math.rsqrt %344 : vector<8x1xf32>
    %346 = vector.broadcast %345 : vector<8x1xf32> to vector<8x32xf32>
    %347 = arith.mulf %337, %346 : vector<8x32xf32>
    %348 = vector.broadcast %329 : vector<1x32xf32> to vector<8x32xf32>
    %349 = arith.mulf %347, %348 : vector<8x32xf32>
    %350 = vector.broadcast %331 : vector<1x32xf32> to vector<8x32xf32>
    %351 = arith.addf %349, %350 : vector<8x32xf32>
    %352 = vector.extract_strided_slice %351 {offsets = [0, 0], sizes = [1, 32], strides = [1, 1]} : vector<8x32xf32> to vector<1x32xf32>
    %c0_158 = arith.constant 0 : index
    %c0_159 = arith.constant 0 : index
    %353 = vector.load %arg17[%c0_158, %c0_159] : memref<32x32xf32, #tpu.memory_space<vmem>>, vector<32x32xf32>
    %cst_160 = arith.constant dense<0.000000e+00> : vector<1x32xf32>
    %354 = tpu.matmul %352, %353, %cst_160 {dimension_numbers = #tpu.dot_dimension_numbers<[1], [0], [0], [1], [0, 0, 1, 1], [], []>} : vector<1x32xf32>, vector<32x32xf32>, vector<1x32xf32> -> vector<1x32xf32>
    %c0_161 = arith.constant 0 : index
    %c0_162 = arith.constant 0 : index
    %355 = vector.load %arg18[%c0_161, %c0_162] : memref<1x32xf32, #tpu.memory_space<vmem>>, vector<1x32xf32>
    %356 = arith.addf %354, %355 : vector<1x32xf32>
    %357 = math.tanh %356 : vector<1x32xf32>
    %c0_163 = arith.constant 0 : index
    %c0_164 = arith.constant 0 : index
    %358 = vector.load %arg19[%c0_163, %c0_164] : memref<32x128xf32, #tpu.memory_space<vmem>>, vector<32x128xf32>
    %cst_165 = arith.constant dense<0.000000e+00> : vector<1x128xf32>
    %359 = tpu.matmul %357, %358, %cst_165 {dimension_numbers = #tpu.dot_dimension_numbers<[1], [0], [0], [1], [0, 0, 1, 1], [], []>} : vector<1x32xf32>, vector<32x128xf32>, vector<1x128xf32> -> vector<1x128xf32>
    %c0_166 = arith.constant 0 : index
    %c0_167 = arith.constant 0 : index
    %360 = vector.load %arg20[%c0_166, %c0_167] : memref<1x128xf32, #tpu.memory_space<vmem>>, vector<1x128xf32>
    %361 = arith.addf %359, %360 : vector<1x128xf32>
    %c0_168 = arith.constant 0 : index
    %c0_169 = arith.constant 0 : index
    %c0_170 = arith.constant 0 : index
    %362 = vector.load %arg21[%c0_168, %c0_169, %c0_170] : memref<1x1x128xf32, #tpu.memory_space<vmem>>, vector<1x1x128xf32>
    %363 = vector.shape_cast %362 : vector<1x1x128xf32> to vector<1x128xf32>
    %364 = vector.shape_cast %361 : vector<1x128xf32> to vector<1x1x128xf32>
    tpu.vector_store %arg21[%c0_168, %c0_169, %c0_170], %364 {strides = array<i32>} : memref<1x1x128xf32, #tpu.memory_space<vmem>>, vector<1x1x128xf32>,
    return
  }
  func.func @transform_0(%arg0: i32) -> (i32, i32, i32) {
    %c0_i32 = arith.constant 0 : i32
    %c0_i32_0 = arith.constant 0 : i32
    %c0_i32_1 = arith.constant 0 : i32
    return %arg0, %c0_i32, %c0_i32_0 : i32, i32, i32
  }
  func.func @transform_1(%arg0: i32) -> (i32, i32, i32) {
    %c0_i32 = arith.constant 0 : i32
    %c0_i32_0 = arith.constant 0 : i32
    %c0_i32_1 = arith.constant 0 : i32
    return %arg0, %c0_i32, %c0_i32_0 : i32, i32, i32
  }
  func.func @transform_2(%arg0: i32) -> (i32, i32, i32) {
    %c0_i32 = arith.constant 0 : i32
    %c0_i32_0 = arith.constant 0 : i32
    %c0_i32_1 = arith.constant 0 : i32
    %c0_i32_2 = arith.constant 0 : i32
    return %c0_i32, %c0_i32_0, %c0_i32_1 : i32, i32, i32
  }
  func.func @transform_3(%arg0: i32) -> (i32, i32, i32) {
    %c0_i32 = arith.constant 0 : i32
    %c0_i32_0 = arith.constant 0 : i32
    %c0_i32_1 = arith.constant 0 : i32
    %c0_i32_2 = arith.constant 0 : i32
    return %c0_i32, %c0_i32_0, %c0_i32_1 : i32, i32, i32
  }
  func.func @transform_4(%arg0: i32) -> (i32, i32, i32) {
    %c0_i32 = arith.constant 0 : i32
    %c0_i32_0 = arith.constant 0 : i32
    %c0_i32_1 = arith.constant 0 : i32
    %c0_i32_2 = arith.constant 0 : i32
    return %c0_i32, %c0_i32_0, %c0_i32_1 : i32, i32, i32
  }
  func.func @transform_5(%arg0: i32) -> (i32, i32, i32) {
    %c0_i32 = arith.constant 0 : i32
    %c0_i32_0 = arith.constant 0 : i32
    %c0_i32_1 = arith.constant 0 : i32
    %c0_i32_2 = arith.constant 0 : i32
    return %c0_i32, %c0_i32_0, %c0_i32_1 : i32, i32, i32
  }
  func.func @transform_6(%arg0: i32) -> (i32, i32, i32) {
    %c0_i32 = arith.constant 0 : i32
    %c0_i32_0 = arith.constant 0 : i32
    %c0_i32_1 = arith.constant 0 : i32
    %c0_i32_2 = arith.constant 0 : i32
    return %c0_i32, %c0_i32_0, %c0_i32_1 : i32, i32, i32
  }
  func.func @transform_7(%arg0: i32) -> (i32, i32, i32) {
    %c0_i32 = arith.constant 0 : i32
    %c0_i32_0 = arith.constant 0 : i32
    %c0_i32_1 = arith.constant 0 : i32
    %c0_i32_2 = arith.constant 0 : i32
    return %c0_i32, %c0_i32_0, %c0_i32_1 : i32, i32, i32
  }
  func.func @transform_8(%arg0: i32) -> (i32, i32, i32) {
    %c0_i32 = arith.constant 0 : i32
    %c0_i32_0 = arith.constant 0 : i32
    %c0_i32_1 = arith.constant 0 : i32
    %c0_i32_2 = arith.constant 0 : i32
    return %c0_i32, %c0_i32_0, %c0_i32_1 : i32, i32, i32
  }
  func.func @transform_9(%arg0: i32) -> (i32, i32, i32) {
    %c0_i32 = arith.constant 0 : i32
    %c0_i32_0 = arith.constant 0 : i32
    %c0_i32_1 = arith.constant 0 : i32
    %c0_i32_2 = arith.constant 0 : i32
    return %c0_i32, %c0_i32_0, %c0_i32_1 : i32, i32, i32
  }
  func.func @transform_10(%arg0: i32) -> (i32, i32, i32) {
    %c0_i32 = arith.constant 0 : i32
    %c0_i32_0 = arith.constant 0 : i32
    %c0_i32_1 = arith.constant 0 : i32
    %c0_i32_2 = arith.constant 0 : i32
    return %c0_i32, %c0_i32_0, %c0_i32_1 : i32, i32, i32
  }
  func.func @transform_11(%arg0: i32) -> (i32, i32, i32) {
    %c0_i32 = arith.constant 0 : i32
    %c0_i32_0 = arith.constant 0 : i32
    %c0_i32_1 = arith.constant 0 : i32
    %c0_i32_2 = arith.constant 0 : i32
    return %c0_i32, %c0_i32_0, %c0_i32_1 : i32, i32, i32
  }
  func.func @transform_12(%arg0: i32) -> (i32, i32, i32) {
    %c0_i32 = arith.constant 0 : i32
    %c0_i32_0 = arith.constant 0 : i32
    %c0_i32_1 = arith.constant 0 : i32
    %c0_i32_2 = arith.constant 0 : i32
    return %c0_i32, %c0_i32_0, %c0_i32_1 : i32, i32, i32
  }
  func.func @transform_13(%arg0: i32) -> (i32, i32, i32) {
    %c0_i32 = arith.constant 0 : i32
    %c0_i32_0 = arith.constant 0 : i32
    %c0_i32_1 = arith.constant 0 : i32
    %c0_i32_2 = arith.constant 0 : i32
    return %c0_i32, %c0_i32_0, %c0_i32_1 : i32, i32, i32
  }
  func.func @transform_14(%arg0: i32) -> (i32, i32) {
    %c0_i32 = arith.constant 0 : i32
    %c0_i32_0 = arith.constant 0 : i32
    %c0_i32_1 = arith.constant 0 : i32
    return %c0_i32, %c0_i32_0 : i32, i32
  }
  func.func @transform_15(%arg0: i32) -> (i32, i32) {
    %c0_i32 = arith.constant 0 : i32
    %c0_i32_0 = arith.constant 0 : i32
    %c0_i32_1 = arith.constant 0 : i32
    return %c0_i32, %c0_i32_0 : i32, i32
  }
  func.func @transform_16(%arg0: i32) -> (i32, i32) {
    %c0_i32 = arith.constant 0 : i32
    %c0_i32_0 = arith.constant 0 : i32
    %c0_i32_1 = arith.constant 0 : i32
    return %c0_i32, %c0_i32_0 : i32, i32
  }
  func.func @transform_17(%arg0: i32) -> (i32, i32) {
    %c0_i32 = arith.constant 0 : i32
    %c0_i32_0 = arith.constant 0 : i32
    %c0_i32_1 = arith.constant 0 : i32
    return %c0_i32, %c0_i32_0 : i32, i32
  }
  func.func @transform_18(%arg0: i32) -> (i32, i32) {
    %c0_i32 = arith.constant 0 : i32
    %c0_i32_0 = arith.constant 0 : i32
    %c0_i32_1 = arith.constant 0 : i32
    return %c0_i32, %c0_i32_0 : i32, i32
  }
  func.func @transform_19(%arg0: i32) -> (i32, i32) {
    %c0_i32 = arith.constant 0 : i32
    %c0_i32_0 = arith.constant 0 : i32
    %c0_i32_1 = arith.constant 0 : i32
    return %c0_i32, %c0_i32_0 : i32, i32
  }
  func.func @transform_20(%arg0: i32) -> (i32, i32, i32) {
    %c0_i32 = arith.constant 0 : i32
    %c0_i32_0 = arith.constant 0 : i32
    %c0_i32_1 = arith.constant 0 : i32
    return %arg0, %c0_i32, %c0_i32_0 : i32, i32, i32
  }
}

</mosaic_0001>

<llo_original>
// kernel: tpu_custom_call.1
$region0: #{tpu_custom_call.1}
  #allocation0 [shape = 'u32[]', space=smem, size = 0x4, offset = 0x4, fixed_abs, tag = 'smem constant byte address 0x4 - core index']
  #allocation1 [shape = 'u32[144,128]{1,0:T(1,128)}', space=vmem, size = 0x12000, scoped, tag = 'internal scratch']
  %s0 = inlined_call_operand.hbm [shape: f32[2,8,32], index: 0, kind: input, shape index: {}]
  %s1 = inlined_call_operand.hbm [shape: f32[2,1,8], index: 1, kind: input, shape index: {}]
  %s2 = inlined_call_operand.vmem [shape: f32[2,32,96], index: 2, kind: input, shape index: {}]
  %s3 = inlined_call_operand.hbm [shape: f32[2,1,96], index: 3, kind: input, shape index: {}]
  %s4 = inlined_call_operand.vmem [shape: f32[2,32,32], index: 4, kind: input, shape index: {}]
  %s5 = inlined_call_operand.hbm [shape: f32[2,1,32], index: 5, kind: input, shape index: {}]
  %s6 = inlined_call_operand.hbm [shape: f32[2,1,32], index: 6, kind: input, shape index: {}]
  %s7 = inlined_call_operand.hbm [shape: f32[2,1,32], index: 7, kind: input, shape index: {}]
  %s8 = inlined_call_operand.vmem [shape: f32[2,32,64], index: 8, kind: input, shape index: {}]
  %s9 = inlined_call_operand.hbm [shape: f32[2,1,64], index: 9, kind: input, shape index: {}]
  %s10 = inlined_call_operand.vmem [shape: f32[2,64,32], index: 10, kind: input, shape index: {}]
  %s11 = inlined_call_operand.hbm [shape: f32[2,1,32], index: 11, kind: input, shape index: {}]
  %s12 = inlined_call_operand.hbm [shape: f32[2,1,32], index: 12, kind: input, shape index: {}]
  %s13 = inlined_call_operand.hbm [shape: f32[2,1,32], index: 13, kind: input, shape index: {}]
  %s14 = inlined_call_operand.hbm [shape: f32[1,32], index: 14, kind: input, shape index: {}]
  %s15 = inlined_call_operand.hbm [shape: f32[1,32], index: 15, kind: input, shape index: {}]
  %s16 = inlined_call_operand.vmem [shape: f32[32,32], index: 16, kind: input, shape index: {}]
  %s17 = inlined_call_operand.hbm [shape: f32[1,32], index: 17, kind: input, shape index: {}]
  %s18 = inlined_call_operand.vmem [shape: f32[32,128], index: 18, kind: input, shape index: {}]
  %s19 = inlined_call_operand.vmem [shape: f32[1,128], index: 19, kind: input, shape index: {}]
  %s20 = inlined_call_operand.hbm [shape: f32[2,1,128], index: 20, kind: output, shape index: {}]
  %s21 = sld [smem:[#allocation0]]
  $region165: #{tpu_custom_call.1} parent=0
    _
  %s23 = ssub.s32 1, %s21
  %s24 = scalar_select 0, %s23, %s21
  $region1: #{tpu_custom_call.1} parent=0
    #allocation2 [shape = 'u8[8192]{0}', space=vmem, size = 0x2000, scoped, tag = 'input window, operand 0']
    #allocation3 [shape = 's32[2]{0}', space=sflag, size = 0x8, scoped, tag = 'scoped memory for tpu_custom_call.1']
    #allocation4 [shape = 's32[2]{0}', space=sflag, size = 0x8, scoped, tag = 'scoped memory for tpu_custom_call.1']
    #allocation5 [shape = 'u8[1024]{0}', space=vmem, size = 0x400, scoped, tag = 'input window, operand 1']
    #allocation6 [shape = 's32[2]{0}', space=sflag, size = 0x8, scoped, tag = 'scoped memory for tpu_custom_call.1']
    #allocation7 [shape = 'u8[1024]{0}', space=vmem, size = 0x400, scoped, tag = 'input window, operand 3, single buffered']
    #allocation8 [shape = 'u8[1024]{0}', space=vmem, size = 0x400, scoped, tag = 'input window, operand 5, single buffered']
    #allocation9 [shape = 's32[1]{0}', space=sflag, size = 0x4, scoped, tag = 'scoped memory for tpu_custom_call.1']
    #allocation10 [shape = 'u8[1024]{0}', space=vmem, size = 0x400, scoped, tag = 'input window, operand 6, single buffered']
    #allocation11 [shape = 'u8[1024]{0}', space=vmem, size = 0x400, scoped, tag = 'input window, operand 7, single buffered']
    #allocation12 [shape = 's32[1]{0}', space=sflag, size = 0x4, scoped, tag = 'scoped memory for tpu_custom_call.1']
    #allocation13 [shape = 'u8[1024]{0}', space=vmem, size = 0x400, scoped, tag = 'input window, operand 9, single buffered']
    #allocation14 [shape = 'u8[1024]{0}', space=vmem, size = 0x400, scoped, tag = 'input window, operand 11, single buffered']
    #allocation15 [shape = 's32[1]{0}', space=sflag, size = 0x4, scoped, tag = 'scoped memory for tpu_custom_call.1']
    #allocation16 [shape = 'u8[1024]{0}', space=vmem, size = 0x400, scoped, tag = 'input window, operand 12, single buffered']
    #allocation17 [shape = 'u8[1024]{0}', space=vmem, size = 0x400, scoped, tag = 'input window, operand 13, single buffered']
    #allocation18 [shape = 's32[1]{0}', space=sflag, size = 0x4, scoped, tag = 'scoped memory for tpu_custom_call.1']
    #allocation19 [shape = 'u8[512]{0}', space=vmem, size = 0x400, scoped, tag = 'input window, operand 14, single buffered']
    #allocation20 [shape = 'u8[512]{0}', space=vmem, size = 0x400, scoped, tag = 'input window, operand 15, single buffered']
    #allocation21 [shape = 's32[1]{0}', space=sflag, size = 0x4, scoped, tag = 'scoped memory for tpu_custom_call.1']
    #allocation22 [shape = 'u8[512]{0}', space=vmem, size = 0x400, scoped, tag = 'input window, operand 17, single buffered']
    #allocation23 [shape = 'u8[1024]{0}', space=vmem, size = 0x400, scoped, tag = 'output window, operand 0']
    %25 = vsyncpa [#allocation3], 0
    %s26 = scalar_lea.sflag [#allocation3], 1
    %27 = vsyncpa %s26, 0
    %28 = vsyncpa [#allocation6], 0
    %s29 = scalar_lea.sflag [#allocation6], 1
    %30 = vsyncpa %s29, 0
    %31 = vsyncpa [#allocation9], 0
    %32 = vsyncpa [#allocation12], 0
    %33 = vsyncpa [#allocation15], 0
    %34 = vsyncpa [#allocation18], 0
    %35 = vsyncpa [#allocation21], 0
    %36 = vsyncpa [#allocation4], 0
    %s37 = scalar_lea.sflag [#allocation4], 1
    %38 = vsyncpa %s37, 0
    loop: start=0, step=1, limit=4
    $region2: #{tpu_custom_call.1} parent=1 // loop_pre_header
      _
    $region3: #{tpu_custom_call.1} parent=1 // loop_header
      %s40 = sphi 0, %s44
      %p41 = scmp.ge.s32.totalorder %s40, 4
      %s50 = sphi 0, %s52
      %s53 = sphi 0, %s50
      %s54 = sphi 0, %s53
      %s70 = sphi 0, %s54
      %s76 = sphi 0, %s78
      %s79 = sphi 0, %s76
      %s80 = sphi 0, %s79
      %s96 = sphi 0, %s80
      %s100 = sphi 0, %s100
      %s102 = sphi 0, %s100
      %s103 = sphi 0, %s102
      %s117 = sphi 0, %s103
      %s121 = sphi 0, %s121
      %s123 = sphi 0, %s121
      %s124 = sphi 0, %s123
      %s138 = sphi 0, %s124
      %s142 = sphi 0, %s142
      %s144 = sphi 0, %s142
      %s145 = sphi 0, %s144
      %s159 = sphi 0, %s145
      %s163 = sphi 0, %s163
      %s165 = sphi 0, %s163
      %s166 = sphi 0, %s165
      %s180 = sphi 0, %s166
      %s184 = sphi 0, %s184
      %s186 = sphi 0, %s184
      %s187 = sphi 0, %s186
      %s201 = sphi 0, %s187
      %s205 = sphi 0, %s205
      %s207 = sphi 0, %s205
      %s208 = sphi 0, %s207
      %s222 = sphi 0, %s208
      %s226 = sphi 0, %s226
      %s228 = sphi 0, %s226
      %s229 = sphi 0, %s228
      %s243 = sphi 0, %s229
      %s247 = sphi 0, %s247
      %s249 = sphi 0, %s247
      %s250 = sphi 0, %s249
      %s264 = sphi 0, %s250
      %s268 = sphi 0, %s268
      %s270 = sphi 0, %s268
      %s271 = sphi 0, %s270
      %s285 = sphi 0, %s271
      %s289 = sphi 0, %s289
      %s291 = sphi 0, %s289
      %s292 = sphi 0, %s291
      %s306 = sphi 0, %s292
      %s310 = sphi 0, %s310
      %s312 = sphi 0, %s310
      %s313 = sphi 0, %s312
      %s327 = sphi 0, %s313
      %s331 = sphi 0, %s331
      %s333 = sphi 0, %s331
      %s334 = sphi 0, %s333
      %s348 = sphi 0, %s334
      %s352 = sphi 0, %s352
      %s354 = sphi 0, %s352
      %s355 = sphi 0, %s354
      %s369 = sphi 0, %s355
      %s373 = sphi 0, %s373
      %s375 = sphi 0, %s373
      %s376 = sphi 0, %s375
      %s390 = sphi 0, %s376
      %s394 = sphi 0, %s394
      %s396 = sphi 0, %s394
      %s397 = sphi 0, %s396
      %s411 = sphi 0, %s397
      %s415 = sphi 0, %s415
      %s417 = sphi 0, %s415
      %s418 = sphi 0, %s417
      %s432 = sphi 0, %s418
      %s436 = sphi 0, %s436
      %s438 = sphi 0, %s436
      %s439 = sphi 0, %s438
      %s453 = sphi 0, %s439
      %s457 = sphi 0, %s457
      %s459 = sphi 0, %s457
      %s460 = sphi 0, %s459
      %s474 = sphi 0, %s460
      %s480 = sphi 0, %s482
      %s483 = sphi 0, %s480
      %s484 = sphi 0, %s483
      %s500 = sphi 0, %s484
    $region4: #{tpu_custom_call.1} parent=1 // loop_header_branch
      %43 = sbr.rel (%p41) target = $region8
    $region5: #{tpu_custom_call.1} parent=1 // loop_body
      %s45 = ssub.s32 %s40, 1
      %s46 = ssub.s32 %s40, 2
      %s47 = sadd.s32 %s40, 1
      %s48 = ssub.s32 %s40, %s47
      %p49 = scmp.eq.s32.totalorder %s48, 0
      %s51 = sadd.s32 %s50, 1
      %s52 = scalar_select %p49, %s50, %s51
      %p55 = pneg %p49
      %p56 = scmp.eq.s32.totalorder %s40, 1
      %p57 = por %p55, %p56
      %p58 = scmp.ne.s32.totalorder %s50, %s53
      %p59 = scmp.eq.s32.totalorder %s40, 0
      %p60 = por %p58, %p59
      %p61 = scmp.ne.s32.totalorder %s50, %s53
      %p62 = scmp.eq.s32.totalorder %s45, 1
      %p63 = por %p61, %p62
      %p64 = scmp.ne.s32.totalorder %s53, %s54
      %p65 = scmp.eq.s32.totalorder %s45, 0
      %p66 = por %p64, %p65
      %p67 = scmp.ne.s32.totalorder %s53, %s54
      %p68 = scmp.eq.s32.totalorder %s46, 1
      %p69 = por %p67, %p68
      %p71 = scmp.ne.s32.totalorder %s54, %s70
      %p72 = scmp.eq.s32.totalorder %s46, 0
      %p73 = por %p71, %p72
      %s74 = ssub.s32 %s40, %s47
      %p75 = scmp.eq.s32.totalorder %s74, 0
      %s77 = sadd.s32 %s76, 1
      %s78 = scalar_select %p75, %s76, %s77
      %p81 = pneg %p75
      %p82 = scmp.eq.s32.totalorder %s40, 1
      %p83 = por %p81, %p82
      %p84 = scmp.ne.s32.totalorder %s76, %s79
      %p85 = scmp.eq.s32.totalorder %s40, 0
      %p86 = por %p84, %p85
      %p87 = scmp.ne.s32.totalorder %s76, %s79
      %p88 = scmp.eq.s32.totalorder %s45, 1
      %p89 = por %p87, %p88
      %p90 = scmp.ne.s32.totalorder %s79, %s80
      %p91 = scmp.eq.s32.totalorder %s45, 0
      %p92 = por %p90, %p91
      %p93 = scmp.ne.s32.totalorder %s79, %s80
      %p94 = scmp.eq.s32.totalorder %s46, 1
      %p95 = por %p93, %p94
      %p97 = scmp.ne.s32.totalorder %s80, %s96
      %p98 = scmp.eq.s32.totalorder %s46, 0
      %p99 = por %p97, %p98
      %s101 = sadd.s32 %s100, 1
      %p104 = scmp.eq.s32.totalorder %s40, 1
      %p105 = scmp.ne.s32.totalorder %s100, %s102
      %p106 = scmp.eq.s32.totalorder %s40, 0
      %p107 = por %p105, %p106
      %p108 = scmp.ne.s32.totalorder %s100, %s102
      %p109 = scmp.eq.s32.totalorder %s45, 1
      %p110 = por %p108, %p109
      %p111 = scmp.ne.s32.totalorder %s102, %s103
      %p112 = scmp.eq.s32.totalorder %s45, 0
      %p113 = por %p111, %p112
      %p114 = scmp.ne.s32.totalorder %s102, %s103
      %p115 = scmp.eq.s32.totalorder %s46, 1
      %p116 = por %p114, %p115
      %p118 = scmp.ne.s32.totalorder %s103, %s117
      %p119 = scmp.eq.s32.totalorder %s46, 0
      %p120 = por %p118, %p119
      %s122 = sadd.s32 %s121, 1
      %p125 = scmp.eq.s32.totalorder %s40, 1
      %p126 = scmp.ne.s32.totalorder %s121, %s123
      %p127 = scmp.eq.s32.totalorder %s40, 0
      %p128 = por %p126, %p127
      %p129 = scmp.ne.s32.totalorder %s121, %s123
      %p130 = scmp.eq.s32.totalorder %s45, 1
      %p131 = por %p129, %p130
      %p132 = scmp.ne.s32.totalorder %s123, %s124
      %p133 = scmp.eq.s32.totalorder %s45, 0
      %p134 = por %p132, %p133
      %p135 = scmp.ne.s32.totalorder %s123, %s124
      %p136 = scmp.eq.s32.totalorder %s46, 1
      %p137 = por %p135, %p136
      %p139 = scmp.ne.s32.totalorder %s124, %s138
      %p140 = scmp.eq.s32.totalorder %s46, 0
      %p141 = por %p139, %p140
      %s143 = sadd.s32 %s142, 1
      %p146 = scmp.eq.s32.totalorder %s40, 1
      %p147 = scmp.ne.s32.totalorder %s142, %s144
      %p148 = scmp.eq.s32.totalorder %s40, 0
      %p149 = por %p147, %p148
      %p150 = scmp.ne.s32.totalorder %s142, %s144
      %p151 = scmp.eq.s32.totalorder %s45, 1
      %p152 = por %p150, %p151
      %p153 = scmp.ne.s32.totalorder %s144, %s145
      %p154 = scmp.eq.s32.totalorder %s45, 0
      %p155 = por %p153, %p154
      %p156 = scmp.ne.s32.totalorder %s144, %s145
      %p157 = scmp.eq.s32.totalorder %s46, 1
      %p158 = por %p156, %p157
      %p160 = scmp.ne.s32.totalorder %s145, %s159
      %p161 = scmp.eq.s32.totalorder %s46, 0
      %p162 = por %p160, %p161
      %s164 = sadd.s32 %s163, 1
      %p167 = scmp.eq.s32.totalorder %s40, 1
      %p168 = scmp.ne.s32.totalorder %s163, %s165
      %p169 = scmp.eq.s32.totalorder %s40, 0
      %p170 = por %p168, %p169
      %p171 = scmp.ne.s32.totalorder %s163, %s165
      %p172 = scmp.eq.s32.totalorder %s45, 1
      %p173 = por %p171, %p172
      %p174 = scmp.ne.s32.totalorder %s165, %s166
      %p175 = scmp.eq.s32.totalorder %s45, 0
      %p176 = por %p174, %p175
      %p177 = scmp.ne.s32.totalorder %s165, %s166
      %p178 = scmp.eq.s32.totalorder %s46, 1
      %p179 = por %p177, %p178
      %p181 = scmp.ne.s32.totalorder %s166, %s180
      %p182 = scmp.eq.s32.totalorder %s46, 0
      %p183 = por %p181, %p182
      %s185 = sadd.s32 %s184, 1
      %p188 = scmp.eq.s32.totalorder %s40, 1
      %p189 = scmp.ne.s32.totalorder %s184, %s186
      %p190 = scmp.eq.s32.totalorder %s40, 0
      %p191 = por %p189, %p190
      %p192 = scmp.ne.s32.totalorder %s184, %s186
      %p193 = scmp.eq.s32.totalorder %s45, 1
      %p194 = por %p192, %p193
      %p195 = scmp.ne.s32.totalorder %s186, %s187
      %p196 = scmp.eq.s32.totalorder %s45, 0
      %p197 = por %p195, %p196
      %p198 = scmp.ne.s32.totalorder %s186, %s187
      %p199 = scmp.eq.s32.totalorder %s46, 1
      %p200 = por %p198, %p199
      %p202 = scmp.ne.s32.totalorder %s187, %s201
      %p203 = scmp.eq.s32.totalorder %s46, 0
      %p204 = por %p202, %p203
      %s206 = sadd.s32 %s205, 1
      %p209 = scmp.eq.s32.totalorder %s40, 1
      %p210 = scmp.ne.s32.totalorder %s205, %s207
      %p211 = scmp.eq.s32.totalorder %s40, 0
      %p212 = por %p210, %p211
      %p213 = scmp.ne.s32.totalorder %s205, %s207
      %p214 = scmp.eq.s32.totalorder %s45, 1
      %p215 = por %p213, %p214
      %p216 = scmp.ne.s32.totalorder %s207, %s208
      %p217 = scmp.eq.s32.totalorder %s45, 0
      %p218 = por %p216, %p217
      %p219 = scmp.ne.s32.totalorder %s207, %s208
      %p220 = scmp.eq.s32.totalorder %s46, 1
      %p221 = por %p219, %p220
      %p223 = scmp.ne.s32.totalorder %s208, %s222
      %p224 = scmp.eq.s32.totalorder %s46, 0
      %p225 = por %p223, %p224
      %s227 = sadd.s32 %s226, 1
      %p230 = scmp.eq.s32.totalorder %s40, 1
      %p231 = scmp.ne.s32.totalorder %s226, %s228
      %p232 = scmp.eq.s32.totalorder %s40, 0
      %p233 = por %p231, %p232
      %p234 = scmp.ne.s32.totalorder %s226, %s228
      %p235 = scmp.eq.s32.totalorder %s45, 1
      %p236 = por %p234, %p235
      %p237 = scmp.ne.s32.totalorder %s228, %s229
      %p238 = scmp.eq.s32.totalorder %s45, 0
      %p239 = por %p237, %p238
      %p240 = scmp.ne.s32.totalorder %s228, %s229
      %p241 = scmp.eq.s32.totalorder %s46, 1
      %p242 = por %p240, %p241
      %p244 = scmp.ne.s32.totalorder %s229, %s243
      %p245 = scmp.eq.s32.totalorder %s46, 0
      %p246 = por %p244, %p245
      %s248 = sadd.s32 %s247, 1
      %p251 = scmp.eq.s32.totalorder %s40, 1
      %p252 = scmp.ne.s32.totalorder %s247, %s249
      %p253 = scmp.eq.s32.totalorder %s40, 0
      %p254 = por %p252, %p253
      %p255 = scmp.ne.s32.totalorder %s247, %s249
      %p256 = scmp.eq.s32.totalorder %s45, 1
      %p257 = por %p255, %p256
      %p258 = scmp.ne.s32.totalorder %s249, %s250
      %p259 = scmp.eq.s32.totalorder %s45, 0
      %p260 = por %p258, %p259
      %p261 = scmp.ne.s32.totalorder %s249, %s250
      %p262 = scmp.eq.s32.totalorder %s46, 1
      %p263 = por %p261, %p262
      %p265 = scmp.ne.s32.totalorder %s250, %s264
      %p266 = scmp.eq.s32.totalorder %s46, 0
      %p267 = por %p265, %p266
      %s269 = sadd.s32 %s268, 1
      %p272 = scmp.eq.s32.totalorder %s40, 1
      %p273 = scmp.ne.s32.totalorder %s268, %s270
      %p274 = scmp.eq.s32.totalorder %s40, 0
      %p275 = por %p273, %p274
      %p276 = scmp.ne.s32.totalorder %s268, %s270
      %p277 = scmp.eq.s32.totalorder %s45, 1
      %p278 = por %p276, %p277
      %p279 = scmp.ne.s32.totalorder %s270, %s271
      %p280 = scmp.eq.s32.totalorder %s45, 0
      %p281 = por %p279, %p280
      %p282 = scmp.ne.s32.totalorder %s270, %s271
      %p283 = scmp.eq.s32.totalorder %s46, 1
      %p284 = por %p282, %p283
      %p286 = scmp.ne.s32.totalorder %s271, %s285
      %p287 = scmp.eq.s32.totalorder %s46, 0
      %p288 = por %p286, %p287
      %s290 = sadd.s32 %s289, 1
      %p293 = scmp.eq.s32.totalorder %s40, 1
      %p294 = scmp.ne.s32.totalorder %s289, %s291
      %p295 = scmp.eq.s32.totalorder %s40, 0
      %p296 = por %p294, %p295
      %p297 = scmp.ne.s32.totalorder %s289, %s291
      %p298 = scmp.eq.s32.totalorder %s45, 1
      %p299 = por %p297, %p298
      %p300 = scmp.ne.s32.totalorder %s291, %s292
      %p301 = scmp.eq.s32.totalorder %s45, 0
      %p302 = por %p300, %p301
      %p303 = scmp.ne.s32.totalorder %s291, %s292
      %p304 = scmp.eq.s32.totalorder %s46, 1
      %p305 = por %p303, %p304
      %p307 = scmp.ne.s32.totalorder %s292, %s306
      %p308 = scmp.eq.s32.totalorder %s46, 0
      %p309 = por %p307, %p308
      %s311 = sadd.s32 %s310, 1
      %p314 = scmp.eq.s32.totalorder %s40, 1
      %p315 = scmp.ne.s32.totalorder %s310, %s312
      %p316 = scmp.eq.s32.totalorder %s40, 0
      %p317 = por %p315, %p316
      %p318 = scmp.ne.s32.totalorder %s310, %s312
      %p319 = scmp.eq.s32.totalorder %s45, 1
      %p320 = por %p318, %p319
      %p321 = scmp.ne.s32.totalorder %s312, %s313
      %p322 = scmp.eq.s32.totalorder %s45, 0
      %p323 = por %p321, %p322
      %p324 = scmp.ne.s32.totalorder %s312, %s313
      %p325 = scmp.eq.s32.totalorder %s46, 1
      %p326 = por %p324, %p325
      %p328 = scmp.ne.s32.totalorder %s313, %s327
      %p329 = scmp.eq.s32.totalorder %s46, 0
      %p330 = por %p328, %p329
      %s332 = sadd.s32 %s331, 1
      %p335 = scmp.eq.s32.totalorder %s40, 1
      %p336 = scmp.ne.s32.totalorder %s331, %s333
      %p337 = scmp.eq.s32.totalorder %s40, 0
      %p338 = por %p336, %p337
      %p339 = scmp.ne.s32.totalorder %s331, %s333
      %p340 = scmp.eq.s32.totalorder %s45, 1
      %p341 = por %p339, %p340
      %p342 = scmp.ne.s32.totalorder %s333, %s334
      %p343 = scmp.eq.s32.totalorder %s45, 0
      %p344 = por %p342, %p343
      %p345 = scmp.ne.s32.totalorder %s333, %s334
      %p346 = scmp.eq.s32.totalorder %s46, 1
      %p347 = por %p345, %p346
      %p349 = scmp.ne.s32.totalorder %s334, %s348
      %p350 = scmp.eq.s32.totalorder %s46, 0
      %p351 = por %p349, %p350
      %s353 = sadd.s32 %s352, 1
      %p356 = scmp.eq.s32.totalorder %s40, 1
      %p357 = scmp.ne.s32.totalorder %s352, %s354
      %p358 = scmp.eq.s32.totalorder %s40, 0
      %p359 = por %p357, %p358
      %p360 = scmp.ne.s32.totalorder %s352, %s354
      %p361 = scmp.eq.s32.totalorder %s45, 1
      %p362 = por %p360, %p361
      %p363 = scmp.ne.s32.totalorder %s354, %s355
      %p364 = scmp.eq.s32.totalorder %s45, 0
      %p365 = por %p363, %p364
      %p366 = scmp.ne.s32.totalorder %s354, %s355
      %p367 = scmp.eq.s32.totalorder %s46, 1
      %p368 = por %p366, %p367
      %p370 = scmp.ne.s32.totalorder %s355, %s369
      %p371 = scmp.eq.s32.totalorder %s46, 0
      %p372 = por %p370, %p371
      %s374 = sadd.s32 %s373, 1
      %p377 = scmp.eq.s32.totalorder %s40, 1
      %p378 = scmp.ne.s32.totalorder %s373, %s375
      %p379 = scmp.eq.s32.totalorder %s40, 0
      %p380 = por %p378, %p379
      %p381 = scmp.ne.s32.totalorder %s373, %s375
      %p382 = scmp.eq.s32.totalorder %s45, 1
      %p383 = por %p381, %p382
      %p384 = scmp.ne.s32.totalorder %s375, %s376
      %p385 = scmp.eq.s32.totalorder %s45, 0
      %p386 = por %p384, %p385
      %p387 = scmp.ne.s32.totalorder %s375, %s376
      %p388 = scmp.eq.s32.totalorder %s46, 1
      %p389 = por %p387, %p388
      %p391 = scmp.ne.s32.totalorder %s376, %s390
      %p392 = scmp.eq.s32.totalorder %s46, 0
      %p393 = por %p391, %p392
      %s395 = sadd.s32 %s394, 1
      %p398 = scmp.eq.s32.totalorder %s40, 1
      %p399 = scmp.ne.s32.totalorder %s394, %s396
      %p400 = scmp.eq.s32.totalorder %s40, 0
      %p401 = por %p399, %p400
      %p402 = scmp.ne.s32.totalorder %s394, %s396
      %p403 = scmp.eq.s32.totalorder %s45, 1
      %p404 = por %p402, %p403
      %p405 = scmp.ne.s32.totalorder %s396, %s397
      %p406 = scmp.eq.s32.totalorder %s45, 0
      %p407 = por %p405, %p406
      %p408 = scmp.ne.s32.totalorder %s396, %s397
      %p409 = scmp.eq.s32.totalorder %s46, 1
      %p410 = por %p408, %p409
      %p412 = scmp.ne.s32.totalorder %s397, %s411
      %p413 = scmp.eq.s32.totalorder %s46, 0
      %p414 = por %p412, %p413
      %s416 = sadd.s32 %s415, 1
      %p419 = scmp.eq.s32.totalorder %s40, 1
      %p420 = scmp.ne.s32.totalorder %s415, %s417
      %p421 = scmp.eq.s32.totalorder %s40, 0
      %p422 = por %p420, %p421
      %p423 = scmp.ne.s32.totalorder %s415, %s417
      %p424 = scmp.eq.s32.totalorder %s45, 1
      %p425 = por %p423, %p424
      %p426 = scmp.ne.s32.totalorder %s417, %s418
      %p427 = scmp.eq.s32.totalorder %s45, 0
      %p428 = por %p426, %p427
      %p429 = scmp.ne.s32.totalorder %s417, %s418
      %p430 = scmp.eq.s32.totalorder %s46, 1
      %p431 = por %p429, %p430
      %p433 = scmp.ne.s32.totalorder %s418, %s432
      %p434 = scmp.eq.s32.totalorder %s46, 0
      %p435 = por %p433, %p434
      %s437 = sadd.s32 %s436, 1
      %p440 = scmp.eq.s32.totalorder %s40, 1
      %p441 = scmp.ne.s32.totalorder %s436, %s438
      %p442 = scmp.eq.s32.totalorder %s40, 0
      %p443 = por %p441, %p442
      %p444 = scmp.ne.s32.totalorder %s436, %s438
      %p445 = scmp.eq.s32.totalorder %s45, 1
      %p446 = por %p444, %p445
      %p447 = scmp.ne.s32.totalorder %s438, %s439
      %p448 = scmp.eq.s32.totalorder %s45, 0
      %p449 = por %p447, %p448
      %p450 = scmp.ne.s32.totalorder %s438, %s439
      %p451 = scmp.eq.s32.totalorder %s46, 1
      %p452 = por %p450, %p451
      %p454 = scmp.ne.s32.totalorder %s439, %s453
      %p455 = scmp.eq.s32.totalorder %s46, 0
      %p456 = por %p454, %p455
      %s458 = sadd.s32 %s457, 1
      %p461 = scmp.eq.s32.totalorder %s40, 1
      %p462 = scmp.ne.s32.totalorder %s457, %s459
      %p463 = scmp.eq.s32.totalorder %s40, 0
      %p464 = por %p462, %p463
      %p465 = scmp.ne.s32.totalorder %s457, %s459
      %p466 = scmp.eq.s32.totalorder %s45, 1
      %p467 = por %p465, %p466
      %p468 = scmp.ne.s32.totalorder %s459, %s460
      %p469 = scmp.eq.s32.totalorder %s45, 0
      %p470 = por %p468, %p469
      %p471 = scmp.ne.s32.totalorder %s459, %s460
      %p472 = scmp.eq.s32.totalorder %s46, 1
      %p473 = por %p471, %p472
      %p475 = scmp.ne.s32.totalorder %s460, %s474
      %p476 = scmp.eq.s32.totalorder %s46, 0
      %p477 = por %p475, %p476
      %s478 = ssub.s32 %s40, %s47
      %p479 = scmp.eq.s32.totalorder %s478, 0
      %s481 = sadd.s32 %s480, 1
      %s482 = scalar_select %p479, %s480, %s481
      %p485 = pneg %p479
      %p486 = scmp.eq.s32.totalorder %s40, 1
      %p487 = por %p485, %p486
      %p488 = scmp.ne.s32.totalorder %s480, %s483
      %p489 = scmp.eq.s32.totalorder %s40, 0
      %p490 = por %p488, %p489
      %p491 = scmp.ne.s32.totalorder %s480, %s483
      %p492 = scmp.eq.s32.totalorder %s45, 1
      %p493 = por %p491, %p492
      %p494 = scmp.ne.s32.totalorder %s483, %s484
      %p495 = scmp.eq.s32.totalorder %s45, 0
      %p496 = por %p494, %p495
      %p497 = scmp.ne.s32.totalorder %s483, %s484
      %p498 = scmp.eq.s32.totalorder %s46, 1
      %p499 = por %p497, %p498
      %p501 = scmp.ne.s32.totalorder %s484, %s500
      %p502 = scmp.eq.s32.totalorder %s46, 0
      %p503 = por %p501, %p502
      %p504 = scmp.le.s32.totalorder 1, %s40
      %p505 = scmp.lt.s32.totalorder %s40, 3
      %p506 = pnand %p504, %p505
      %p507 = pneg %p506
      // Predicated region
      $region9: #{tpu_custom_call.1} parent=5 // pred_check
        _
      $region10: #{tpu_custom_call.1} parent=5 // pred_check_branch
        %509 = sbr.rel (%p506) target = $region12
      $region11: #{tpu_custom_call.1} parent=5 // pred_region
        %s510 = ssub.s32 %s40, 1
        // Predicated region
        $region13: #{tpu_custom_call.1} parent=11 // pred_check
          %p511 = pneg %p113
        $region14: #{tpu_custom_call.1} parent=11 // pred_check_branch
          %513 = sbr.rel (%p511) target = $region16
        $region15: #{tpu_custom_call.1} parent=11 // pred_region
          _
        $region16: #{tpu_custom_call.1} parent=11 // pred_fallthru
          _
        // Predicated region
        $region17: #{tpu_custom_call.1} parent=11 // pred_check
          %p514 = pneg %p134
        $region18: #{tpu_custom_call.1} parent=11 // pred_check_branch
          %516 = sbr.rel (%p514) target = $region20
        $region19: #{tpu_custom_call.1} parent=11 // pred_region
          %s518 = ssub.s32 32, 32
          %519 = vsyncadd [#allocation6], %s518
          %s520 = sshll.u32 [#allocation7], 4
          %s521 = int_to_ptr.vmem [resolvable:$true] %s520
          %526 = dma.hbm_to_vmem [thread:$0]  %s3, 32, %s521, [#allocation6], 16, 16, 1
        $region20: #{tpu_custom_call.1} parent=11 // pred_fallthru
          _
        // Predicated region
        $region21: #{tpu_custom_call.1} parent=11 // pred_check
          %p527 = pneg %p155
        $region22: #{tpu_custom_call.1} parent=11 // pred_check_branch
          %529 = sbr.rel (%p527) target = $region24
        $region23: #{tpu_custom_call.1} parent=11 // pred_region
          _
        $region24: #{tpu_custom_call.1} parent=11 // pred_fallthru
          _
        // Predicated region
        $region25: #{tpu_custom_call.1} parent=11 // pred_check
          %p530 = pneg %p176
        $region26: #{tpu_custom_call.1} parent=11 // pred_check_branch
          %532 = sbr.rel (%p530) target = $region28
        $region27: #{tpu_custom_call.1} parent=11 // pred_region
          %s534 = ssub.s32 32, 32
          %535 = vsyncadd [#allocation9], %s534
          %s536 = sshll.u32 [#allocation8], 4
          %s537 = int_to_ptr.vmem [resolvable:$true] %s536
          %542 = dma.hbm_to_vmem [thread:$0]  %s5, 32, %s537, [#allocation9], 16, 16, 1
        $region28: #{tpu_custom_call.1} parent=11 // pred_fallthru
          _
        // Predicated region
        $region29: #{tpu_custom_call.1} parent=11 // pred_check
          %p543 = pneg %p197
        $region30: #{tpu_custom_call.1} parent=11 // pred_check_branch
          %545 = sbr.rel (%p543) target = $region32
        $region31: #{tpu_custom_call.1} parent=11 // pred_region
          %s547 = ssub.s32 32, 32
          %548 = vsyncadd [#allocation9], %s547
          %s549 = sshll.u32 [#allocation10], 4
          %s550 = int_to_ptr.vmem [resolvable:$true] %s549
          %555 = dma.hbm_to_vmem [thread:$0]  %s6, 32, %s550, [#allocation9], 16, 16, 1
        $region32: #{tpu_custom_call.1} parent=11 // pred_fallthru
          _
        // Predicated region
        $region33: #{tpu_custom_call.1} parent=11 // pred_check
          %p556 = pneg %p218
        $region34: #{tpu_custom_call.1} parent=11 // pred_check_branch
          %558 = sbr.rel (%p556) target = $region36
        $region35: #{tpu_custom_call.1} parent=11 // pred_region
          %s560 = ssub.s32 32, 32
          %561 = vsyncadd [#allocation12], %s560
          %s562 = sshll.u32 [#allocation11], 4
          %s563 = int_to_ptr.vmem [resolvable:$true] %s562
          %568 = dma.hbm_to_vmem [thread:$0]  %s7, 32, %s563, [#allocation12], 16, 16, 1
        $region36: #{tpu_custom_call.1} parent=11 // pred_fallthru
          _
        // Predicated region
        $region37: #{tpu_custom_call.1} parent=11 // pred_check
          %p569 = pneg %p239
        $region38: #{tpu_custom_call.1} parent=11 // pred_check_branch
          %571 = sbr.rel (%p569) target = $region40
        $region39: #{tpu_custom_call.1} parent=11 // pred_region
          _
        $region40: #{tpu_custom_call.1} parent=11 // pred_fallthru
          _
        // Predicated region
        $region41: #{tpu_custom_call.1} parent=11 // pred_check
          %p572 = pneg %p260
        $region42: #{tpu_custom_call.1} parent=11 // pred_check_branch
          %574 = sbr.rel (%p572) target = $region44
        $region43: #{tpu_custom_call.1} parent=11 // pred_region
          %s576 = ssub.s32 32, 32
          %577 = vsyncadd [#allocation12], %s576
          %s578 = sshll.u32 [#allocation13], 4
          %s579 = int_to_ptr.vmem [resolvable:$true] %s578
          %584 = dma.hbm_to_vmem [thread:$0]  %s9, 32, %s579, [#allocation12], 16, 16, 1
        $region44: #{tpu_custom_call.1} parent=11 // pred_fallthru
          _
        // Predicated region
        $region45: #{tpu_custom_call.1} parent=11 // pred_check
          %p585 = pneg %p281
        $region46: #{tpu_custom_call.1} parent=11 // pred_check_branch
          %587 = sbr.rel (%p585) target = $region48
        $region47: #{tpu_custom_call.1} parent=11 // pred_region
          _
        $region48: #{tpu_custom_call.1} parent=11 // pred_fallthru
          _
        // Predicated region
        $region49: #{tpu_custom_call.1} parent=11 // pred_check
          %p588 = pneg %p302
        $region50: #{tpu_custom_call.1} parent=11 // pred_check_branch
          %590 = sbr.rel (%p588) target = $region52
        $region51: #{tpu_custom_call.1} parent=11 // pred_region
          %s592 = ssub.s32 32, 32
          %593 = vsyncadd [#allocation15], %s592
          %s594 = sshll.u32 [#allocation14], 4
          %s595 = int_to_ptr.vmem [resolvable:$true] %s594
          %600 = dma.hbm_to_vmem [thread:$0]  %s11, 32, %s595, [#allocation15], 16, 16, 1
        $region52: #{tpu_custom_call.1} parent=11 // pred_fallthru
          _
        // Predicated region
        $region53: #{tpu_custom_call.1} parent=11 // pred_check
          %p601 = pneg %p323
        $region54: #{tpu_custom_call.1} parent=11 // pred_check_branch
          %603 = sbr.rel (%p601) target = $region56
        $region55: #{tpu_custom_call.1} parent=11 // pred_region
          %s605 = ssub.s32 32, 32
          %606 = vsyncadd [#allocation15], %s605
          %s607 = sshll.u32 [#allocation16], 4
          %s608 = int_to_ptr.vmem [resolvable:$true] %s607
          %613 = dma.hbm_to_vmem [thread:$0]  %s12, 32, %s608, [#allocation15], 16, 16, 1
        $region56: #{tpu_custom_call.1} parent=11 // pred_fallthru
          _
        // Predicated region
        $region57: #{tpu_custom_call.1} parent=11 // pred_check
          %p614 = pneg %p344
        $region58: #{tpu_custom_call.1} parent=11 // pred_check_branch
          %616 = sbr.rel (%p614) target = $region60
        $region59: #{tpu_custom_call.1} parent=11 // pred_region
          %s618 = ssub.s32 32, 32
          %619 = vsyncadd [#allocation18], %s618
          %s620 = sshll.u32 [#allocation17], 4
          %s621 = int_to_ptr.vmem [resolvable:$true] %s620
          %626 = dma.hbm_to_vmem [thread:$0]  %s13, 32, %s621, [#allocation18], 16, 16, 1
        $region60: #{tpu_custom_call.1} parent=11 // pred_fallthru
          _
        // Predicated region
        $region61: #{tpu_custom_call.1} parent=11 // pred_check
          %p627 = pneg %p365
        $region62: #{tpu_custom_call.1} parent=11 // pred_check_branch
          %629 = sbr.rel (%p627) target = $region64
        $region63: #{tpu_custom_call.1} parent=11 // pred_region
          %s631 = ssub.s32 16, 16
          %632 = vsyncadd [#allocation18], %s631
          %s634 = sshll.u32 [#allocation19], 4
          %s635 = int_to_ptr.vmem [resolvable:$true] %s634
          %637 = dma.hbm_to_vmem [thread:$0]  %s14, 16, %s635, [#allocation18]
        $region64: #{tpu_custom_call.1} parent=11 // pred_fallthru
          _
        // Predicated region
        $region65: #{tpu_custom_call.1} parent=11 // pred_check
          %p638 = pneg %p386
        $region66: #{tpu_custom_call.1} parent=11 // pred_check_branch
          %640 = sbr.rel (%p638) target = $region68
        $region67: #{tpu_custom_call.1} parent=11 // pred_region
          %s642 = ssub.s32 16, 16
          %643 = vsyncadd [#allocation21], %s642
          %s645 = sshll.u32 [#allocation20], 4
          %s646 = int_to_ptr.vmem [resolvable:$true] %s645
          %648 = dma.hbm_to_vmem [thread:$0]  %s15, 16, %s646, [#allocation21]
        $region68: #{tpu_custom_call.1} parent=11 // pred_fallthru
          _
        // Predicated region
        $region69: #{tpu_custom_call.1} parent=11 // pred_check
          %p649 = pneg %p407
        $region70: #{tpu_custom_call.1} parent=11 // pred_check_branch
          %651 = sbr.rel (%p649) target = $region72
        $region71: #{tpu_custom_call.1} parent=11 // pred_region
          _
        $region72: #{tpu_custom_call.1} parent=11 // pred_fallthru
          _
        // Predicated region
        $region73: #{tpu_custom_call.1} parent=11 // pred_check
          %p652 = pneg %p428
        $region74: #{tpu_custom_call.1} parent=11 // pred_check_branch
          %654 = sbr.rel (%p652) target = $region76
        $region75: #{tpu_custom_call.1} parent=11 // pred_region
          %s656 = ssub.s32 16, 16
          %657 = vsyncadd [#allocation21], %s656
          %s659 = sshll.u32 [#allocation22], 4
          %s660 = int_to_ptr.vmem [resolvable:$true] %s659
          %662 = dma.hbm_to_vmem [thread:$0]  %s17, 16, %s660, [#allocation21]
        $region76: #{tpu_custom_call.1} parent=11 // pred_fallthru
          _
        // Predicated region
        $region77: #{tpu_custom_call.1} parent=11 // pred_check
          %p663 = pneg %p449
        $region78: #{tpu_custom_call.1} parent=11 // pred_check_branch
          %665 = sbr.rel (%p663) target = $region80
        $region79: #{tpu_custom_call.1} parent=11 // pred_region
          _
        $region80: #{tpu_custom_call.1} parent=11 // pred_fallthru
          _
        // Predicated region
        $region81: #{tpu_custom_call.1} parent=11 // pred_check
          %p666 = pneg %p470
        $region82: #{tpu_custom_call.1} parent=11 // pred_check_branch
          %668 = sbr.rel (%p666) target = $region84
        $region83: #{tpu_custom_call.1} parent=11 // pred_region
          _
        $region84: #{tpu_custom_call.1} parent=11 // pred_fallthru
          _
      $region12: #{tpu_custom_call.1} parent=5 // pred_fallthru
        _
      %p669 = scmp.lt.s32.totalorder %s40, 2
      // Predicated region
      $region85: #{tpu_custom_call.1} parent=5 // pred_check
        %p670 = pneg %p669
      $region86: #{tpu_custom_call.1} parent=5 // pred_check_branch
        %672 = sbr.rel (%p670) target = $region88
      $region87: #{tpu_custom_call.1} parent=5 // pred_region
        // Predicated region
        $region89: #{tpu_custom_call.1} parent=87 // pred_check
          %p673 = pneg %p60
        $region90: #{tpu_custom_call.1} parent=87 // pred_check_branch
          %675 = sbr.rel (%p673) target = $region92
        $region91: #{tpu_custom_call.1} parent=87 // pred_region
          %s676 = sand.u32 %s50, 1
          %s677 = scalar_lea.sflag [#allocation3], %s676
          %s678 = sand.u32 %s50, 1
          %s679 = smul.addr %s678, 8
          %s680 = scalar_lea.vmem [#allocation2], %s679
          %s682 = ssub.s32 128, 128
          %683 = vsyncadd %s677, %s682
          %s684 = smul.addr %s40, 128
          %s685 = scalar_lea.hbm %s0, %s684
          %s687 = sshll.u32 %s680, 4
          %s688 = int_to_ptr.vmem [resolvable:$true] %s687
          %690 = dma.hbm_to_vmem [thread:$0]  %s685, 128, %s688, %s677
        $region92: #{tpu_custom_call.1} parent=87 // pred_fallthru
          _
        // Predicated region
        $region93: #{tpu_custom_call.1} parent=87 // pred_check
          %p691 = pneg %p86
        $region94: #{tpu_custom_call.1} parent=87 // pred_check_branch
          %693 = sbr.rel (%p691) target = $region96
        $region95: #{tpu_custom_call.1} parent=87 // pred_region
          %s694 = sand.u32 %s40, 1
          %s695 = scalar_lea.sflag [#allocation6], %s694
          %s696 = sand.u32 %s76, 1
          %s697 = scalar_lea.vmem [#allocation5], %s696
          %s699 = ssub.s32 16, 16
          %700 = vsyncadd %s695, %s699
          %s701 = smul.addr %s40, 16
          %s702 = scalar_lea.hbm %s1, %s701
          %s704 = sshll.u32 %s697, 4
          %s705 = int_to_ptr.vmem [resolvable:$true] %s704
          %707 = dma.hbm_to_vmem [thread:$0]  %s702, 16, %s705, %s695
        $region96: #{tpu_custom_call.1} parent=87 // pred_fallthru
          _
      $region88: #{tpu_custom_call.1} parent=5 // pred_fallthru
        _
      %p708 = scmp.le.s32.totalorder 1, %s40
      %p709 = scmp.lt.s32.totalorder %s40, 3
      %p710 = pnand %p708, %p709
      %p711 = pneg %p710
      // Predicated region
      $region97: #{tpu_custom_call.1} parent=5 // pred_check
        _
      $region98: #{tpu_custom_call.1} parent=5 // pred_check_branch
        %713 = sbr.rel (%p710) target = $region100
      $region99: #{tpu_custom_call.1} parent=5 // pred_region
        %s714 = ssub.s32 %s40, 1
        %s715 = sand.u32 %s53, 1
        %s716 = scalar_lea.sflag [#allocation3], %s715
        %s717 = sand.u32 %s53, 1
        %s718 = smul.addr %s717, 8
        %s719 = scalar_lea.vmem [#allocation2], %s718
        // Predicated region
        $region101: #{tpu_custom_call.1} parent=99 // pred_check
          %p720 = pneg %p66
        $region102: #{tpu_custom_call.1} parent=99 // pred_check_branch
          %722 = sbr.rel (%p720) target = $region104
        $region103: #{tpu_custom_call.1} parent=99 // pred_region
          %723 = dma.done %s716, 128
        $region104: #{tpu_custom_call.1} parent=99 // pred_fallthru
          _
        %s724 = sand.u32 %s45, 1
        %s725 = scalar_lea.sflag [#allocation6], %s724
        %s726 = sand.u32 %s79, 1
        %s727 = scalar_lea.vmem [#allocation5], %s726
        // Predicated region
        $region105: #{tpu_custom_call.1} parent=99 // pred_check
          %p728 = pneg %p92
        $region106: #{tpu_custom_call.1} parent=99 // pred_check_branch
          %730 = sbr.rel (%p728) target = $region108
        $region107: #{tpu_custom_call.1} parent=99 // pred_region
          %731 = dma.done %s725, 16
        $region108: #{tpu_custom_call.1} parent=99 // pred_fallthru
          _
        // Predicated region
        $region109: #{tpu_custom_call.1} parent=99 // pred_check
          %p732 = pneg %p134
        $region110: #{tpu_custom_call.1} parent=99 // pred_check_branch
          %734 = sbr.rel (%p732) target = $region112
        $region111: #{tpu_custom_call.1} parent=99 // pred_region
          %735 = dma.done [#allocation6], 32
        $region112: #{tpu_custom_call.1} parent=99 // pred_fallthru
          _
        // Predicated region
        $region113: #{tpu_custom_call.1} parent=99 // pred_check
          %p736 = pneg %p176
        $region114: #{tpu_custom_call.1} parent=99 // pred_check_branch
          %738 = sbr.rel (%p736) target = $region116
        $region115: #{tpu_custom_call.1} parent=99 // pred_region
          %739 = dma.done [#allocation9], 32
        $region116: #{tpu_custom_call.1} parent=99 // pred_fallthru
          _
        // Predicated region
        $region117: #{tpu_custom_call.1} parent=99 // pred_check
          %p740 = pneg %p197
        $region118: #{tpu_custom_call.1} parent=99 // pred_check_branch
          %742 = sbr.rel (%p740) target = $region120
        $region119: #{tpu_custom_call.1} parent=99 // pred_region
          %743 = dma.done [#allocation9], 32
        $region120: #{tpu_custom_call.1} parent=99 // pred_fallthru
          _
        // Predicated region
        $region121: #{tpu_custom_call.1} parent=99 // pred_check
          %p744 = pneg %p218
        $region122: #{tpu_custom_call.1} parent=99 // pred_check_branch
          %746 = sbr.rel (%p744) target = $region124
        $region123: #{tpu_custom_call.1} parent=99 // pred_region
          %747 = dma.done [#allocation12], 32
        $region124: #{tpu_custom_call.1} parent=99 // pred_fallthru
          _
        // Predicated region
        $region125: #{tpu_custom_call.1} parent=99 // pred_check
          %p748 = pneg %p260
        $region126: #{tpu_custom_call.1} parent=99 // pred_check_branch
          %750 = sbr.rel (%p748) target = $region128
        $region127: #{tpu_custom_call.1} parent=99 // pred_region
          %751 = dma.done [#allocation12], 32
        $region128: #{tpu_custom_call.1} parent=99 // pred_fallthru
          _
        // Predicated region
        $region129: #{tpu_custom_call.1} parent=99 // pred_check
          %p752 = pneg %p302
        $region130: #{tpu_custom_call.1} parent=99 // pred_check_branch
          %754 = sbr.rel (%p752) target = $region132
        $region131: #{tpu_custom_call.1} parent=99 // pred_region
          %755 = dma.done [#allocation15], 32
        $region132: #{tpu_custom_call.1} parent=99 // pred_fallthru
          _
        // Predicated region
        $region133: #{tpu_custom_call.1} parent=99 // pred_check
          %p756 = pneg %p323
        $region134: #{tpu_custom_call.1} parent=99 // pred_check_branch
          %758 = sbr.rel (%p756) target = $region136
        $region135: #{tpu_custom_call.1} parent=99 // pred_region
          %759 = dma.done [#allocation15], 32
        $region136: #{tpu_custom_call.1} parent=99 // pred_fallthru
          _
        // Predicated region
        $region137: #{tpu_custom_call.1} parent=99 // pred_check
          %p760 = pneg %p344
        $region138: #{tpu_custom_call.1} parent=99 // pred_check_branch
          %762 = sbr.rel (%p760) target = $region140
        $region139: #{tpu_custom_call.1} parent=99 // pred_region
          %763 = dma.done [#allocation18], 32
        $region140: #{tpu_custom_call.1} parent=99 // pred_fallthru
          _
        // Predicated region
        $region141: #{tpu_custom_call.1} parent=99 // pred_check
          %p764 = pneg %p365
        $region142: #{tpu_custom_call.1} parent=99 // pred_check_branch
          %766 = sbr.rel (%p764) target = $region144
        $region143: #{tpu_custom_call.1} parent=99 // pred_region
          %767 = dma.done [#allocation18], 16
        $region144: #{tpu_custom_call.1} parent=99 // pred_fallthru
          _
        // Predicated region
        $region145: #{tpu_custom_call.1} parent=99 // pred_check
          %p768 = pneg %p386
        $region146: #{tpu_custom_call.1} parent=99 // pred_check_branch
          %770 = sbr.rel (%p768) target = $region148
        $region147: #{tpu_custom_call.1} parent=99 // pred_region
          %771 = dma.done [#allocation21], 16
        $region148: #{tpu_custom_call.1} parent=99 // pred_fallthru
          _
        // Predicated region
        $region149: #{tpu_custom_call.1} parent=99 // pred_check
          %p772 = pneg %p428
        $region150: #{tpu_custom_call.1} parent=99 // pred_check_branch
          %774 = sbr.rel (%p772) target = $region152
        $region151: #{tpu_custom_call.1} parent=99 // pred_region
          %775 = dma.done [#allocation21], 16
        $region152: #{tpu_custom_call.1} parent=99 // pred_fallthru
          _
        %s776 = sand.u32 %s53, 1
        %s777 = scalar_lea.sflag [#allocation3], %s776
        %s778 = sand.u32 %s53, 1
        %s779 = smul.addr %s778, 8
        %s780 = scalar_lea.vmem [#allocation2], %s779
        %p781 = pneg %p66
        %p782 = pneg %p63
        %s783 = sand.u32 %s45, 1
        %s784 = scalar_lea.sflag [#allocation6], %s783
        %s785 = sand.u32 %s79, 1
        %s786 = scalar_lea.vmem [#allocation5], %s785
        %p787 = pneg %p92
        %p788 = pneg %p89
        %p789 = pneg %p113
        %p790 = pneg %p110
        %p791 = pneg %p134
        %p792 = pneg %p131
        %p793 = pneg %p155
        %p794 = pneg %p152
        %p795 = pneg %p176
        %p796 = pneg %p173
        %p797 = pneg %p197
        %p798 = pneg %p194
        %p799 = pneg %p218
        %p800 = pneg %p215
        %p801 = pneg %p239
        %p802 = pneg %p236
        %p803 = pneg %p260
        %p804 = pneg %p257
        %p805 = pneg %p281
        %p806 = pneg %p278
        %p807 = pneg %p302
        %p808 = pneg %p299
        %p809 = pneg %p323
        %p810 = pneg %p320
        %p811 = pneg %p344
        %p812 = pneg %p341
        %p813 = pneg %p365
        %p814 = pneg %p362
        %p815 = pneg %p386
        %p816 = pneg %p383
        %p817 = pneg %p407
        %p818 = pneg %p404
        %p819 = pneg %p428
        %p820 = pneg %p425
        %p821 = pneg %p449
        %p822 = pneg %p446
        %p823 = pneg %p470
        %p824 = pneg %p467
        %p825 = pneg %p496
        %p826 = pneg %p493
        %s827 = sand.u32 %s483, 1
        %s828 = scalar_lea.sflag [#allocation4], %s827
        %s829 = sand.u32 %s483, 1
        %s830 = scalar_lea.vmem [#allocation23], %s829
        %v831 = vld [vmem:[%s719] sm:$0xff]
        %v832 = vld [vmem:[%s727] sm:$0x1]
        %v833 = vld [vmem:[#allocation19] sm:$0x1]
        %v834 = vld [vmem:[#allocation20] sm:$0x1]
        %vm835 = vcmask 261120
        %v836 = vsel %vm835, %v831, 0.0
        %837 = vadd.xlane.f32.xlu0 %v836
        %v838 = vpop.xlane.xlu0 %837
        %v839 = vrcp.pop 32.0
        %v840 = vmul.f32 %v838, %v839
        %v841 = vsub.f32 %v831, %v840
        %v842 = vmul.f32 %v841, %v841
        %v843 = vsel %vm835, %v842, 0.0
        %844 = vadd.xlane.f32.xlu0 %v843
        %v845 = vpop.xlane.xlu0 %844
        %v846 = vmul.f32 %v845, %v839
        %v847 = vadd.f32 %v846, 1e-12
        %v848 = vrsqrt.pop %v847
        %v849 = vmul.f32 %v841, %v848
        %v851 = vlaneseq
        %v852 = vshrl.u32 %v851, 7
        %v853 = vsub.s32 0, %v852
        %v854 = vrot.slane %v833, %v853
        %v856 = vmul.f32 %v849, %v854
        %v858 = vlaneseq
        %v859 = vshrl.u32 %v858, 7
        %v860 = vsub.s32 0, %v859
        %v861 = vrot.slane %v834, %v860
        %v863 = vadd.f32 %v856, %v861
        %v864 = vld [vmem:[%s2] sm:$0xff]
        %v865 = vld [vmem:[%s2 + $0x8] sm:$0xff]
        %v866 = vld [vmem:[%s2 + $0x10] sm:$0xff]
        %v867 = vld [vmem:[%s2 + $0x18] sm:$0xff]
        %v868 = vld [vmem:[#allocation7] sm:$0x1]
        %v870 = vlaneseq
        %v871 = vshrl.u32 %v870, 7
        %v872 = vsub.s32 0, %v871
        %v873 = vrot.slane %v868, %v872
        %v876 = vsel %vm835, %v863, 0
        %878 = vmatprep.subr.mxu0 0.0
        %879 = vmatpush1.msra.mxu0 %v864
        %880 = vmatprep.subr.mxu0 0.0
        %881 = vmatpush1.msra.mxu0 %v865
        %882 = vmatprep.subr.mxu0 0.0
        %883 = vmatpush1.msra.mxu0 %v866
        %884 = vmatprep.subr.mxu0 0.0
        %885 = vmatpush1.msra.mxu0 %v867
        %886 = vmatprep.subr.mxu0 0.0
        %887 = vmatpush1.msra.mxu0 0.0
        %888 = vmatprep.subr.mxu0 0.0
        %889 = vmatpush1.msra.mxu0 0.0
        %890 = vmatprep.subr.mxu0 0.0
        %891 = vmatpush1.msra.mxu0 0.0
        %892 = vmatprep.subr.mxu0 0.0
        %893 = vmatpush1.msra.mxu0 0.0
        %894 = vmatprep.subr.mxu0 0.0
        %895 = vmatpush1.msra.mxu0 0.0
        %896 = vmatprep.subr.mxu0 0.0
        %897 = vmatpush1.msra.mxu0 0.0
        %898 = vmatprep.subr.mxu0 0.0
        %899 = vmatpush1.msra.mxu0 0.0
        %900 = vmatprep.subr.mxu0 0.0
        %901 = vmatpush1.msra.mxu0 0.0
        %902 = vmatprep.subr.mxu0 0.0
        %903 = vmatpush1.msra.mxu0 0.0
        %904 = vmatprep.subr.mxu0 0.0
        %905 = vmatpush1.msra.mxu0 0.0
        %906 = vmatprep.subr.mxu0 0.0
        %907 = vmatpush1.msra.mxu0 0.0
        %908 = vmatprep.subr.mxu0 0.0
        %909 = vmatpush1.msra.mxu0 0.0
        %910 = vmatprep.subr.mxu0 0.0
        %911 = vmatpush1.msra.mxu0 0.0
        %912 = vmatprep.subr.mxu0 0.0
        %913 = vmatpush1.msra.mxu0 0.0
        %914 = vmatprep.subr.mxu0 0.0
        %915 = vmatpush1.msra.mxu0 0.0
        %916 = vmatprep.subr.mxu0 0.0
        %917 = vmatpush1.msra.mxu0 0.0
        %918 = vmatprep.subr.mxu0 0.0
        %919 = vmatpush1.msra.mxu0 0.0
        %920 = vmatprep.subr.mxu0 0.0
        %921 = vmatpush1.msra.mxu0 0.0
        %922 = vmatprep.subr.mxu0 0.0
        %923 = vmatpush1.msra.mxu0 0.0
        %924 = vmatprep.subr.mxu0 0.0
        %925 = vmatpush1.msra.mxu0 0.0
        %926 = vmatprep.subr.mxu0 0.0
        %927 = vmatpush1.msra.mxu0 0.0
        %928 = vmatprep.subr.mxu0 0.0
        %929 = vmatpush1.msra.mxu0 0.0
        %930 = vmatprep.subr.mxu0 0.0
        %931 = vmatpush1.msra.mxu0 0.0
        %932 = vmatprep.subr.mxu0 0.0
        %933 = vmatpush1.msra.mxu0 0.0
        %934 = vmatprep.subr.mxu0 0.0
        %935 = vmatpush1.msra.mxu0 0.0
        %936 = vmatprep.subr.mxu0 0.0
        %937 = vmatpush1.msra.mxu0 0.0
        %938 = vmatprep.subr.mxu0 0.0
        %939 = vmatpush1.msra.mxu0 0.0
        %940 = vmatprep.subr.mxu0 0.0
        %941 = vmatpush1.msra.mxu0 0.0
        %942 = vmatprep.mubr.f32.mxu0 0.0
        %943 = vmatmul.mubr.f32.gmra.mrb[0].mxu0 %v876
        %v944 = vpop.f32.mrb[0].mxu0
        %v945 = vadd.f32 %v873, %v944
        %v946 = vpop.f32.mrb[0].mxu0
        %947 = vdwg.mxu0
        %949 = vrot.lane.b32.xlu0 %v945, 96
        %v950 = vpop.permute.xlu0 %949
        %vm951 = vcmask 64512
        %v952 = vsel %vm951, %v945, 0
        %v954 = vsel %vm951, %v950, 0
        %956 = vmatprep.subr.mxu0 0.0
        %957 = vmatpush1.xpose.msra.mxu0 %v954
        %958 = vmatprep.subr.mxu0 0.0
        %959 = vmatpush1.xpose.msra.mxu0 0.0
        %960 = vmatprep.subr.mxu0 0.0
        %961 = vmatpush1.xpose.msra.mxu0 0.0
        %962 = vmatprep.subr.mxu0 0.0
        %963 = vmatpush1.xpose.msra.mxu0 0.0
        %964 = vmatprep.subr.mxu0 0.0
        %965 = vmatpush1.xpose.msra.mxu0 0.0
        %966 = vmatprep.subr.mxu0 0.0
        %967 = vmatpush1.xpose.msra.mxu0 0.0
        %968 = vmatprep.subr.mxu0 0.0
        %969 = vmatpush1.xpose.msra.mxu0 0.0
        %970 = vmatprep.subr.mxu0 0.0
        %971 = vmatpush1.xpose.msra.mxu0 0.0
        %972 = vmatprep.subr.mxu0 0.0
        %973 = vmatpush1.xpose.msra.mxu0 0.0
        %974 = vmatprep.subr.mxu0 0.0
        %975 = vmatpush1.xpose.msra.mxu0 0.0
        %976 = vmatprep.subr.mxu0 0.0
        %977 = vmatpush1.xpose.msra.mxu0 0.0
        %978 = vmatprep.subr.mxu0 0.0
        %979 = vmatpush1.xpose.msra.mxu0 0.0
        %980 = vmatprep.subr.mxu0 0.0
        %981 = vmatpush1.xpose.msra.mxu0 0.0
        %982 = vmatprep.subr.mxu0 0.0
        %983 = vmatpush1.xpose.msra.mxu0 0.0
        %984 = vmatprep.subr.mxu0 0.0
        %985 = vmatpush1.xpose.msra.mxu0 0.0
        %986 = vmatprep.subr.mxu0 0.0
        %987 = vmatpush1.xpose.msra.mxu0 0.0
        %988 = vmatprep.subr.mxu0 0.0
        %989 = vmatpush1.xpose.msra.mxu0 0.0
        %990 = vmatprep.subr.mxu0 0.0
        %991 = vmatpush1.xpose.msra.mxu0 0.0
        %992 = vmatprep.subr.mxu0 0.0
        %993 = vmatpush1.xpose.msra.mxu0 0.0
        %994 = vmatprep.subr.mxu0 0.0
        %995 = vmatpush1.xpose.msra.mxu0 0.0
        %996 = vmatprep.subr.mxu0 0.0
        %997 = vmatpush1.xpose.msra.mxu0 0.0
        %998 = vmatprep.subr.mxu0 0.0
        %999 = vmatpush1.xpose.msra.mxu0 0.0
        %1000 = vmatprep.subr.mxu0 0.0
        %1001 = vmatpush1.xpose.msra.mxu0 0.0
        %1002 = vmatprep.subr.mxu0 0.0
        %1003 = vmatpush1.xpose.msra.mxu0 0.0
        %1004 = vmatprep.subr.mxu0 0.0
        %1005 = vmatpush1.xpose.msra.mxu0 0.0
        %1006 = vmatprep.subr.mxu0 0.0
        %1007 = vmatpush1.xpose.msra.mxu0 0.0
        %1008 = vmatprep.subr.mxu0 0.0
        %1009 = vmatpush1.xpose.msra.mxu0 0.0
        %1010 = vmatprep.subr.mxu0 0.0
        %1011 = vmatpush1.xpose.msra.mxu0 0.0
        %1012 = vmatprep.subr.mxu0 0.0
        %1013 = vmatpush1.xpose.msra.mxu0 0.0
        %1014 = vmatprep.subr.mxu0 0.0
        %1015 = vmatpush1.xpose.msra.mxu0 0.0
        %1016 = vmatprep.subr.mxu0 0.0
        %1017 = vmatpush1.xpose.msra.mxu0 0.0
        %1018 = vmatprep.subr.mxu0 0.0
        %1019 = vmatpush1.xpose.msra.mxu0 0.0
        %1020 = vmatprep.mubr.f32.mxu0 0.0
        %1021 = vmatmul.mubr.f32.gmra.mrb[0].mxu0 %v952
        %v1022 = vpop.f32.mrb[0].mxu0
        %v1023 = vadd.f32 0.0, %v1022
        %v1024 = vpop.f32.mrb[0].mxu0
        %1025 = vdwg.mxu0
        %v1026 = vmul.f32 %v1023, 0.35355338
        %v1028 = vlaneseq
        %v1029 = vshrl.u32 %v1028, 7
        %v1030 = vsub.s32 0, %v1029
        %v1031 = vrot.slane %v832, %v1030
        %v1033 = vadd.f32 %v1026, %v1031
        %v1034 = vsel %vm951, %v1033, -inf
        %1035 = vmax.xlane.f32.xlu0 %v1034
        %v1036 = vpop.xlane.xlu0 %1035
        %v1037 = vsub.f32 %v1033, %v1036
        %v1038 = vmul.f32 %v1037, 1.442695
        %v1039 = vpow.pop %v1038
        %v1040 = vsel %vm951, %v1039, 0.0
        %1041 = vadd.xlane.f32.xlu0 %v1040
        %v1042 = vpop.xlane.xlu0 %1041
        %v1043 = vrcp.pop %v1042
        %v1044 = vmul.f32 %v1039, %v1043
        %1045 = vrot.lane.b32.xlu0 %v945, 64
        %v1046 = vpop.permute.xlu0 %1045
        %v1049 = vsel %vm951, %v1044, 0
        %1051 = vmatprep.subr.mxu0 0.0
        %1052 = vmatpush1.msra.mxu0 %v1046
        %1053 = vmatprep.subr.mxu0 0.0
        %1054 = vmatpush1.msra.mxu0 0.0
        %1055 = vmatprep.subr.mxu0 0.0
        %1056 = vmatpush1.msra.mxu0 0.0
        %1057 = vmatprep.subr.mxu0 0.0
        %1058 = vmatpush1.msra.mxu0 0.0
        %1059 = vmatprep.subr.mxu0 0.0
        %1060 = vmatpush1.msra.mxu0 0.0
        %1061 = vmatprep.subr.mxu0 0.0
        %1062 = vmatpush1.msra.mxu0 0.0
        %1063 = vmatprep.subr.mxu0 0.0
        %1064 = vmatpush1.msra.mxu0 0.0
        %1065 = vmatprep.subr.mxu0 0.0
        %1066 = vmatpush1.msra.mxu0 0.0
        %1067 = vmatprep.subr.mxu0 0.0
        %1068 = vmatpush1.msra.mxu0 0.0
        %1069 = vmatprep.subr.mxu0 0.0
        %1070 = vmatpush1.msra.mxu0 0.0
        %1071 = vmatprep.subr.mxu0 0.0
        %1072 = vmatpush1.msra.mxu0 0.0
        %1073 = vmatprep.subr.mxu0 0.0
        %1074 = vmatpush1.msra.mxu0 0.0
        %1075 = vmatprep.subr.mxu0 0.0
        %1076 = vmatpush1.msra.mxu0 0.0
        %1077 = vmatprep.subr.mxu0 0.0
        %1078 = vmatpush1.msra.mxu0 0.0
        %1079 = vmatprep.subr.mxu0 0.0
        %1080 = vmatpush1.msra.mxu0 0.0
        %1081 = vmatprep.subr.mxu0 0.0
        %1082 = vmatpush1.msra.mxu0 0.0
        %1083 = vmatprep.subr.mxu0 0.0
        %1084 = vmatpush1.msra.mxu0 0.0
        %1085 = vmatprep.subr.mxu0 0.0
        %1086 = vmatpush1.msra.mxu0 0.0
        %1087 = vmatprep.subr.mxu0 0.0
        %1088 = vmatpush1.msra.mxu0 0.0
        %1089 = vmatprep.subr.mxu0 0.0
        %1090 = vmatpush1.msra.mxu0 0.0
        %1091 = vmatprep.subr.mxu0 0.0
        %1092 = vmatpush1.msra.mxu0 0.0
        %1093 = vmatprep.subr.mxu0 0.0
        %1094 = vmatpush1.msra.mxu0 0.0
        %1095 = vmatprep.subr.mxu0 0.0
        %1096 = vmatpush1.msra.mxu0 0.0
        %1097 = vmatprep.subr.mxu0 0.0
        %1098 = vmatpush1.msra.mxu0 0.0
        %1099 = vmatprep.subr.mxu0 0.0
        %1100 = vmatpush1.msra.mxu0 0.0
        %1101 = vmatprep.subr.mxu0 0.0
        %1102 = vmatpush1.msra.mxu0 0.0
        %1103 = vmatprep.subr.mxu0 0.0
        %1104 = vmatpush1.msra.mxu0 0.0
        %1105 = vmatprep.subr.mxu0 0.0
        %1106 = vmatpush1.msra.mxu0 0.0
        %1107 = vmatprep.subr.mxu0 0.0
        %1108 = vmatpush1.msra.mxu0 0.0
        %1109 = vmatprep.subr.mxu0 0.0
        %1110 = vmatpush1.msra.mxu0 0.0
        %1111 = vmatprep.subr.mxu0 0.0
        %1112 = vmatpush1.msra.mxu0 0.0
        %1113 = vmatprep.subr.mxu0 0.0
        %1114 = vmatpush1.msra.mxu0 0.0
        %1115 = vmatprep.mubr.f32.mxu0 0.0
        %1116 = vmatmul.mubr.f32.gmra.mrb[0].mxu0 %v1049
        %v1117 = vpop.f32.mrb[0].mxu0
        %v1118 = vadd.f32 0.0, %v1117
        %v1119 = vpop.f32.mrb[0].mxu0
        %1120 = vdwg.mxu0
        %1121 = vrot.lane.b32.xlu0 %v945, 120
        %v1122 = vpop.permute.xlu0 %1121
        %1123 = vrot.lane.b32.xlu0 %v945, 88
        %v1124 = vpop.permute.xlu0 %1123
        %v1125 = vsel %vm951, %v1122, 0
        %v1127 = vsel %vm951, %v1124, 0
        %1129 = vmatprep.subr.mxu0 0.0
        %1130 = vmatpush1.xpose.msra.mxu0 %v1127
        %1131 = vmatprep.subr.mxu0 0.0
        %1132 = vmatpush1.xpose.msra.mxu0 0.0
        %1133 = vmatprep.subr.mxu0 0.0
        %1134 = vmatpush1.xpose.msra.mxu0 0.0
        %1135 = vmatprep.subr.mxu0 0.0
        %1136 = vmatpush1.xpose.msra.mxu0 0.0
        %1137 = vmatprep.subr.mxu0 0.0
        %1138 = vmatpush1.xpose.msra.mxu0 0.0
        %1139 = vmatprep.subr.mxu0 0.0
        %1140 = vmatpush1.xpose.msra.mxu0 0.0
        %1141 = vmatprep.subr.mxu0 0.0
        %1142 = vmatpush1.xpose.msra.mxu0 0.0
        %1143 = vmatprep.subr.mxu0 0.0
        %1144 = vmatpush1.xpose.msra.mxu0 0.0
        %1145 = vmatprep.subr.mxu0 0.0
        %1146 = vmatpush1.xpose.msra.mxu0 0.0
        %1147 = vmatprep.subr.mxu0 0.0
        %1148 = vmatpush1.xpose.msra.mxu0 0.0
        %1149 = vmatprep.subr.mxu0 0.0
        %1150 = vmatpush1.xpose.msra.mxu0 0.0
        %1151 = vmatprep.subr.mxu0 0.0
        %1152 = vmatpush1.xpose.msra.mxu0 0.0
        %1153 = vmatprep.subr.mxu0 0.0
        %1154 = vmatpush1.xpose.msra.mxu0 0.0
        %1155 = vmatprep.subr.mxu0 0.0
        %1156 = vmatpush1.xpose.msra.mxu0 0.0
        %1157 = vmatprep.subr.mxu0 0.0
        %1158 = vmatpush1.xpose.msra.mxu0 0.0
        %1159 = vmatprep.subr.mxu0 0.0
        %1160 = vmatpush1.xpose.msra.mxu0 0.0
        %1161 = vmatprep.subr.mxu0 0.0
        %1162 = vmatpush1.xpose.msra.mxu0 0.0
        %1163 = vmatprep.subr.mxu0 0.0
        %1164 = vmatpush1.xpose.msra.mxu0 0.0
        %1165 = vmatprep.subr.mxu0 0.0
        %1166 = vmatpush1.xpose.msra.mxu0 0.0
        %1167 = vmatprep.subr.mxu0 0.0
        %1168 = vmatpush1.xpose.msra.mxu0 0.0
        %1169 = vmatprep.subr.mxu0 0.0
        %1170 = vmatpush1.xpose.msra.mxu0 0.0
        %1171 = vmatprep.subr.mxu0 0.0
        %1172 = vmatpush1.xpose.msra.mxu0 0.0
        %1173 = vmatprep.subr.mxu0 0.0
        %1174 = vmatpush1.xpose.msra.mxu0 0.0
        %1175 = vmatprep.subr.mxu0 0.0
        %1176 = vmatpush1.xpose.msra.mxu0 0.0
        %1177 = vmatprep.subr.mxu0 0.0
        %1178 = vmatpush1.xpose.msra.mxu0 0.0
        %1179 = vmatprep.subr.mxu0 0.0
        %1180 = vmatpush1.xpose.msra.mxu0 0.0
        %1181 = vmatprep.subr.mxu0 0.0
        %1182 = vmatpush1.xpose.msra.mxu0 0.0
        %1183 = vmatprep.subr.mxu0 0.0
        %1184 = vmatpush1.xpose.msra.mxu0 0.0
        %1185 = vmatprep.subr.mxu0 0.0
        %1186 = vmatpush1.xpose.msra.mxu0 0.0
        %1187 = vmatprep.subr.mxu0 0.0
        %1188 = vmatpush1.xpose.msra.mxu0 0.0
        %1189 = vmatprep.subr.mxu0 0.0
        %1190 = vmatpush1.xpose.msra.mxu0 0.0
        %1191 = vmatprep.subr.mxu0 0.0
        %1192 = vmatpush1.xpose.msra.mxu0 0.0
        %1193 = vmatprep.mubr.f32.mxu0 0.0
        %1194 = vmatmul.mubr.f32.gmra.mrb[0].mxu0 %v1125
        %v1195 = vpop.f32.mrb[0].mxu0
        %v1196 = vadd.f32 0.0, %v1195
        %v1197 = vpop.f32.mrb[0].mxu0
        %1198 = vdwg.mxu0
        %v1199 = vmul.f32 %v1196, 0.35355338
        %v1200 = vadd.f32 %v1199, %v1031
        %v1201 = vsel %vm951, %v1200, -inf
        %1202 = vmax.xlane.f32.xlu0 %v1201
        %v1203 = vpop.xlane.xlu0 %1202
        %v1204 = vsub.f32 %v1200, %v1203
        %v1205 = vmul.f32 %v1204, 1.442695
        %v1206 = vpow.pop %v1205
        %v1207 = vsel %vm951, %v1206, 0.0
        %1208 = vadd.xlane.f32.xlu0 %v1207
        %v1209 = vpop.xlane.xlu0 %1208
        %v1210 = vrcp.pop %v1209
        %v1211 = vmul.f32 %v1206, %v1210
        %1212 = vrot.lane.b32.xlu0 %v945, 56
        %v1213 = vpop.permute.xlu0 %1212
        %v1216 = vsel %vm951, %v1211, 0
        %1218 = vmatprep.subr.mxu0 0.0
        %1219 = vmatpush1.msra.mxu0 %v1213
        %1220 = vmatprep.subr.mxu0 0.0
        %1221 = vmatpush1.msra.mxu0 0.0
        %1222 = vmatprep.subr.mxu0 0.0
        %1223 = vmatpush1.msra.mxu0 0.0
        %1224 = vmatprep.subr.mxu0 0.0
        %1225 = vmatpush1.msra.mxu0 0.0
        %1226 = vmatprep.subr.mxu0 0.0
        %1227 = vmatpush1.msra.mxu0 0.0
        %1228 = vmatprep.subr.mxu0 0.0
        %1229 = vmatpush1.msra.mxu0 0.0
        %1230 = vmatprep.subr.mxu0 0.0
        %1231 = vmatpush1.msra.mxu0 0.0
        %1232 = vmatprep.subr.mxu0 0.0
        %1233 = vmatpush1.msra.mxu0 0.0
        %1234 = vmatprep.subr.mxu0 0.0
        %1235 = vmatpush1.msra.mxu0 0.0
        %1236 = vmatprep.subr.mxu0 0.0
        %1237 = vmatpush1.msra.mxu0 0.0
        %1238 = vmatprep.subr.mxu0 0.0
        %1239 = vmatpush1.msra.mxu0 0.0
        %1240 = vmatprep.subr.mxu0 0.0
        %1241 = vmatpush1.msra.mxu0 0.0
        %1242 = vmatprep.subr.mxu0 0.0
        %1243 = vmatpush1.msra.mxu0 0.0
        %1244 = vmatprep.subr.mxu0 0.0
        %1245 = vmatpush1.msra.mxu0 0.0
        %1246 = vmatprep.subr.mxu0 0.0
        %1247 = vmatpush1.msra.mxu0 0.0
        %1248 = vmatprep.subr.mxu0 0.0
        %1249 = vmatpush1.msra.mxu0 0.0
        %1250 = vmatprep.subr.mxu0 0.0
        %1251 = vmatpush1.msra.mxu0 0.0
        %1252 = vmatprep.subr.mxu0 0.0
        %1253 = vmatpush1.msra.mxu0 0.0
        %1254 = vmatprep.subr.mxu0 0.0
        %1255 = vmatpush1.msra.mxu0 0.0
        %1256 = vmatprep.subr.mxu0 0.0
        %1257 = vmatpush1.msra.mxu0 0.0
        %1258 = vmatprep.subr.mxu0 0.0
        %1259 = vmatpush1.msra.mxu0 0.0
        %1260 = vmatprep.subr.mxu0 0.0
        %1261 = vmatpush1.msra.mxu0 0.0
        %1262 = vmatprep.subr.mxu0 0.0
        %1263 = vmatpush1.msra.mxu0 0.0
        %1264 = vmatprep.subr.mxu0 0.0
        %1265 = vmatpush1.msra.mxu0 0.0
        %1266 = vmatprep.subr.mxu0 0.0
        %1267 = vmatpush1.msra.mxu0 0.0
        %1268 = vmatprep.subr.mxu0 0.0
        %1269 = vmatpush1.msra.mxu0 0.0
        %1270 = vmatprep.subr.mxu0 0.0
        %1271 = vmatpush1.msra.mxu0 0.0
        %1272 = vmatprep.subr.mxu0 0.0
        %1273 = vmatpush1.msra.mxu0 0.0
        %1274 = vmatprep.subr.mxu0 0.0
        %1275 = vmatpush1.msra.mxu0 0.0
        %1276 = vmatprep.subr.mxu0 0.0
        %1277 = vmatpush1.msra.mxu0 0.0
        %1278 = vmatprep.subr.mxu0 0.0
        %1279 = vmatpush1.msra.mxu0 0.0
        %1280 = vmatprep.subr.mxu0 0.0
        %1281 = vmatpush1.msra.mxu0 0.0
        %1282 = vmatprep.mubr.f32.mxu0 0.0
        %1283 = vmatmul.mubr.f32.gmra.mrb[0].mxu0 %v1216
        %v1284 = vpop.f32.mrb[0].mxu0
        %v1285 = vadd.f32 0.0, %v1284
        %v1286 = vpop.f32.mrb[0].mxu0
        %1287 = vdwg.mxu0
        %1288 = vrot.lane.b32.xlu0 %v945, 112
        %v1289 = vpop.permute.xlu0 %1288
        %1290 = vrot.lane.b32.xlu0 %v945, 80
        %v1291 = vpop.permute.xlu0 %1290
        %v1292 = vsel %vm951, %v1289, 0
        %v1294 = vsel %vm951, %v1291, 0
        %1296 = vmatprep.subr.mxu0 0.0
        %1297 = vmatpush1.xpose.msra.mxu0 %v1294
        %1298 = vmatprep.subr.mxu0 0.0
        %1299 = vmatpush1.xpose.msra.mxu0 0.0
        %1300 = vmatprep.subr.mxu0 0.0
        %1301 = vmatpush1.xpose.msra.mxu0 0.0
        %1302 = vmatprep.subr.mxu0 0.0
        %1303 = vmatpush1.xpose.msra.mxu0 0.0
        %1304 = vmatprep.subr.mxu0 0.0
        %1305 = vmatpush1.xpose.msra.mxu0 0.0
        %1306 = vmatprep.subr.mxu0 0.0
        %1307 = vmatpush1.xpose.msra.mxu0 0.0
        %1308 = vmatprep.subr.mxu0 0.0
        %1309 = vmatpush1.xpose.msra.mxu0 0.0
        %1310 = vmatprep.subr.mxu0 0.0
        %1311 = vmatpush1.xpose.msra.mxu0 0.0
        %1312 = vmatprep.subr.mxu0 0.0
        %1313 = vmatpush1.xpose.msra.mxu0 0.0
        %1314 = vmatprep.subr.mxu0 0.0
        %1315 = vmatpush1.xpose.msra.mxu0 0.0
        %1316 = vmatprep.subr.mxu0 0.0
        %1317 = vmatpush1.xpose.msra.mxu0 0.0
        %1318 = vmatprep.subr.mxu0 0.0
        %1319 = vmatpush1.xpose.msra.mxu0 0.0
        %1320 = vmatprep.subr.mxu0 0.0
        %1321 = vmatpush1.xpose.msra.mxu0 0.0
        %1322 = vmatprep.subr.mxu0 0.0
        %1323 = vmatpush1.xpose.msra.mxu0 0.0
        %1324 = vmatprep.subr.mxu0 0.0
        %1325 = vmatpush1.xpose.msra.mxu0 0.0
        %1326 = vmatprep.subr.mxu0 0.0
        %1327 = vmatpush1.xpose.msra.mxu0 0.0
        %1328 = vmatprep.subr.mxu0 0.0
        %1329 = vmatpush1.xpose.msra.mxu0 0.0
        %1330 = vmatprep.subr.mxu0 0.0
        %1331 = vmatpush1.xpose.msra.mxu0 0.0
        %1332 = vmatprep.subr.mxu0 0.0
        %1333 = vmatpush1.xpose.msra.mxu0 0.0
        %1334 = vmatprep.subr.mxu0 0.0
        %1335 = vmatpush1.xpose.msra.mxu0 0.0
        %1336 = vmatprep.subr.mxu0 0.0
        %1337 = vmatpush1.xpose.msra.mxu0 0.0
        %1338 = vmatprep.subr.mxu0 0.0
        %1339 = vmatpush1.xpose.msra.mxu0 0.0
        %1340 = vmatprep.subr.mxu0 0.0
        %1341 = vmatpush1.xpose.msra.mxu0 0.0
        %1342 = vmatprep.subr.mxu0 0.0
        %1343 = vmatpush1.xpose.msra.mxu0 0.0
        %1344 = vmatprep.subr.mxu0 0.0
        %1345 = vmatpush1.xpose.msra.mxu0 0.0
        %1346 = vmatprep.subr.mxu0 0.0
        %1347 = vmatpush1.xpose.msra.mxu0 0.0
        %1348 = vmatprep.subr.mxu0 0.0
        %1349 = vmatpush1.xpose.msra.mxu0 0.0
        %1350 = vmatprep.subr.mxu0 0.0
        %1351 = vmatpush1.xpose.msra.mxu0 0.0
        %1352 = vmatprep.subr.mxu0 0.0
        %1353 = vmatpush1.xpose.msra.mxu0 0.0
        %1354 = vmatprep.subr.mxu0 0.0
        %1355 = vmatpush1.xpose.msra.mxu0 0.0
        %1356 = vmatprep.subr.mxu0 0.0
        %1357 = vmatpush1.xpose.msra.mxu0 0.0
        %1358 = vmatprep.subr.mxu0 0.0
        %1359 = vmatpush1.xpose.msra.mxu0 0.0
        %1360 = vmatprep.mubr.f32.mxu0 0.0
        %1361 = vmatmul.mubr.f32.gmra.mrb[0].mxu0 %v1292
        %v1362 = vpop.f32.mrb[0].mxu0
        %v1363 = vadd.f32 0.0, %v1362
        %v1364 = vpop.f32.mrb[0].mxu0
        %1365 = vdwg.mxu0
        %v1366 = vmul.f32 %v1363, 0.35355338
        %v1367 = vadd.f32 %v1366, %v1031
        %v1368 = vsel %vm951, %v1367, -inf
        %1369 = vmax.xlane.f32.xlu0 %v1368
        %v1370 = vpop.xlane.xlu0 %1369
        %v1371 = vsub.f32 %v1367, %v1370
        %v1372 = vmul.f32 %v1371, 1.442695
        %v1373 = vpow.pop %v1372
        %v1374 = vsel %vm951, %v1373, 0.0
        %1375 = vadd.xlane.f32.xlu0 %v1374
        %v1376 = vpop.xlane.xlu0 %1375
        %v1377 = vrcp.pop %v1376
        %v1378 = vmul.f32 %v1373, %v1377
        %1379 = vrot.lane.b32.xlu0 %v945, 48
        %v1380 = vpop.permute.xlu0 %1379
        %v1383 = vsel %vm951, %v1378, 0
        %1385 = vmatprep.subr.mxu0 0.0
        %1386 = vmatpush1.msra.mxu0 %v1380
        %1387 = vmatprep.subr.mxu0 0.0
        %1388 = vmatpush1.msra.mxu0 0.0
        %1389 = vmatprep.subr.mxu0 0.0
        %1390 = vmatpush1.msra.mxu0 0.0
        %1391 = vmatprep.subr.mxu0 0.0
        %1392 = vmatpush1.msra.mxu0 0.0
        %1393 = vmatprep.subr.mxu0 0.0
        %1394 = vmatpush1.msra.mxu0 0.0
        %1395 = vmatprep.subr.mxu0 0.0
        %1396 = vmatpush1.msra.mxu0 0.0
        %1397 = vmatprep.subr.mxu0 0.0
        %1398 = vmatpush1.msra.mxu0 0.0
        %1399 = vmatprep.subr.mxu0 0.0
        %1400 = vmatpush1.msra.mxu0 0.0
        %1401 = vmatprep.subr.mxu0 0.0
        %1402 = vmatpush1.msra.mxu0 0.0
        %1403 = vmatprep.subr.mxu0 0.0
        %1404 = vmatpush1.msra.mxu0 0.0
        %1405 = vmatprep.subr.mxu0 0.0
        %1406 = vmatpush1.msra.mxu0 0.0
        %1407 = vmatprep.subr.mxu0 0.0
        %1408 = vmatpush1.msra.mxu0 0.0
        %1409 = vmatprep.subr.mxu0 0.0
        %1410 = vmatpush1.msra.mxu0 0.0
        %1411 = vmatprep.subr.mxu0 0.0
        %1412 = vmatpush1.msra.mxu0 0.0
        %1413 = vmatprep.subr.mxu0 0.0
        %1414 = vmatpush1.msra.mxu0 0.0
        %1415 = vmatprep.subr.mxu0 0.0
        %1416 = vmatpush1.msra.mxu0 0.0
        %1417 = vmatprep.subr.mxu0 0.0
        %1418 = vmatpush1.msra.mxu0 0.0
        %1419 = vmatprep.subr.mxu0 0.0
        %1420 = vmatpush1.msra.mxu0 0.0
        %1421 = vmatprep.subr.mxu0 0.0
        %1422 = vmatpush1.msra.mxu0 0.0
        %1423 = vmatprep.subr.mxu0 0.0
        %1424 = vmatpush1.msra.mxu0 0.0
        %1425 = vmatprep.subr.mxu0 0.0
        %1426 = vmatpush1.msra.mxu0 0.0
        %1427 = vmatprep.subr.mxu0 0.0
        %1428 = vmatpush1.msra.mxu0 0.0
        %1429 = vmatprep.subr.mxu0 0.0
        %1430 = vmatpush1.msra.mxu0 0.0
        %1431 = vmatprep.subr.mxu0 0.0
        %1432 = vmatpush1.msra.mxu0 0.0
        %1433 = vmatprep.subr.mxu0 0.0
        %1434 = vmatpush1.msra.mxu0 0.0
        %1435 = vmatprep.subr.mxu0 0.0
        %1436 = vmatpush1.msra.mxu0 0.0
        %1437 = vmatprep.subr.mxu0 0.0
        %1438 = vmatpush1.msra.mxu0 0.0
        %1439 = vmatprep.subr.mxu0 0.0
        %1440 = vmatpush1.msra.mxu0 0.0
        %1441 = vmatprep.subr.mxu0 0.0
        %1442 = vmatpush1.msra.mxu0 0.0
        %1443 = vmatprep.subr.mxu0 0.0
        %1444 = vmatpush1.msra.mxu0 0.0
        %1445 = vmatprep.subr.mxu0 0.0
        %1446 = vmatpush1.msra.mxu0 0.0
        %1447 = vmatprep.subr.mxu0 0.0
        %1448 = vmatpush1.msra.mxu0 0.0
        %1449 = vmatprep.mubr.f32.mxu0 0.0
        %1450 = vmatmul.mubr.f32.gmra.mrb[0].mxu0 %v1383
        %v1451 = vpop.f32.mrb[0].mxu0
        %v1452 = vadd.f32 0.0, %v1451
        %v1453 = vpop.f32.mrb[0].mxu0
        %1454 = vdwg.mxu0
        %1455 = vrot.lane.b32.xlu0 %v945, 104
        %v1456 = vpop.permute.xlu0 %1455
        %1457 = vrot.lane.b32.xlu0 %v945, 72
        %v1458 = vpop.permute.xlu0 %1457
        %v1459 = vsel %vm951, %v1456, 0
        %v1461 = vsel %vm951, %v1458, 0
        %1463 = vmatprep.subr.mxu0 0.0
        %1464 = vmatpush1.xpose.msra.mxu0 %v1461
        %1465 = vmatprep.subr.mxu0 0.0
        %1466 = vmatpush1.xpose.msra.mxu0 0.0
        %1467 = vmatprep.subr.mxu0 0.0
        %1468 = vmatpush1.xpose.msra.mxu0 0.0
        %1469 = vmatprep.subr.mxu0 0.0
        %1470 = vmatpush1.xpose.msra.mxu0 0.0
        %1471 = vmatprep.subr.mxu0 0.0
        %1472 = vmatpush1.xpose.msra.mxu0 0.0
        %1473 = vmatprep.subr.mxu0 0.0
        %1474 = vmatpush1.xpose.msra.mxu0 0.0
        %1475 = vmatprep.subr.mxu0 0.0
        %1476 = vmatpush1.xpose.msra.mxu0 0.0
        %1477 = vmatprep.subr.mxu0 0.0
        %1478 = vmatpush1.xpose.msra.mxu0 0.0
        %1479 = vmatprep.subr.mxu0 0.0
        %1480 = vmatpush1.xpose.msra.mxu0 0.0
        %1481 = vmatprep.subr.mxu0 0.0
        %1482 = vmatpush1.xpose.msra.mxu0 0.0
        %1483 = vmatprep.subr.mxu0 0.0
        %1484 = vmatpush1.xpose.msra.mxu0 0.0
        %1485 = vmatprep.subr.mxu0 0.0
        %1486 = vmatpush1.xpose.msra.mxu0 0.0
        %1487 = vmatprep.subr.mxu0 0.0
        %1488 = vmatpush1.xpose.msra.mxu0 0.0
        %1489 = vmatprep.subr.mxu0 0.0
        %1490 = vmatpush1.xpose.msra.mxu0 0.0
        %1491 = vmatprep.subr.mxu0 0.0
        %1492 = vmatpush1.xpose.msra.mxu0 0.0
        %1493 = vmatprep.subr.mxu0 0.0
        %1494 = vmatpush1.xpose.msra.mxu0 0.0
        %1495 = vmatprep.subr.mxu0 0.0
        %1496 = vmatpush1.xpose.msra.mxu0 0.0
        %1497 = vmatprep.subr.mxu0 0.0
        %1498 = vmatpush1.xpose.msra.mxu0 0.0
        %1499 = vmatprep.subr.mxu0 0.0
        %1500 = vmatpush1.xpose.msra.mxu0 0.0
        %1501 = vmatprep.subr.mxu0 0.0
        %1502 = vmatpush1.xpose.msra.mxu0 0.0
        %1503 = vmatprep.subr.mxu0 0.0
        %1504 = vmatpush1.xpose.msra.mxu0 0.0
        %1505 = vmatprep.subr.mxu0 0.0
        %1506 = vmatpush1.xpose.msra.mxu0 0.0
        %1507 = vmatprep.subr.mxu0 0.0
        %1508 = vmatpush1.xpose.msra.mxu0 0.0
        %1509 = vmatprep.subr.mxu0 0.0
        %1510 = vmatpush1.xpose.msra.mxu0 0.0
        %1511 = vmatprep.subr.mxu0 0.0
        %1512 = vmatpush1.xpose.msra.mxu0 0.0
        %1513 = vmatprep.subr.mxu0 0.0
        %1514 = vmatpush1.xpose.msra.mxu0 0.0
        %1515 = vmatprep.subr.mxu0 0.0
        %1516 = vmatpush1.xpose.msra.mxu0 0.0
        %1517 = vmatprep.subr.mxu0 0.0
        %1518 = vmatpush1.xpose.msra.mxu0 0.0
        %1519 = vmatprep.subr.mxu0 0.0
        %1520 = vmatpush1.xpose.msra.mxu0 0.0
        %1521 = vmatprep.subr.mxu0 0.0
        %1522 = vmatpush1.xpose.msra.mxu0 0.0
        %1523 = vmatprep.subr.mxu0 0.0
        %1524 = vmatpush1.xpose.msra.mxu0 0.0
        %1525 = vmatprep.subr.mxu0 0.0
        %1526 = vmatpush1.xpose.msra.mxu0 0.0
        %1527 = vmatprep.mubr.f32.mxu0 0.0
        %1528 = vmatmul.mubr.f32.gmra.mrb[0].mxu0 %v1459
        %v1529 = vpop.f32.mrb[0].mxu0
        %v1530 = vadd.f32 0.0, %v1529
        %v1531 = vpop.f32.mrb[0].mxu0
        %1532 = vdwg.mxu0
        %v1533 = vmul.f32 %v1530, 0.35355338
        %v1534 = vadd.f32 %v1533, %v1031
        %v1535 = vsel %vm951, %v1534, -inf
        %1536 = vmax.xlane.f32.xlu0 %v1535
        %v1537 = vpop.xlane.xlu0 %1536
        %v1538 = vsub.f32 %v1534, %v1537
        %v1539 = vmul.f32 %v1538, 1.442695
        %v1540 = vpow.pop %v1539
        %v1541 = vsel %vm951, %v1540, 0.0
        %1542 = vadd.xlane.f32.xlu0 %v1541
        %v1543 = vpop.xlane.xlu0 %1542
        %v1544 = vrcp.pop %v1543
        %v1545 = vmul.f32 %v1540, %v1544
        %1546 = vrot.lane.b32.xlu0 %v945, 40
        %v1547 = vpop.permute.xlu0 %1546
        %v1550 = vsel %vm951, %v1545, 0
        %1552 = vmatprep.subr.mxu0 0.0
        %1553 = vmatpush1.msra.mxu0 %v1547
        %1554 = vmatprep.subr.mxu0 0.0
        %1555 = vmatpush1.msra.mxu0 0.0
        %1556 = vmatprep.subr.mxu0 0.0
        %1557 = vmatpush1.msra.mxu0 0.0
        %1558 = vmatprep.subr.mxu0 0.0
        %1559 = vmatpush1.msra.mxu0 0.0
        %1560 = vmatprep.subr.mxu0 0.0
        %1561 = vmatpush1.msra.mxu0 0.0
        %1562 = vmatprep.subr.mxu0 0.0
        %1563 = vmatpush1.msra.mxu0 0.0
        %1564 = vmatprep.subr.mxu0 0.0
        %1565 = vmatpush1.msra.mxu0 0.0
        %1566 = vmatprep.subr.mxu0 0.0
        %1567 = vmatpush1.msra.mxu0 0.0
        %1568 = vmatprep.subr.mxu0 0.0
        %1569 = vmatpush1.msra.mxu0 0.0
        %1570 = vmatprep.subr.mxu0 0.0
        %1571 = vmatpush1.msra.mxu0 0.0
        %1572 = vmatprep.subr.mxu0 0.0
        %1573 = vmatpush1.msra.mxu0 0.0
        %1574 = vmatprep.subr.mxu0 0.0
        %1575 = vmatpush1.msra.mxu0 0.0
        %1576 = vmatprep.subr.mxu0 0.0
        %1577 = vmatpush1.msra.mxu0 0.0
        %1578 = vmatprep.subr.mxu0 0.0
        %1579 = vmatpush1.msra.mxu0 0.0
        %1580 = vmatprep.subr.mxu0 0.0
        %1581 = vmatpush1.msra.mxu0 0.0
        %1582 = vmatprep.subr.mxu0 0.0
        %1583 = vmatpush1.msra.mxu0 0.0
        %1584 = vmatprep.subr.mxu0 0.0
        %1585 = vmatpush1.msra.mxu0 0.0
        %1586 = vmatprep.subr.mxu0 0.0
        %1587 = vmatpush1.msra.mxu0 0.0
        %1588 = vmatprep.subr.mxu0 0.0
        %1589 = vmatpush1.msra.mxu0 0.0
        %1590 = vmatprep.subr.mxu0 0.0
        %1591 = vmatpush1.msra.mxu0 0.0
        %1592 = vmatprep.subr.mxu0 0.0
        %1593 = vmatpush1.msra.mxu0 0.0
        %1594 = vmatprep.subr.mxu0 0.0
        %1595 = vmatpush1.msra.mxu0 0.0
        %1596 = vmatprep.subr.mxu0 0.0
        %1597 = vmatpush1.msra.mxu0 0.0
        %1598 = vmatprep.subr.mxu0 0.0
        %1599 = vmatpush1.msra.mxu0 0.0
        %1600 = vmatprep.subr.mxu0 0.0
        %1601 = vmatpush1.msra.mxu0 0.0
        %1602 = vmatprep.subr.mxu0 0.0
        %1603 = vmatpush1.msra.mxu0 0.0
        %1604 = vmatprep.subr.mxu0 0.0
        %1605 = vmatpush1.msra.mxu0 0.0
        %1606 = vmatprep.subr.mxu0 0.0
        %1607 = vmatpush1.msra.mxu0 0.0
        %1608 = vmatprep.subr.mxu0 0.0
        %1609 = vmatpush1.msra.mxu0 0.0
        %1610 = vmatprep.subr.mxu0 0.0
        %1611 = vmatpush1.msra.mxu0 0.0
        %1612 = vmatprep.subr.mxu0 0.0
        %1613 = vmatpush1.msra.mxu0 0.0
        %1614 = vmatprep.subr.mxu0 0.0
        %1615 = vmatpush1.msra.mxu0 0.0
        %1616 = vmatprep.mubr.f32.mxu0 0.0
        %1617 = vmatmul.mubr.f32.gmra.mrb[0].mxu0 %v1550
        %v1618 = vpop.f32.mrb[0].mxu0
        %v1619 = vadd.f32 0.0, %v1618
        %v1620 = vpop.f32.mrb[0].mxu0
        %1621 = vdwg.mxu0
        %1623 = vrot.lane.b32.xlu0 %v1285, 8
        %v1624 = vpop.permute.xlu0 %1623
        %1627 = vrot.lane.b32.xlu0 %v1452, 16
        %v1628 = vpop.permute.xlu0 %1627
        %1631 = vrot.lane.b32.xlu0 %v1619, 24
        %v1632 = vpop.permute.xlu0 %1631
        %v1634 = vsel %vm951, %v1118, %v1624
        %vm1635 = vcmask 130048
        %v1636 = vsel %vm1635, %v1634, %v1628
        %vm1637 = vcmask 195584
        %v1638 = vsel %vm1637, %v1636, %v1632
        %v1639 = vld [vmem:[%s4] sm:$0xff]
        %v1640 = vld [vmem:[%s4 + $0x8] sm:$0xff]
        %v1641 = vld [vmem:[%s4 + $0x10] sm:$0xff]
        %v1642 = vld [vmem:[%s4 + $0x18] sm:$0xff]
        %v1643 = vld [vmem:[#allocation8] sm:$0x1]
        %v1645 = vlaneseq
        %v1646 = vshrl.u32 %v1645, 7
        %v1647 = vsub.s32 0, %v1646
        %v1648 = vrot.slane %v1643, %v1647
        %v1651 = vsel %vm835, %v1638, 0
        %1653 = vmatprep.subr.mxu0 0.0
        %1654 = vmatpush1.msra.mxu0 %v1639
        %1655 = vmatprep.subr.mxu0 0.0
        %1656 = vmatpush1.msra.mxu0 %v1640
        %1657 = vmatprep.subr.mxu0 0.0
        %1658 = vmatpush1.msra.mxu0 %v1641
        %1659 = vmatprep.subr.mxu0 0.0
        %1660 = vmatpush1.msra.mxu0 %v1642
        %1661 = vmatprep.subr.mxu0 0.0
        %1662 = vmatpush1.msra.mxu0 0.0
        %1663 = vmatprep.subr.mxu0 0.0
        %1664 = vmatpush1.msra.mxu0 0.0
        %1665 = vmatprep.subr.mxu0 0.0
        %1666 = vmatpush1.msra.mxu0 0.0
        %1667 = vmatprep.subr.mxu0 0.0
        %1668 = vmatpush1.msra.mxu0 0.0
        %1669 = vmatprep.subr.mxu0 0.0
        %1670 = vmatpush1.msra.mxu0 0.0
        %1671 = vmatprep.subr.mxu0 0.0
        %1672 = vmatpush1.msra.mxu0 0.0
        %1673 = vmatprep.subr.mxu0 0.0
        %1674 = vmatpush1.msra.mxu0 0.0
        %1675 = vmatprep.subr.mxu0 0.0
        %1676 = vmatpush1.msra.mxu0 0.0
        %1677 = vmatprep.subr.mxu0 0.0
        %1678 = vmatpush1.msra.mxu0 0.0
        %1679 = vmatprep.subr.mxu0 0.0
        %1680 = vmatpush1.msra.mxu0 0.0
        %1681 = vmatprep.subr.mxu0 0.0
        %1682 = vmatpush1.msra.mxu0 0.0
        %1683 = vmatprep.subr.mxu0 0.0
        %1684 = vmatpush1.msra.mxu0 0.0
        %1685 = vmatprep.subr.mxu0 0.0
        %1686 = vmatpush1.msra.mxu0 0.0
        %1687 = vmatprep.subr.mxu0 0.0
        %1688 = vmatpush1.msra.mxu0 0.0
        %1689 = vmatprep.subr.mxu0 0.0
        %1690 = vmatpush1.msra.mxu0 0.0
        %1691 = vmatprep.subr.mxu0 0.0
        %1692 = vmatpush1.msra.mxu0 0.0
        %1693 = vmatprep.subr.mxu0 0.0
        %1694 = vmatpush1.msra.mxu0 0.0
        %1695 = vmatprep.subr.mxu0 0.0
        %1696 = vmatpush1.msra.mxu0 0.0
        %1697 = vmatprep.subr.mxu0 0.0
        %1698 = vmatpush1.msra.mxu0 0.0
        %1699 = vmatprep.subr.mxu0 0.0
        %1700 = vmatpush1.msra.mxu0 0.0
        %1701 = vmatprep.subr.mxu0 0.0
        %1702 = vmatpush1.msra.mxu0 0.0
        %1703 = vmatprep.subr.mxu0 0.0
        %1704 = vmatpush1.msra.mxu0 0.0
        %1705 = vmatprep.subr.mxu0 0.0
        %1706 = vmatpush1.msra.mxu0 0.0
        %1707 = vmatprep.subr.mxu0 0.0
        %1708 = vmatpush1.msra.mxu0 0.0
        %1709 = vmatprep.subr.mxu0 0.0
        %1710 = vmatpush1.msra.mxu0 0.0
        %1711 = vmatprep.subr.mxu0 0.0
        %1712 = vmatpush1.msra.mxu0 0.0
        %1713 = vmatprep.subr.mxu0 0.0
        %1714 = vmatpush1.msra.mxu0 0.0
        %1715 = vmatprep.subr.mxu0 0.0
        %1716 = vmatpush1.msra.mxu0 0.0
        %1717 = vmatprep.mubr.f32.mxu0 0.0
        %1718 = vmatmul.mubr.f32.gmra.mrb[0].mxu0 %v1651
        %v1719 = vpop.f32.mrb[0].mxu0
        %v1720 = vadd.f32 %v1648, %v1719
        %v1721 = vpop.f32.mrb[0].mxu0
        %1722 = vdwg.mxu0
        %v1723 = vadd.f32 %v863, %v1720
        %v1724 = vld [vmem:[#allocation10] sm:$0x1]
        %v1725 = vld [vmem:[#allocation11] sm:$0x1]
        %v1726 = vsel %vm835, %v1723, 0.0
        %1727 = vadd.xlane.f32.xlu0 %v1726
        %v1728 = vpop.xlane.xlu0 %1727
        %v1729 = vmul.f32 %v1728, %v839
        %v1730 = vsub.f32 %v1723, %v1729
        %v1731 = vmul.f32 %v1730, %v1730
        %v1732 = vsel %vm835, %v1731, 0.0
        %1733 = vadd.xlane.f32.xlu0 %v1732
        %v1734 = vpop.xlane.xlu0 %1733
        %v1735 = vmul.f32 %v1734, %v839
        %v1736 = vadd.f32 %v1735, 1e-12
        %v1737 = vrsqrt.pop %v1736
        %v1738 = vmul.f32 %v1730, %v1737
        %v1740 = vlaneseq
        %v1741 = vshrl.u32 %v1740, 7
        %v1742 = vsub.s32 0, %v1741
        %v1743 = vrot.slane %v1724, %v1742
        %v1745 = vmul.f32 %v1738, %v1743
        %v1747 = vlaneseq
        %v1748 = vshrl.u32 %v1747, 7
        %v1749 = vsub.s32 0, %v1748
        %v1750 = vrot.slane %v1725, %v1749
        %v1752 = vadd.f32 %v1745, %v1750
        %v1753 = vld [vmem:[%s8] sm:$0xff]
        %v1754 = vld [vmem:[%s8 + $0x8] sm:$0xff]
        %v1755 = vld [vmem:[%s8 + $0x10] sm:$0xff]
        %v1756 = vld [vmem:[%s8 + $0x18] sm:$0xff]
        %v1757 = vld [vmem:[#allocation13] sm:$0x1]
        %v1759 = vlaneseq
        %v1760 = vshrl.u32 %v1759, 7
        %v1761 = vsub.s32 0, %v1760
        %v1762 = vrot.slane %v1757, %v1761
        %v1765 = vsel %vm835, %v1752, 0
        %1767 = vmatprep.subr.mxu0 0.0
        %1768 = vmatpush1.msra.mxu0 %v1753
        %1769 = vmatprep.subr.mxu0 0.0
        %1770 = vmatpush1.msra.mxu0 %v1754
        %1771 = vmatprep.subr.mxu0 0.0
        %1772 = vmatpush1.msra.mxu0 %v1755
        %1773 = vmatprep.subr.mxu0 0.0
        %1774 = vmatpush1.msra.mxu0 %v1756
        %1775 = vmatprep.subr.mxu0 0.0
        %1776 = vmatpush1.msra.mxu0 0.0
        %1777 = vmatprep.subr.mxu0 0.0
        %1778 = vmatpush1.msra.mxu0 0.0
        %1779 = vmatprep.subr.mxu0 0.0
        %1780 = vmatpush1.msra.mxu0 0.0
        %1781 = vmatprep.subr.mxu0 0.0
        %1782 = vmatpush1.msra.mxu0 0.0
        %1783 = vmatprep.subr.mxu0 0.0
        %1784 = vmatpush1.msra.mxu0 0.0
        %1785 = vmatprep.subr.mxu0 0.0
        %1786 = vmatpush1.msra.mxu0 0.0
        %1787 = vmatprep.subr.mxu0 0.0
        %1788 = vmatpush1.msra.mxu0 0.0
        %1789 = vmatprep.subr.mxu0 0.0
        %1790 = vmatpush1.msra.mxu0 0.0
        %1791 = vmatprep.subr.mxu0 0.0
        %1792 = vmatpush1.msra.mxu0 0.0
        %1793 = vmatprep.subr.mxu0 0.0
        %1794 = vmatpush1.msra.mxu0 0.0
        %1795 = vmatprep.subr.mxu0 0.0
        %1796 = vmatpush1.msra.mxu0 0.0
        %1797 = vmatprep.subr.mxu0 0.0
        %1798 = vmatpush1.msra.mxu0 0.0
        %1799 = vmatprep.subr.mxu0 0.0
        %1800 = vmatpush1.msra.mxu0 0.0
        %1801 = vmatprep.subr.mxu0 0.0
        %1802 = vmatpush1.msra.mxu0 0.0
        %1803 = vmatprep.subr.mxu0 0.0
        %1804 = vmatpush1.msra.mxu0 0.0
        %1805 = vmatprep.subr.mxu0 0.0
        %1806 = vmatpush1.msra.mxu0 0.0
        %1807 = vmatprep.subr.mxu0 0.0
        %1808 = vmatpush1.msra.mxu0 0.0
        %1809 = vmatprep.subr.mxu0 0.0
        %1810 = vmatpush1.msra.mxu0 0.0
        %1811 = vmatprep.subr.mxu0 0.0
        %1812 = vmatpush1.msra.mxu0 0.0
        %1813 = vmatprep.subr.mxu0 0.0
        %1814 = vmatpush1.msra.mxu0 0.0
        %1815 = vmatprep.subr.mxu0 0.0
        %1816 = vmatpush1.msra.mxu0 0.0
        %1817 = vmatprep.subr.mxu0 0.0
        %1818 = vmatpush1.msra.mxu0 0.0
        %1819 = vmatprep.subr.mxu0 0.0
        %1820 = vmatpush1.msra.mxu0 0.0
        %1821 = vmatprep.subr.mxu0 0.0
        %1822 = vmatpush1.msra.mxu0 0.0
        %1823 = vmatprep.subr.mxu0 0.0
        %1824 = vmatpush1.msra.mxu0 0.0
        %1825 = vmatprep.subr.mxu0 0.0
        %1826 = vmatpush1.msra.mxu0 0.0
        %1827 = vmatprep.subr.mxu0 0.0
        %1828 = vmatpush1.msra.mxu0 0.0
        %1829 = vmatprep.subr.mxu0 0.0
        %1830 = vmatpush1.msra.mxu0 0.0
        %1831 = vmatprep.mubr.f32.mxu0 0.0
        %1832 = vmatmul.mubr.f32.gmra.mrb[0].mxu0 %v1765
        %v1833 = vpop.f32.mrb[0].mxu0
        %v1834 = vadd.f32 %v1762, %v1833
        %v1835 = vpop.f32.mrb[0].mxu0
        %1836 = vdwg.mxu0
        %v1837 = vmul.f32 %v1834, 0.5
        %v1838 = vmul.f32 %v1834, 0.70710677
        %v1839 = verf.f32.pop %v1838
        %v1840 = vadd.f32 %v1839, 1.0
        %v1841 = vmul.f32 %v1837, %v1840
        %v1842 = vld [vmem:[%s10] sm:$0xff]
        %v1843 = vld [vmem:[%s10 + $0x8] sm:$0xff]
        %v1844 = vld [vmem:[%s10 + $0x10] sm:$0xff]
        %v1845 = vld [vmem:[%s10 + $0x18] sm:$0xff]
        %v1846 = vld [vmem:[%s10 + $0x20] sm:$0xff]
        %v1847 = vld [vmem:[%s10 + $0x28] sm:$0xff]
        %v1848 = vld [vmem:[%s10 + $0x30] sm:$0xff]
        %v1849 = vld [vmem:[%s10 + $0x38] sm:$0xff]
        %v1850 = vld [vmem:[#allocation14] sm:$0x1]
        %v1852 = vlaneseq
        %v1853 = vshrl.u32 %v1852, 7
        %v1854 = vsub.s32 0, %v1853
        %v1855 = vrot.slane %v1850, %v1854
        %vm1857 = vcmask 523264
        %v1859 = vsel %vm1857, %v1841, 0
        %1861 = vmatprep.subr.mxu0 0.0
        %1862 = vmatpush1.msra.mxu0 %v1842
        %1863 = vmatprep.subr.mxu0 0.0
        %1864 = vmatpush1.msra.mxu0 %v1843
        %1865 = vmatprep.subr.mxu0 0.0
        %1866 = vmatpush1.msra.mxu0 %v1844
        %1867 = vmatprep.subr.mxu0 0.0
        %1868 = vmatpush1.msra.mxu0 %v1845
        %1869 = vmatprep.subr.mxu0 0.0
        %1870 = vmatpush1.msra.mxu0 %v1846
        %1871 = vmatprep.subr.mxu0 0.0
        %1872 = vmatpush1.msra.mxu0 %v1847
        %1873 = vmatprep.subr.mxu0 0.0
        %1874 = vmatpush1.msra.mxu0 %v1848
        %1875 = vmatprep.subr.mxu0 0.0
        %1876 = vmatpush1.msra.mxu0 %v1849
        %1877 = vmatprep.subr.mxu0 0.0
        %1878 = vmatpush1.msra.mxu0 0.0
        %1879 = vmatprep.subr.mxu0 0.0
        %1880 = vmatpush1.msra.mxu0 0.0
        %1881 = vmatprep.subr.mxu0 0.0
        %1882 = vmatpush1.msra.mxu0 0.0
        %1883 = vmatprep.subr.mxu0 0.0
        %1884 = vmatpush1.msra.mxu0 0.0
        %1885 = vmatprep.subr.mxu0 0.0
        %1886 = vmatpush1.msra.mxu0 0.0
        %1887 = vmatprep.subr.mxu0 0.0
        %1888 = vmatpush1.msra.mxu0 0.0
        %1889 = vmatprep.subr.mxu0 0.0
        %1890 = vmatpush1.msra.mxu0 0.0
        %1891 = vmatprep.subr.mxu0 0.0
        %1892 = vmatpush1.msra.mxu0 0.0
        %1893 = vmatprep.subr.mxu0 0.0
        %1894 = vmatpush1.msra.mxu0 0.0
        %1895 = vmatprep.subr.mxu0 0.0
        %1896 = vmatpush1.msra.mxu0 0.0
        %1897 = vmatprep.subr.mxu0 0.0
        %1898 = vmatpush1.msra.mxu0 0.0
        %1899 = vmatprep.subr.mxu0 0.0
        %1900 = vmatpush1.msra.mxu0 0.0
        %1901 = vmatprep.subr.mxu0 0.0
        %1902 = vmatpush1.msra.mxu0 0.0
        %1903 = vmatprep.subr.mxu0 0.0
        %1904 = vmatpush1.msra.mxu0 0.0
        %1905 = vmatprep.subr.mxu0 0.0
        %1906 = vmatpush1.msra.mxu0 0.0
        %1907 = vmatprep.subr.mxu0 0.0
        %1908 = vmatpush1.msra.mxu0 0.0
        %1909 = vmatprep.subr.mxu0 0.0
        %1910 = vmatpush1.msra.mxu0 0.0
        %1911 = vmatprep.subr.mxu0 0.0
        %1912 = vmatpush1.msra.mxu0 0.0
        %1913 = vmatprep.subr.mxu0 0.0
        %1914 = vmatpush1.msra.mxu0 0.0
        %1915 = vmatprep.subr.mxu0 0.0
        %1916 = vmatpush1.msra.mxu0 0.0
        %1917 = vmatprep.subr.mxu0 0.0
        %1918 = vmatpush1.msra.mxu0 0.0
        %1919 = vmatprep.subr.mxu0 0.0
        %1920 = vmatpush1.msra.mxu0 0.0
        %1921 = vmatprep.subr.mxu0 0.0
        %1922 = vmatpush1.msra.mxu0 0.0
        %1923 = vmatprep.subr.mxu0 0.0
        %1924 = vmatpush1.msra.mxu0 0.0
        %1925 = vmatprep.mubr.f32.mxu0 0.0
        %1926 = vmatmul.mubr.f32.gmra.mrb[0].mxu0 %v1859
        %v1927 = vpop.f32.mrb[0].mxu0
        %v1928 = vadd.f32 %v1855, %v1927
        %v1929 = vpop.f32.mrb[0].mxu0
        %1930 = vdwg.mxu0
        %v1931 = vadd.f32 %v1752, %v1928
        %v1932 = vld [vmem:[#allocation16] sm:$0x1]
        %v1933 = vld [vmem:[#allocation17] sm:$0x1]
        %v1934 = vsel %vm835, %v1931, 0.0
        %1935 = vadd.xlane.f32.xlu0 %v1934
        %v1936 = vpop.xlane.xlu0 %1935
        %v1937 = vmul.f32 %v1936, %v839
        %v1938 = vsub.f32 %v1931, %v1937
        %v1939 = vmul.f32 %v1938, %v1938
        %v1940 = vsel %vm835, %v1939, 0.0
        %1941 = vadd.xlane.f32.xlu0 %v1940
        %v1942 = vpop.xlane.xlu0 %1941
        %v1943 = vmul.f32 %v1942, %v839
        %v1944 = vadd.f32 %v1943, 1e-12
        %v1945 = vrsqrt.pop %v1944
        %v1946 = vmul.f32 %v1938, %v1945
        %v1948 = vlaneseq
        %v1949 = vshrl.u32 %v1948, 7
        %v1950 = vsub.s32 0, %v1949
        %v1951 = vrot.slane %v1932, %v1950
        %v1953 = vmul.f32 %v1946, %v1951
        %v1955 = vlaneseq
        %v1956 = vshrl.u32 %v1955, 7
        %v1957 = vsub.s32 0, %v1956
        %v1958 = vrot.slane %v1933, %v1957
        %v1960 = vadd.f32 %v1953, %v1958
        %s1961 = scalar_lea.vmem %s2, 32
        %v1962 = vld [vmem:[%s1961] sm:$0xff]
        %v1963 = vld [vmem:[%s1961 + $0x8] sm:$0xff]
        %v1964 = vld [vmem:[%s1961 + $0x10] sm:$0xff]
        %v1965 = vld [vmem:[%s1961 + $0x18] sm:$0xff]
        %s1966 = scalar_lea.vmem [#allocation7], 1
        %v1967 = vld [vmem:[%s1966] sm:$0x1]
        %v1969 = vlaneseq
        %v1970 = vshrl.u32 %v1969, 7
        %v1971 = vsub.s32 0, %v1970
        %v1972 = vrot.slane %v1967, %v1971
        %v1975 = vsel %vm835, %v1960, 0
        %1977 = vmatprep.subr.mxu0 0.0
        %1978 = vmatpush1.msra.mxu0 %v1962
        %1979 = vmatprep.subr.mxu0 0.0
        %1980 = vmatpush1.msra.mxu0 %v1963
        %1981 = vmatprep.subr.mxu0 0.0
        %1982 = vmatpush1.msra.mxu0 %v1964
        %1983 = vmatprep.subr.mxu0 0.0
        %1984 = vmatpush1.msra.mxu0 %v1965
        %1985 = vmatprep.subr.mxu0 0.0
        %1986 = vmatpush1.msra.mxu0 0.0
        %1987 = vmatprep.subr.mxu0 0.0
        %1988 = vmatpush1.msra.mxu0 0.0
        %1989 = vmatprep.subr.mxu0 0.0
        %1990 = vmatpush1.msra.mxu0 0.0
        %1991 = vmatprep.subr.mxu0 0.0
        %1992 = vmatpush1.msra.mxu0 0.0
        %1993 = vmatprep.subr.mxu0 0.0
        %1994 = vmatpush1.msra.mxu0 0.0
        %1995 = vmatprep.subr.mxu0 0.0
        %1996 = vmatpush1.msra.mxu0 0.0
        %1997 = vmatprep.subr.mxu0 0.0
        %1998 = vmatpush1.msra.mxu0 0.0
        %1999 = vmatprep.subr.mxu0 0.0
        %2000 = vmatpush1.msra.mxu0 0.0
        %2001 = vmatprep.subr.mxu0 0.0
        %2002 = vmatpush1.msra.mxu0 0.0
        %2003 = vmatprep.subr.mxu0 0.0
        %2004 = vmatpush1.msra.mxu0 0.0
        %2005 = vmatprep.subr.mxu0 0.0
        %2006 = vmatpush1.msra.mxu0 0.0
        %2007 = vmatprep.subr.mxu0 0.0
        %2008 = vmatpush1.msra.mxu0 0.0
        %2009 = vmatprep.subr.mxu0 0.0
        %2010 = vmatpush1.msra.mxu0 0.0
        %2011 = vmatprep.subr.mxu0 0.0
        %2012 = vmatpush1.msra.mxu0 0.0
        %2013 = vmatprep.subr.mxu0 0.0
        %2014 = vmatpush1.msra.mxu0 0.0
        %2015 = vmatprep.subr.mxu0 0.0
        %2016 = vmatpush1.msra.mxu0 0.0
        %2017 = vmatprep.subr.mxu0 0.0
        %2018 = vmatpush1.msra.mxu0 0.0
        %2019 = vmatprep.subr.mxu0 0.0
        %2020 = vmatpush1.msra.mxu0 0.0
        %2021 = vmatprep.subr.mxu0 0.0
        %2022 = vmatpush1.msra.mxu0 0.0
        %2023 = vmatprep.subr.mxu0 0.0
        %2024 = vmatpush1.msra.mxu0 0.0
        %2025 = vmatprep.subr.mxu0 0.0
        %2026 = vmatpush1.msra.mxu0 0.0
        %2027 = vmatprep.subr.mxu0 0.0
        %2028 = vmatpush1.msra.mxu0 0.0
        %2029 = vmatprep.subr.mxu0 0.0
        %2030 = vmatpush1.msra.mxu0 0.0
        %2031 = vmatprep.subr.mxu0 0.0
        %2032 = vmatpush1.msra.mxu0 0.0
        %2033 = vmatprep.subr.mxu0 0.0
        %2034 = vmatpush1.msra.mxu0 0.0
        %2035 = vmatprep.subr.mxu0 0.0
        %2036 = vmatpush1.msra.mxu0 0.0
        %2037 = vmatprep.subr.mxu0 0.0
        %2038 = vmatpush1.msra.mxu0 0.0
        %2039 = vmatprep.subr.mxu0 0.0
        %2040 = vmatpush1.msra.mxu0 0.0
        %2041 = vmatprep.mubr.f32.mxu0 0.0
        %2042 = vmatmul.mubr.f32.gmra.mrb[0].mxu0 %v1975
        %v2043 = vpop.f32.mrb[0].mxu0
        %v2044 = vadd.f32 %v1972, %v2043
        %v2045 = vpop.f32.mrb[0].mxu0
        %2046 = vdwg.mxu0
        %2048 = vrot.lane.b32.xlu0 %v2044, 96
        %v2049 = vpop.permute.xlu0 %2048
        %v2050 = vsel %vm951, %v2044, 0
        %v2052 = vsel %vm951, %v2049, 0
        %2054 = vmatprep.subr.mxu0 0.0
        %2055 = vmatpush1.xpose.msra.mxu0 %v2052
        %2056 = vmatprep.subr.mxu0 0.0
        %2057 = vmatpush1.xpose.msra.mxu0 0.0
        %2058 = vmatprep.subr.mxu0 0.0
        %2059 = vmatpush1.xpose.msra.mxu0 0.0
        %2060 = vmatprep.subr.mxu0 0.0
        %2061 = vmatpush1.xpose.msra.mxu0 0.0
        %2062 = vmatprep.subr.mxu0 0.0
        %2063 = vmatpush1.xpose.msra.mxu0 0.0
        %2064 = vmatprep.subr.mxu0 0.0
        %2065 = vmatpush1.xpose.msra.mxu0 0.0
        %2066 = vmatprep.subr.mxu0 0.0
        %2067 = vmatpush1.xpose.msra.mxu0 0.0
        %2068 = vmatprep.subr.mxu0 0.0
        %2069 = vmatpush1.xpose.msra.mxu0 0.0
        %2070 = vmatprep.subr.mxu0 0.0
        %2071 = vmatpush1.xpose.msra.mxu0 0.0
        %2072 = vmatprep.subr.mxu0 0.0
        %2073 = vmatpush1.xpose.msra.mxu0 0.0
        %2074 = vmatprep.subr.mxu0 0.0
        %2075 = vmatpush1.xpose.msra.mxu0 0.0
        %2076 = vmatprep.subr.mxu0 0.0
        %2077 = vmatpush1.xpose.msra.mxu0 0.0
        %2078 = vmatprep.subr.mxu0 0.0
        %2079 = vmatpush1.xpose.msra.mxu0 0.0
        %2080 = vmatprep.subr.mxu0 0.0
        %2081 = vmatpush1.xpose.msra.mxu0 0.0
        %2082 = vmatprep.subr.mxu0 0.0
        %2083 = vmatpush1.xpose.msra.mxu0 0.0
        %2084 = vmatprep.subr.mxu0 0.0
        %2085 = vmatpush1.xpose.msra.mxu0 0.0
        %2086 = vmatprep.subr.mxu0 0.0
        %2087 = vmatpush1.xpose.msra.mxu0 0.0
        %2088 = vmatprep.subr.mxu0 0.0
        %2089 = vmatpush1.xpose.msra.mxu0 0.0
        %2090 = vmatprep.subr.mxu0 0.0
        %2091 = vmatpush1.xpose.msra.mxu0 0.0
        %2092 = vmatprep.subr.mxu0 0.0
        %2093 = vmatpush1.xpose.msra.mxu0 0.0
        %2094 = vmatprep.subr.mxu0 0.0
        %2095 = vmatpush1.xpose.msra.mxu0 0.0
        %2096 = vmatprep.subr.mxu0 0.0
        %2097 = vmatpush1.xpose.msra.mxu0 0.0
        %2098 = vmatprep.subr.mxu0 0.0
        %2099 = vmatpush1.xpose.msra.mxu0 0.0
        %2100 = vmatprep.subr.mxu0 0.0
        %2101 = vmatpush1.xpose.msra.mxu0 0.0
        %2102 = vmatprep.subr.mxu0 0.0
        %2103 = vmatpush1.xpose.msra.mxu0 0.0
        %2104 = vmatprep.subr.mxu0 0.0
        %2105 = vmatpush1.xpose.msra.mxu0 0.0
        %2106 = vmatprep.subr.mxu0 0.0
        %2107 = vmatpush1.xpose.msra.mxu0 0.0
        %2108 = vmatprep.subr.mxu0 0.0
        %2109 = vmatpush1.xpose.msra.mxu0 0.0
        %2110 = vmatprep.subr.mxu0 0.0
        %2111 = vmatpush1.xpose.msra.mxu0 0.0
        %2112 = vmatprep.subr.mxu0 0.0
        %2113 = vmatpush1.xpose.msra.mxu0 0.0
        %2114 = vmatprep.subr.mxu0 0.0
        %2115 = vmatpush1.xpose.msra.mxu0 0.0
        %2116 = vmatprep.subr.mxu0 0.0
        %2117 = vmatpush1.xpose.msra.mxu0 0.0
        %2118 = vmatprep.mubr.f32.mxu0 0.0
        %2119 = vmatmul.mubr.f32.gmra.mrb[0].mxu0 %v2050
        %v2120 = vpop.f32.mrb[0].mxu0
        %v2121 = vadd.f32 0.0, %v2120
        %v2122 = vpop.f32.mrb[0].mxu0
        %2123 = vdwg.mxu0
        %v2124 = vmul.f32 %v2121, 0.35355338
        %v2125 = vadd.f32 %v2124, %v1031
        %v2126 = vsel %vm951, %v2125, -inf
        %2127 = vmax.xlane.f32.xlu0 %v2126
        %v2128 = vpop.xlane.xlu0 %2127
        %v2129 = vsub.f32 %v2125, %v2128
        %v2130 = vmul.f32 %v2129, 1.442695
        %v2131 = vpow.pop %v2130
        %v2132 = vsel %vm951, %v2131, 0.0
        %2133 = vadd.xlane.f32.xlu0 %v2132
        %v2134 = vpop.xlane.xlu0 %2133
        %v2135 = vrcp.pop %v2134
        %v2136 = vmul.f32 %v2131, %v2135
        %2137 = vrot.lane.b32.xlu0 %v2044, 64
        %v2138 = vpop.permute.xlu0 %2137
        %v2141 = vsel %vm951, %v2136, 0
        %2143 = vmatprep.subr.mxu0 0.0
        %2144 = vmatpush1.msra.mxu0 %v2138
        %2145 = vmatprep.subr.mxu0 0.0
        %2146 = vmatpush1.msra.mxu0 0.0
        %2147 = vmatprep.subr.mxu0 0.0
        %2148 = vmatpush1.msra.mxu0 0.0
        %2149 = vmatprep.subr.mxu0 0.0
        %2150 = vmatpush1.msra.mxu0 0.0
        %2151 = vmatprep.subr.mxu0 0.0
        %2152 = vmatpush1.msra.mxu0 0.0
        %2153 = vmatprep.subr.mxu0 0.0
        %2154 = vmatpush1.msra.mxu0 0.0
        %2155 = vmatprep.subr.mxu0 0.0
        %2156 = vmatpush1.msra.mxu0 0.0
        %2157 = vmatprep.subr.mxu0 0.0
        %2158 = vmatpush1.msra.mxu0 0.0
        %2159 = vmatprep.subr.mxu0 0.0
        %2160 = vmatpush1.msra.mxu0 0.0
        %2161 = vmatprep.subr.mxu0 0.0
        %2162 = vmatpush1.msra.mxu0 0.0
        %2163 = vmatprep.subr.mxu0 0.0
        %2164 = vmatpush1.msra.mxu0 0.0
        %2165 = vmatprep.subr.mxu0 0.0
        %2166 = vmatpush1.msra.mxu0 0.0
        %2167 = vmatprep.subr.mxu0 0.0
        %2168 = vmatpush1.msra.mxu0 0.0
        %2169 = vmatprep.subr.mxu0 0.0
        %2170 = vmatpush1.msra.mxu0 0.0
        %2171 = vmatprep.subr.mxu0 0.0
        %2172 = vmatpush1.msra.mxu0 0.0
        %2173 = vmatprep.subr.mxu0 0.0
        %2174 = vmatpush1.msra.mxu0 0.0
        %2175 = vmatprep.subr.mxu0 0.0
        %2176 = vmatpush1.msra.mxu0 0.0
        %2177 = vmatprep.subr.mxu0 0.0
        %2178 = vmatpush1.msra.mxu0 0.0
        %2179 = vmatprep.subr.mxu0 0.0
        %2180 = vmatpush1.msra.mxu0 0.0
        %2181 = vmatprep.subr.mxu0 0.0
        %2182 = vmatpush1.msra.mxu0 0.0
        %2183 = vmatprep.subr.mxu0 0.0
        %2184 = vmatpush1.msra.mxu0 0.0
        %2185 = vmatprep.subr.mxu0 0.0
        %2186 = vmatpush1.msra.mxu0 0.0
        %2187 = vmatprep.subr.mxu0 0.0
        %2188 = vmatpush1.msra.mxu0 0.0
        %2189 = vmatprep.subr.mxu0 0.0
        %2190 = vmatpush1.msra.mxu0 0.0
        %2191 = vmatprep.subr.mxu0 0.0
        %2192 = vmatpush1.msra.mxu0 0.0
        %2193 = vmatprep.subr.mxu0 0.0
        %2194 = vmatpush1.msra.mxu0 0.0
        %2195 = vmatprep.subr.mxu0 0.0
        %2196 = vmatpush1.msra.mxu0 0.0
        %2197 = vmatprep.subr.mxu0 0.0
        %2198 = vmatpush1.msra.mxu0 0.0
        %2199 = vmatprep.subr.mxu0 0.0
        %2200 = vmatpush1.msra.mxu0 0.0
        %2201 = vmatprep.subr.mxu0 0.0
        %2202 = vmatpush1.msra.mxu0 0.0
        %2203 = vmatprep.subr.mxu0 0.0
        %2204 = vmatpush1.msra.mxu0 0.0
        %2205 = vmatprep.subr.mxu0 0.0
        %2206 = vmatpush1.msra.mxu0 0.0
        %2207 = vmatprep.mubr.f32.mxu0 0.0
        %2208 = vmatmul.mubr.f32.gmra.mrb[0].mxu0 %v2141
        %v2209 = vpop.f32.mrb[0].mxu0
        %v2210 = vadd.f32 0.0, %v2209
        %v2211 = vpop.f32.mrb[0].mxu0
        %2212 = vdwg.mxu0
        %2213 = vrot.lane.b32.xlu0 %v2044, 120
        %v2214 = vpop.permute.xlu0 %2213
        %2215 = vrot.lane.b32.xlu0 %v2044, 88
        %v2216 = vpop.permute.xlu0 %2215
        %v2217 = vsel %vm951, %v2214, 0
        %v2219 = vsel %vm951, %v2216, 0
        %2221 = vmatprep.subr.mxu0 0.0
        %2222 = vmatpush1.xpose.msra.mxu0 %v2219
        %2223 = vmatprep.subr.mxu0 0.0
        %2224 = vmatpush1.xpose.msra.mxu0 0.0
        %2225 = vmatprep.subr.mxu0 0.0
        %2226 = vmatpush1.xpose.msra.mxu0 0.0
        %2227 = vmatprep.subr.mxu0 0.0
        %2228 = vmatpush1.xpose.msra.mxu0 0.0
        %2229 = vmatprep.subr.mxu0 0.0
        %2230 = vmatpush1.xpose.msra.mxu0 0.0
        %2231 = vmatprep.subr.mxu0 0.0
        %2232 = vmatpush1.xpose.msra.mxu0 0.0
        %2233 = vmatprep.subr.mxu0 0.0
        %2234 = vmatpush1.xpose.msra.mxu0 0.0
        %2235 = vmatprep.subr.mxu0 0.0
        %2236 = vmatpush1.xpose.msra.mxu0 0.0
        %2237 = vmatprep.subr.mxu0 0.0
        %2238 = vmatpush1.xpose.msra.mxu0 0.0
        %2239 = vmatprep.subr.mxu0 0.0
        %2240 = vmatpush1.xpose.msra.mxu0 0.0
        %2241 = vmatprep.subr.mxu0 0.0
        %2242 = vmatpush1.xpose.msra.mxu0 0.0
        %2243 = vmatprep.subr.mxu0 0.0
        %2244 = vmatpush1.xpose.msra.mxu0 0.0
        %2245 = vmatprep.subr.mxu0 0.0
        %2246 = vmatpush1.xpose.msra.mxu0 0.0
        %2247 = vmatprep.subr.mxu0 0.0
        %2248 = vmatpush1.xpose.msra.mxu0 0.0
        %2249 = vmatprep.subr.mxu0 0.0
        %2250 = vmatpush1.xpose.msra.mxu0 0.0
        %2251 = vmatprep.subr.mxu0 0.0
        %2252 = vmatpush1.xpose.msra.mxu0 0.0
        %2253 = vmatprep.subr.mxu0 0.0
        %2254 = vmatpush1.xpose.msra.mxu0 0.0
        %2255 = vmatprep.subr.mxu0 0.0
        %2256 = vmatpush1.xpose.msra.mxu0 0.0
        %2257 = vmatprep.subr.mxu0 0.0
        %2258 = vmatpush1.xpose.msra.mxu0 0.0
        %2259 = vmatprep.subr.mxu0 0.0
        %2260 = vmatpush1.xpose.msra.mxu0 0.0
        %2261 = vmatprep.subr.mxu0 0.0
        %2262 = vmatpush1.xpose.msra.mxu0 0.0
        %2263 = vmatprep.subr.mxu0 0.0
        %2264 = vmatpush1.xpose.msra.mxu0 0.0
        %2265 = vmatprep.subr.mxu0 0.0
        %2266 = vmatpush1.xpose.msra.mxu0 0.0
        %2267 = vmatprep.subr.mxu0 0.0
        %2268 = vmatpush1.xpose.msra.mxu0 0.0
        %2269 = vmatprep.subr.mxu0 0.0
        %2270 = vmatpush1.xpose.msra.mxu0 0.0
        %2271 = vmatprep.subr.mxu0 0.0
        %2272 = vmatpush1.xpose.msra.mxu0 0.0
        %2273 = vmatprep.subr.mxu0 0.0
        %2274 = vmatpush1.xpose.msra.mxu0 0.0
        %2275 = vmatprep.subr.mxu0 0.0
        %2276 = vmatpush1.xpose.msra.mxu0 0.0
        %2277 = vmatprep.subr.mxu0 0.0
        %2278 = vmatpush1.xpose.msra.mxu0 0.0
        %2279 = vmatprep.subr.mxu0 0.0
        %2280 = vmatpush1.xpose.msra.mxu0 0.0
        %2281 = vmatprep.subr.mxu0 0.0
        %2282 = vmatpush1.xpose.msra.mxu0 0.0
        %2283 = vmatprep.subr.mxu0 0.0
        %2284 = vmatpush1.xpose.msra.mxu0 0.0
        %2285 = vmatprep.mubr.f32.mxu0 0.0
        %2286 = vmatmul.mubr.f32.gmra.mrb[0].mxu0 %v2217
        %v2287 = vpop.f32.mrb[0].mxu0
        %v2288 = vadd.f32 0.0, %v2287
        %v2289 = vpop.f32.mrb[0].mxu0
        %2290 = vdwg.mxu0
        %v2291 = vmul.f32 %v2288, 0.35355338
        %v2292 = vadd.f32 %v2291, %v1031
        %v2293 = vsel %vm951, %v2292, -inf
        %2294 = vmax.xlane.f32.xlu0 %v2293
        %v2295 = vpop.xlane.xlu0 %2294
        %v2296 = vsub.f32 %v2292, %v2295
        %v2297 = vmul.f32 %v2296, 1.442695
        %v2298 = vpow.pop %v2297
        %v2299 = vsel %vm951, %v2298, 0.0
        %2300 = vadd.xlane.f32.xlu0 %v2299
        %v2301 = vpop.xlane.xlu0 %2300
        %v2302 = vrcp.pop %v2301
        %v2303 = vmul.f32 %v2298, %v2302
        %2304 = vrot.lane.b32.xlu0 %v2044, 56
        %v2305 = vpop.permute.xlu0 %2304
        %v2308 = vsel %vm951, %v2303, 0
        %2310 = vmatprep.subr.mxu0 0.0
        %2311 = vmatpush1.msra.mxu0 %v2305
        %2312 = vmatprep.subr.mxu0 0.0
        %2313 = vmatpush1.msra.mxu0 0.0
        %2314 = vmatprep.subr.mxu0 0.0
        %2315 = vmatpush1.msra.mxu0 0.0
        %2316 = vmatprep.subr.mxu0 0.0
        %2317 = vmatpush1.msra.mxu0 0.0
        %2318 = vmatprep.subr.mxu0 0.0
        %2319 = vmatpush1.msra.mxu0 0.0
        %2320 = vmatprep.subr.mxu0 0.0
        %2321 = vmatpush1.msra.mxu0 0.0
        %2322 = vmatprep.subr.mxu0 0.0
        %2323 = vmatpush1.msra.mxu0 0.0
        %2324 = vmatprep.subr.mxu0 0.0
        %2325 = vmatpush1.msra.mxu0 0.0
        %2326 = vmatprep.subr.mxu0 0.0
        %2327 = vmatpush1.msra.mxu0 0.0
        %2328 = vmatprep.subr.mxu0 0.0
        %2329 = vmatpush1.msra.mxu0 0.0
        %2330 = vmatprep.subr.mxu0 0.0
        %2331 = vmatpush1.msra.mxu0 0.0
        %2332 = vmatprep.subr.mxu0 0.0
        %2333 = vmatpush1.msra.mxu0 0.0
        %2334 = vmatprep.subr.mxu0 0.0
        %2335 = vmatpush1.msra.mxu0 0.0
        %2336 = vmatprep.subr.mxu0 0.0
        %2337 = vmatpush1.msra.mxu0 0.0
        %2338 = vmatprep.subr.mxu0 0.0
        %2339 = vmatpush1.msra.mxu0 0.0
        %2340 = vmatprep.subr.mxu0 0.0
        %2341 = vmatpush1.msra.mxu0 0.0
        %2342 = vmatprep.subr.mxu0 0.0
        %2343 = vmatpush1.msra.mxu0 0.0
        %2344 = vmatprep.subr.mxu0 0.0
        %2345 = vmatpush1.msra.mxu0 0.0
        %2346 = vmatprep.subr.mxu0 0.0
        %2347 = vmatpush1.msra.mxu0 0.0
        %2348 = vmatprep.subr.mxu0 0.0
        %2349 = vmatpush1.msra.mxu0 0.0
        %2350 = vmatprep.subr.mxu0 0.0
        %2351 = vmatpush1.msra.mxu0 0.0
        %2352 = vmatprep.subr.mxu0 0.0
        %2353 = vmatpush1.msra.mxu0 0.0
        %2354 = vmatprep.subr.mxu0 0.0
        %2355 = vmatpush1.msra.mxu0 0.0
        %2356 = vmatprep.subr.mxu0 0.0
        %2357 = vmatpush1.msra.mxu0 0.0
        %2358 = vmatprep.subr.mxu0 0.0
        %2359 = vmatpush1.msra.mxu0 0.0
        %2360 = vmatprep.subr.mxu0 0.0
        %2361 = vmatpush1.msra.mxu0 0.0
        %2362 = vmatprep.subr.mxu0 0.0
        %2363 = vmatpush1.msra.mxu0 0.0
        %2364 = vmatprep.subr.mxu0 0.0
        %2365 = vmatpush1.msra.mxu0 0.0
        %2366 = vmatprep.subr.mxu0 0.0
        %2367 = vmatpush1.msra.mxu0 0.0
        %2368 = vmatprep.subr.mxu0 0.0
        %2369 = vmatpush1.msra.mxu0 0.0
        %2370 = vmatprep.subr.mxu0 0.0
        %2371 = vmatpush1.msra.mxu0 0.0
        %2372 = vmatprep.subr.mxu0 0.0
        %2373 = vmatpush1.msra.mxu0 0.0
        %2374 = vmatprep.mubr.f32.mxu0 0.0
        %2375 = vmatmul.mubr.f32.gmra.mrb[0].mxu0 %v2308
        %v2376 = vpop.f32.mrb[0].mxu0
        %v2377 = vadd.f32 0.0, %v2376
        %v2378 = vpop.f32.mrb[0].mxu0
        %2379 = vdwg.mxu0
        %2380 = vrot.lane.b32.xlu0 %v2044, 112
        %v2381 = vpop.permute.xlu0 %2380
        %2382 = vrot.lane.b32.xlu0 %v2044, 80
        %v2383 = vpop.permute.xlu0 %2382
        %v2384 = vsel %vm951, %v2381, 0
        %v2386 = vsel %vm951, %v2383, 0
        %2388 = vmatprep.subr.mxu0 0.0
        %2389 = vmatpush1.xpose.msra.mxu0 %v2386
        %2390 = vmatprep.subr.mxu0 0.0
        %2391 = vmatpush1.xpose.msra.mxu0 0.0
        %2392 = vmatprep.subr.mxu0 0.0
        %2393 = vmatpush1.xpose.msra.mxu0 0.0
        %2394 = vmatprep.subr.mxu0 0.0
        %2395 = vmatpush1.xpose.msra.mxu0 0.0
        %2396 = vmatprep.subr.mxu0 0.0
        %2397 = vmatpush1.xpose.msra.mxu0 0.0
        %2398 = vmatprep.subr.mxu0 0.0
        %2399 = vmatpush1.xpose.msra.mxu0 0.0
        %2400 = vmatprep.subr.mxu0 0.0
        %2401 = vmatpush1.xpose.msra.mxu0 0.0
        %2402 = vmatprep.subr.mxu0 0.0
        %2403 = vmatpush1.xpose.msra.mxu0 0.0
        %2404 = vmatprep.subr.mxu0 0.0
        %2405 = vmatpush1.xpose.msra.mxu0 0.0
        %2406 = vmatprep.subr.mxu0 0.0
        %2407 = vmatpush1.xpose.msra.mxu0 0.0
        %2408 = vmatprep.subr.mxu0 0.0
        %2409 = vmatpush1.xpose.msra.mxu0 0.0
        %2410 = vmatprep.subr.mxu0 0.0
        %2411 = vmatpush1.xpose.msra.mxu0 0.0
        %2412 = vmatprep.subr.mxu0 0.0
        %2413 = vmatpush1.xpose.msra.mxu0 0.0
        %2414 = vmatprep.subr.mxu0 0.0
        %2415 = vmatpush1.xpose.msra.mxu0 0.0
        %2416 = vmatprep.subr.mxu0 0.0
        %2417 = vmatpush1.xpose.msra.mxu0 0.0
        %2418 = vmatprep.subr.mxu0 0.0
        %2419 = vmatpush1.xpose.msra.mxu0 0.0
        %2420 = vmatprep.subr.mxu0 0.0
        %2421 = vmatpush1.xpose.msra.mxu0 0.0
        %2422 = vmatprep.subr.mxu0 0.0
        %2423 = vmatpush1.xpose.msra.mxu0 0.0
        %2424 = vmatprep.subr.mxu0 0.0
        %2425 = vmatpush1.xpose.msra.mxu0 0.0
        %2426 = vmatprep.subr.mxu0 0.0
        %2427 = vmatpush1.xpose.msra.mxu0 0.0
        %2428 = vmatprep.subr.mxu0 0.0
        %2429 = vmatpush1.xpose.msra.mxu0 0.0
        %2430 = vmatprep.subr.mxu0 0.0
        %2431 = vmatpush1.xpose.msra.mxu0 0.0
        %2432 = vmatprep.subr.mxu0 0.0
        %2433 = vmatpush1.xpose.msra.mxu0 0.0
        %2434 = vmatprep.subr.mxu0 0.0
        %2435 = vmatpush1.xpose.msra.mxu0 0.0
        %2436 = vmatprep.subr.mxu0 0.0
        %2437 = vmatpush1.xpose.msra.mxu0 0.0
        %2438 = vmatprep.subr.mxu0 0.0
        %2439 = vmatpush1.xpose.msra.mxu0 0.0
        %2440 = vmatprep.subr.mxu0 0.0
        %2441 = vmatpush1.xpose.msra.mxu0 0.0
        %2442 = vmatprep.subr.mxu0 0.0
        %2443 = vmatpush1.xpose.msra.mxu0 0.0
        %2444 = vmatprep.subr.mxu0 0.0
        %2445 = vmatpush1.xpose.msra.mxu0 0.0
        %2446 = vmatprep.subr.mxu0 0.0
        %2447 = vmatpush1.xpose.msra.mxu0 0.0
        %2448 = vmatprep.subr.mxu0 0.0
        %2449 = vmatpush1.xpose.msra.mxu0 0.0
        %2450 = vmatprep.subr.mxu0 0.0
        %2451 = vmatpush1.xpose.msra.mxu0 0.0
        %2452 = vmatprep.mubr.f32.mxu0 0.0
        %2453 = vmatmul.mubr.f32.gmra.mrb[0].mxu0 %v2384
        %v2454 = vpop.f32.mrb[0].mxu0
        %v2455 = vadd.f32 0.0, %v2454
        %v2456 = vpop.f32.mrb[0].mxu0
        %2457 = vdwg.mxu0
        %v2458 = vmul.f32 %v2455, 0.35355338
        %v2459 = vadd.f32 %v2458, %v1031
        %v2460 = vsel %vm951, %v2459, -inf
        %2461 = vmax.xlane.f32.xlu0 %v2460
        %v2462 = vpop.xlane.xlu0 %2461
        %v2463 = vsub.f32 %v2459, %v2462
        %v2464 = vmul.f32 %v2463, 1.442695
        %v2465 = vpow.pop %v2464
        %v2466 = vsel %vm951, %v2465, 0.0
        %2467 = vadd.xlane.f32.xlu0 %v2466
        %v2468 = vpop.xlane.xlu0 %2467
        %v2469 = vrcp.pop %v2468
        %v2470 = vmul.f32 %v2465, %v2469
        %2471 = vrot.lane.b32.xlu0 %v2044, 48
        %v2472 = vpop.permute.xlu0 %2471
        %v2475 = vsel %vm951, %v2470, 0
        %2477 = vmatprep.subr.mxu0 0.0
        %2478 = vmatpush1.msra.mxu0 %v2472
        %2479 = vmatprep.subr.mxu0 0.0
        %2480 = vmatpush1.msra.mxu0 0.0
        %2481 = vmatprep.subr.mxu0 0.0
        %2482 = vmatpush1.msra.mxu0 0.0
        %2483 = vmatprep.subr.mxu0 0.0
        %2484 = vmatpush1.msra.mxu0 0.0
        %2485 = vmatprep.subr.mxu0 0.0
        %2486 = vmatpush1.msra.mxu0 0.0
        %2487 = vmatprep.subr.mxu0 0.0
        %2488 = vmatpush1.msra.mxu0 0.0
        %2489 = vmatprep.subr.mxu0 0.0
        %2490 = vmatpush1.msra.mxu0 0.0
        %2491 = vmatprep.subr.mxu0 0.0
        %2492 = vmatpush1.msra.mxu0 0.0
        %2493 = vmatprep.subr.mxu0 0.0
        %2494 = vmatpush1.msra.mxu0 0.0
        %2495 = vmatprep.subr.mxu0 0.0
        %2496 = vmatpush1.msra.mxu0 0.0
        %2497 = vmatprep.subr.mxu0 0.0
        %2498 = vmatpush1.msra.mxu0 0.0
        %2499 = vmatprep.subr.mxu0 0.0
        %2500 = vmatpush1.msra.mxu0 0.0
        %2501 = vmatprep.subr.mxu0 0.0
        %2502 = vmatpush1.msra.mxu0 0.0
        %2503 = vmatprep.subr.mxu0 0.0
        %2504 = vmatpush1.msra.mxu0 0.0
        %2505 = vmatprep.subr.mxu0 0.0
        %2506 = vmatpush1.msra.mxu0 0.0
        %2507 = vmatprep.subr.mxu0 0.0
        %2508 = vmatpush1.msra.mxu0 0.0
        %2509 = vmatprep.subr.mxu0 0.0
        %2510 = vmatpush1.msra.mxu0 0.0
        %2511 = vmatprep.subr.mxu0 0.0
        %2512 = vmatpush1.msra.mxu0 0.0
        %2513 = vmatprep.subr.mxu0 0.0
        %2514 = vmatpush1.msra.mxu0 0.0
        %2515 = vmatprep.subr.mxu0 0.0
        %2516 = vmatpush1.msra.mxu0 0.0
        %2517 = vmatprep.subr.mxu0 0.0
        %2518 = vmatpush1.msra.mxu0 0.0
        %2519 = vmatprep.subr.mxu0 0.0
        %2520 = vmatpush1.msra.mxu0 0.0
        %2521 = vmatprep.subr.mxu0 0.0
        %2522 = vmatpush1.msra.mxu0 0.0
        %2523 = vmatprep.subr.mxu0 0.0
        %2524 = vmatpush1.msra.mxu0 0.0
        %2525 = vmatprep.subr.mxu0 0.0
        %2526 = vmatpush1.msra.mxu0 0.0
        %2527 = vmatprep.subr.mxu0 0.0
        %2528 = vmatpush1.msra.mxu0 0.0
        %2529 = vmatprep.subr.mxu0 0.0
        %2530 = vmatpush1.msra.mxu0 0.0
        %2531 = vmatprep.subr.mxu0 0.0
        %2532 = vmatpush1.msra.mxu0 0.0
        %2533 = vmatprep.subr.mxu0 0.0
        %2534 = vmatpush1.msra.mxu0 0.0
        %2535 = vmatprep.subr.mxu0 0.0
        %2536 = vmatpush1.msra.mxu0 0.0
        %2537 = vmatprep.subr.mxu0 0.0
        %2538 = vmatpush1.msra.mxu0 0.0
        %2539 = vmatprep.subr.mxu0 0.0
        %2540 = vmatpush1.msra.mxu0 0.0
        %2541 = vmatprep.mubr.f32.mxu0 0.0
        %2542 = vmatmul.mubr.f32.gmra.mrb[0].mxu0 %v2475
        %v2543 = vpop.f32.mrb[0].mxu0
        %v2544 = vadd.f32 0.0, %v2543
        %v2545 = vpop.f32.mrb[0].mxu0
        %2546 = vdwg.mxu0
        %2547 = vrot.lane.b32.xlu0 %v2044, 104
        %v2548 = vpop.permute.xlu0 %2547
        %2549 = vrot.lane.b32.xlu0 %v2044, 72
        %v2550 = vpop.permute.xlu0 %2549
        %v2551 = vsel %vm951, %v2548, 0
        %v2553 = vsel %vm951, %v2550, 0
        %2555 = vmatprep.subr.mxu0 0.0
        %2556 = vmatpush1.xpose.msra.mxu0 %v2553
        %2557 = vmatprep.subr.mxu0 0.0
        %2558 = vmatpush1.xpose.msra.mxu0 0.0
        %2559 = vmatprep.subr.mxu0 0.0
        %2560 = vmatpush1.xpose.msra.mxu0 0.0
        %2561 = vmatprep.subr.mxu0 0.0
        %2562 = vmatpush1.xpose.msra.mxu0 0.0
        %2563 = vmatprep.subr.mxu0 0.0
        %2564 = vmatpush1.xpose.msra.mxu0 0.0
        %2565 = vmatprep.subr.mxu0 0.0
        %2566 = vmatpush1.xpose.msra.mxu0 0.0
        %2567 = vmatprep.subr.mxu0 0.0
        %2568 = vmatpush1.xpose.msra.mxu0 0.0
        %2569 = vmatprep.subr.mxu0 0.0
        %2570 = vmatpush1.xpose.msra.mxu0 0.0
        %2571 = vmatprep.subr.mxu0 0.0
        %2572 = vmatpush1.xpose.msra.mxu0 0.0
        %2573 = vmatprep.subr.mxu0 0.0
        %2574 = vmatpush1.xpose.msra.mxu0 0.0
        %2575 = vmatprep.subr.mxu0 0.0
        %2576 = vmatpush1.xpose.msra.mxu0 0.0
        %2577 = vmatprep.subr.mxu0 0.0
        %2578 = vmatpush1.xpose.msra.mxu0 0.0
        %2579 = vmatprep.subr.mxu0 0.0
        %2580 = vmatpush1.xpose.msra.mxu0 0.0
        %2581 = vmatprep.subr.mxu0 0.0
        %2582 = vmatpush1.xpose.msra.mxu0 0.0
        %2583 = vmatprep.subr.mxu0 0.0
        %2584 = vmatpush1.xpose.msra.mxu0 0.0
        %2585 = vmatprep.subr.mxu0 0.0
        %2586 = vmatpush1.xpose.msra.mxu0 0.0
        %2587 = vmatprep.subr.mxu0 0.0
        %2588 = vmatpush1.xpose.msra.mxu0 0.0
        %2589 = vmatprep.subr.mxu0 0.0
        %2590 = vmatpush1.xpose.msra.mxu0 0.0
        %2591 = vmatprep.subr.mxu0 0.0
        %2592 = vmatpush1.xpose.msra.mxu0 0.0
        %2593 = vmatprep.subr.mxu0 0.0
        %2594 = vmatpush1.xpose.msra.mxu0 0.0
        %2595 = vmatprep.subr.mxu0 0.0
        %2596 = vmatpush1.xpose.msra.mxu0 0.0
        %2597 = vmatprep.subr.mxu0 0.0
        %2598 = vmatpush1.xpose.msra.mxu0 0.0
        %2599 = vmatprep.subr.mxu0 0.0
        %2600 = vmatpush1.xpose.msra.mxu0 0.0
        %2601 = vmatprep.subr.mxu0 0.0
        %2602 = vmatpush1.xpose.msra.mxu0 0.0
        %2603 = vmatprep.subr.mxu0 0.0
        %2604 = vmatpush1.xpose.msra.mxu0 0.0
        %2605 = vmatprep.subr.mxu0 0.0
        %2606 = vmatpush1.xpose.msra.mxu0 0.0
        %2607 = vmatprep.subr.mxu0 0.0
        %2608 = vmatpush1.xpose.msra.mxu0 0.0
        %2609 = vmatprep.subr.mxu0 0.0
        %2610 = vmatpush1.xpose.msra.mxu0 0.0
        %2611 = vmatprep.subr.mxu0 0.0
        %2612 = vmatpush1.xpose.msra.mxu0 0.0
        %2613 = vmatprep.subr.mxu0 0.0
        %2614 = vmatpush1.xpose.msra.mxu0 0.0
        %2615 = vmatprep.subr.mxu0 0.0
        %2616 = vmatpush1.xpose.msra.mxu0 0.0
        %2617 = vmatprep.subr.mxu0 0.0
        %2618 = vmatpush1.xpose.msra.mxu0 0.0
        %2619 = vmatprep.mubr.f32.mxu0 0.0
        %2620 = vmatmul.mubr.f32.gmra.mrb[0].mxu0 %v2551
        %v2621 = vpop.f32.mrb[0].mxu0
        %v2622 = vadd.f32 0.0, %v2621
        %v2623 = vpop.f32.mrb[0].mxu0
        %2624 = vdwg.mxu0
        %v2625 = vmul.f32 %v2622, 0.35355338
        %v2626 = vadd.f32 %v2625, %v1031
        %v2627 = vsel %vm951, %v2626, -inf
        %2628 = vmax.xlane.f32.xlu0 %v2627
        %v2629 = vpop.xlane.xlu0 %2628
        %v2630 = vsub.f32 %v2626, %v2629
        %v2631 = vmul.f32 %v2630, 1.442695
        %v2632 = vpow.pop %v2631
        %v2633 = vsel %vm951, %v2632, 0.0
        %2634 = vadd.xlane.f32.xlu0 %v2633
        %v2635 = vpop.xlane.xlu0 %2634
        %v2636 = vrcp.pop %v2635
        %v2637 = vmul.f32 %v2632, %v2636
        %2638 = vrot.lane.b32.xlu0 %v2044, 40
        %v2639 = vpop.permute.xlu0 %2638
        %v2642 = vsel %vm951, %v2637, 0
        %2644 = vmatprep.subr.mxu0 0.0
        %2645 = vmatpush1.msra.mxu0 %v2639
        %2646 = vmatprep.subr.mxu0 0.0
        %2647 = vmatpush1.msra.mxu0 0.0
        %2648 = vmatprep.subr.mxu0 0.0
        %2649 = vmatpush1.msra.mxu0 0.0
        %2650 = vmatprep.subr.mxu0 0.0
        %2651 = vmatpush1.msra.mxu0 0.0
        %2652 = vmatprep.subr.mxu0 0.0
        %2653 = vmatpush1.msra.mxu0 0.0
        %2654 = vmatprep.subr.mxu0 0.0
        %2655 = vmatpush1.msra.mxu0 0.0
        %2656 = vmatprep.subr.mxu0 0.0
        %2657 = vmatpush1.msra.mxu0 0.0
        %2658 = vmatprep.subr.mxu0 0.0
        %2659 = vmatpush1.msra.mxu0 0.0
        %2660 = vmatprep.subr.mxu0 0.0
        %2661 = vmatpush1.msra.mxu0 0.0
        %2662 = vmatprep.subr.mxu0 0.0
        %2663 = vmatpush1.msra.mxu0 0.0
        %2664 = vmatprep.subr.mxu0 0.0
        %2665 = vmatpush1.msra.mxu0 0.0
        %2666 = vmatprep.subr.mxu0 0.0
        %2667 = vmatpush1.msra.mxu0 0.0
        %2668 = vmatprep.subr.mxu0 0.0
        %2669 = vmatpush1.msra.mxu0 0.0
        %2670 = vmatprep.subr.mxu0 0.0
        %2671 = vmatpush1.msra.mxu0 0.0
        %2672 = vmatprep.subr.mxu0 0.0
        %2673 = vmatpush1.msra.mxu0 0.0
        %2674 = vmatprep.subr.mxu0 0.0
        %2675 = vmatpush1.msra.mxu0 0.0
        %2676 = vmatprep.subr.mxu0 0.0
        %2677 = vmatpush1.msra.mxu0 0.0
        %2678 = vmatprep.subr.mxu0 0.0
        %2679 = vmatpush1.msra.mxu0 0.0
        %2680 = vmatprep.subr.mxu0 0.0
        %2681 = vmatpush1.msra.mxu0 0.0
        %2682 = vmatprep.subr.mxu0 0.0
        %2683 = vmatpush1.msra.mxu0 0.0
        %2684 = vmatprep.subr.mxu0 0.0
        %2685 = vmatpush1.msra.mxu0 0.0
        %2686 = vmatprep.subr.mxu0 0.0
        %2687 = vmatpush1.msra.mxu0 0.0
        %2688 = vmatprep.subr.mxu0 0.0
        %2689 = vmatpush1.msra.mxu0 0.0
        %2690 = vmatprep.subr.mxu0 0.0
        %2691 = vmatpush1.msra.mxu0 0.0
        %2692 = vmatprep.subr.mxu0 0.0
        %2693 = vmatpush1.msra.mxu0 0.0
        %2694 = vmatprep.subr.mxu0 0.0
        %2695 = vmatpush1.msra.mxu0 0.0
        %2696 = vmatprep.subr.mxu0 0.0
        %2697 = vmatpush1.msra.mxu0 0.0
        %2698 = vmatprep.subr.mxu0 0.0
        %2699 = vmatpush1.msra.mxu0 0.0
        %2700 = vmatprep.subr.mxu0 0.0
        %2701 = vmatpush1.msra.mxu0 0.0
        %2702 = vmatprep.subr.mxu0 0.0
        %2703 = vmatpush1.msra.mxu0 0.0
        %2704 = vmatprep.subr.mxu0 0.0
        %2705 = vmatpush1.msra.mxu0 0.0
        %2706 = vmatprep.subr.mxu0 0.0
        %2707 = vmatpush1.msra.mxu0 0.0
        %2708 = vmatprep.mubr.f32.mxu0 0.0
        %2709 = vmatmul.mubr.f32.gmra.mrb[0].mxu0 %v2642
        %v2710 = vpop.f32.mrb[0].mxu0
        %v2711 = vadd.f32 0.0, %v2710
        %v2712 = vpop.f32.mrb[0].mxu0
        %2713 = vdwg.mxu0
        %2715 = vrot.lane.b32.xlu0 %v2377, 8
        %v2716 = vpop.permute.xlu0 %2715
        %2719 = vrot.lane.b32.xlu0 %v2544, 16
        %v2720 = vpop.permute.xlu0 %2719
        %2723 = vrot.lane.b32.xlu0 %v2711, 24
        %v2724 = vpop.permute.xlu0 %2723
        %v2726 = vsel %vm951, %v2210, %v2716
        %v2727 = vsel %vm1635, %v2726, %v2720
        %v2728 = vsel %vm1637, %v2727, %v2724
        %s2729 = scalar_lea.vmem %s4, 32
        %v2730 = vld [vmem:[%s2729] sm:$0xff]
        %v2731 = vld [vmem:[%s2729 + $0x8] sm:$0xff]
        %v2732 = vld [vmem:[%s2729 + $0x10] sm:$0xff]
        %v2733 = vld [vmem:[%s2729 + $0x18] sm:$0xff]
        %s2734 = scalar_lea.vmem [#allocation8], 1
        %v2735 = vld [vmem:[%s2734] sm:$0x1]
        %v2737 = vlaneseq
        %v2738 = vshrl.u32 %v2737, 7
        %v2739 = vsub.s32 0, %v2738
        %v2740 = vrot.slane %v2735, %v2739
        %v2743 = vsel %vm835, %v2728, 0
        %2745 = vmatprep.subr.mxu0 0.0
        %2746 = vmatpush1.msra.mxu0 %v2730
        %2747 = vmatprep.subr.mxu0 0.0
        %2748 = vmatpush1.msra.mxu0 %v2731
        %2749 = vmatprep.subr.mxu0 0.0
        %2750 = vmatpush1.msra.mxu0 %v2732
        %2751 = vmatprep.subr.mxu0 0.0
        %2752 = vmatpush1.msra.mxu0 %v2733
        %2753 = vmatprep.subr.mxu0 0.0
        %2754 = vmatpush1.msra.mxu0 0.0
        %2755 = vmatprep.subr.mxu0 0.0
        %2756 = vmatpush1.msra.mxu0 0.0
        %2757 = vmatprep.subr.mxu0 0.0
        %2758 = vmatpush1.msra.mxu0 0.0
        %2759 = vmatprep.subr.mxu0 0.0
        %2760 = vmatpush1.msra.mxu0 0.0
        %2761 = vmatprep.subr.mxu0 0.0
        %2762 = vmatpush1.msra.mxu0 0.0
        %2763 = vmatprep.subr.mxu0 0.0
        %2764 = vmatpush1.msra.mxu0 0.0
        %2765 = vmatprep.subr.mxu0 0.0
        %2766 = vmatpush1.msra.mxu0 0.0
        %2767 = vmatprep.subr.mxu0 0.0
        %2768 = vmatpush1.msra.mxu0 0.0
        %2769 = vmatprep.subr.mxu0 0.0
        %2770 = vmatpush1.msra.mxu0 0.0
        %2771 = vmatprep.subr.mxu0 0.0
        %2772 = vmatpush1.msra.mxu0 0.0
        %2773 = vmatprep.subr.mxu0 0.0
        %2774 = vmatpush1.msra.mxu0 0.0
        %2775 = vmatprep.subr.mxu0 0.0
        %2776 = vmatpush1.msra.mxu0 0.0
        %2777 = vmatprep.subr.mxu0 0.0
        %2778 = vmatpush1.msra.mxu0 0.0
        %2779 = vmatprep.subr.mxu0 0.0
        %2780 = vmatpush1.msra.mxu0 0.0
        %2781 = vmatprep.subr.mxu0 0.0
        %2782 = vmatpush1.msra.mxu0 0.0
        %2783 = vmatprep.subr.mxu0 0.0
        %2784 = vmatpush1.msra.mxu0 0.0
        %2785 = vmatprep.subr.mxu0 0.0
        %2786 = vmatpush1.msra.mxu0 0.0
        %2787 = vmatprep.subr.mxu0 0.0
        %2788 = vmatpush1.msra.mxu0 0.0
        %2789 = vmatprep.subr.mxu0 0.0
        %2790 = vmatpush1.msra.mxu0 0.0
        %2791 = vmatprep.subr.mxu0 0.0
        %2792 = vmatpush1.msra.mxu0 0.0
        %2793 = vmatprep.subr.mxu0 0.0
        %2794 = vmatpush1.msra.mxu0 0.0
        %2795 = vmatprep.subr.mxu0 0.0
        %2796 = vmatpush1.msra.mxu0 0.0
        %2797 = vmatprep.subr.mxu0 0.0
        %2798 = vmatpush1.msra.mxu0 0.0
        %2799 = vmatprep.subr.mxu0 0.0
        %2800 = vmatpush1.msra.mxu0 0.0
        %2801 = vmatprep.subr.mxu0 0.0
        %2802 = vmatpush1.msra.mxu0 0.0
        %2803 = vmatprep.subr.mxu0 0.0
        %2804 = vmatpush1.msra.mxu0 0.0
        %2805 = vmatprep.subr.mxu0 0.0
        %2806 = vmatpush1.msra.mxu0 0.0
        %2807 = vmatprep.subr.mxu0 0.0
        %2808 = vmatpush1.msra.mxu0 0.0
        %2809 = vmatprep.mubr.f32.mxu0 0.0
        %2810 = vmatmul.mubr.f32.gmra.mrb[0].mxu0 %v2743
        %v2811 = vpop.f32.mrb[0].mxu0
        %v2812 = vadd.f32 %v2740, %v2811
        %v2813 = vpop.f32.mrb[0].mxu0
        %2814 = vdwg.mxu0
        %v2815 = vadd.f32 %v1960, %v2812
        %s2816 = scalar_lea.vmem [#allocation10], 1
        %v2817 = vld [vmem:[%s2816] sm:$0x1]
        %s2818 = scalar_lea.vmem [#allocation11], 1
        %v2819 = vld [vmem:[%s2818] sm:$0x1]
        %v2820 = vsel %vm835, %v2815, 0.0
        %2821 = vadd.xlane.f32.xlu0 %v2820
        %v2822 = vpop.xlane.xlu0 %2821
        %v2823 = vmul.f32 %v2822, %v839
        %v2824 = vsub.f32 %v2815, %v2823
        %v2825 = vmul.f32 %v2824, %v2824
        %v2826 = vsel %vm835, %v2825, 0.0
        %2827 = vadd.xlane.f32.xlu0 %v2826
        %v2828 = vpop.xlane.xlu0 %2827
        %v2829 = vmul.f32 %v2828, %v839
        %v2830 = vadd.f32 %v2829, 1e-12
        %v2831 = vrsqrt.pop %v2830
        %v2832 = vmul.f32 %v2824, %v2831
        %v2834 = vlaneseq
        %v2835 = vshrl.u32 %v2834, 7
        %v2836 = vsub.s32 0, %v2835
        %v2837 = vrot.slane %v2817, %v2836
        %v2839 = vmul.f32 %v2832, %v2837
        %v2841 = vlaneseq
        %v2842 = vshrl.u32 %v2841, 7
        %v2843 = vsub.s32 0, %v2842
        %v2844 = vrot.slane %v2819, %v2843
        %v2846 = vadd.f32 %v2839, %v2844
        %s2847 = scalar_lea.vmem %s8, 32
        %v2848 = vld [vmem:[%s2847] sm:$0xff]
        %v2849 = vld [vmem:[%s2847 + $0x8] sm:$0xff]
        %v2850 = vld [vmem:[%s2847 + $0x10] sm:$0xff]
        %v2851 = vld [vmem:[%s2847 + $0x18] sm:$0xff]
        %s2852 = scalar_lea.vmem [#allocation13], 1
        %v2853 = vld [vmem:[%s2852] sm:$0x1]
        %v2855 = vlaneseq
        %v2856 = vshrl.u32 %v2855, 7
        %v2857 = vsub.s32 0, %v2856
        %v2858 = vrot.slane %v2853, %v2857
        %v2861 = vsel %vm835, %v2846, 0
        %2863 = vmatprep.subr.mxu0 0.0
        %2864 = vmatpush1.msra.mxu0 %v2848
        %2865 = vmatprep.subr.mxu0 0.0
        %2866 = vmatpush1.msra.mxu0 %v2849
        %2867 = vmatprep.subr.mxu0 0.0
        %2868 = vmatpush1.msra.mxu0 %v2850
        %2869 = vmatprep.subr.mxu0 0.0
        %2870 = vmatpush1.msra.mxu0 %v2851
        %2871 = vmatprep.subr.mxu0 0.0
        %2872 = vmatpush1.msra.mxu0 0.0
        %2873 = vmatprep.subr.mxu0 0.0
        %2874 = vmatpush1.msra.mxu0 0.0
        %2875 = vmatprep.subr.mxu0 0.0
        %2876 = vmatpush1.msra.mxu0 0.0
        %2877 = vmatprep.subr.mxu0 0.0
        %2878 = vmatpush1.msra.mxu0 0.0
        %2879 = vmatprep.subr.mxu0 0.0
        %2880 = vmatpush1.msra.mxu0 0.0
        %2881 = vmatprep.subr.mxu0 0.0
        %2882 = vmatpush1.msra.mxu0 0.0
        %2883 = vmatprep.subr.mxu0 0.0
        %2884 = vmatpush1.msra.mxu0 0.0
        %2885 = vmatprep.subr.mxu0 0.0
        %2886 = vmatpush1.msra.mxu0 0.0
        %2887 = vmatprep.subr.mxu0 0.0
        %2888 = vmatpush1.msra.mxu0 0.0
        %2889 = vmatprep.subr.mxu0 0.0
        %2890 = vmatpush1.msra.mxu0 0.0
        %2891 = vmatprep.subr.mxu0 0.0
        %2892 = vmatpush1.msra.mxu0 0.0
        %2893 = vmatprep.subr.mxu0 0.0
        %2894 = vmatpush1.msra.mxu0 0.0
        %2895 = vmatprep.subr.mxu0 0.0
        %2896 = vmatpush1.msra.mxu0 0.0
        %2897 = vmatprep.subr.mxu0 0.0
        %2898 = vmatpush1.msra.mxu0 0.0
        %2899 = vmatprep.subr.mxu0 0.0
        %2900 = vmatpush1.msra.mxu0 0.0
        %2901 = vmatprep.subr.mxu0 0.0
        %2902 = vmatpush1.msra.mxu0 0.0
        %2903 = vmatprep.subr.mxu0 0.0
        %2904 = vmatpush1.msra.mxu0 0.0
        %2905 = vmatprep.subr.mxu0 0.0
        %2906 = vmatpush1.msra.mxu0 0.0
        %2907 = vmatprep.subr.mxu0 0.0
        %2908 = vmatpush1.msra.mxu0 0.0
        %2909 = vmatprep.subr.mxu0 0.0
        %2910 = vmatpush1.msra.mxu0 0.0
        %2911 = vmatprep.subr.mxu0 0.0
        %2912 = vmatpush1.msra.mxu0 0.0
        %2913 = vmatprep.subr.mxu0 0.0
        %2914 = vmatpush1.msra.mxu0 0.0
        %2915 = vmatprep.subr.mxu0 0.0
        %2916 = vmatpush1.msra.mxu0 0.0
        %2917 = vmatprep.subr.mxu0 0.0
        %2918 = vmatpush1.msra.mxu0 0.0
        %2919 = vmatprep.subr.mxu0 0.0
        %2920 = vmatpush1.msra.mxu0 0.0
        %2921 = vmatprep.subr.mxu0 0.0
        %2922 = vmatpush1.msra.mxu0 0.0
        %2923 = vmatprep.subr.mxu0 0.0
        %2924 = vmatpush1.msra.mxu0 0.0
        %2925 = vmatprep.subr.mxu0 0.0
        %2926 = vmatpush1.msra.mxu0 0.0
        %2927 = vmatprep.mubr.f32.mxu0 0.0
        %2928 = vmatmul.mubr.f32.gmra.mrb[0].mxu0 %v2861
        %v2929 = vpop.f32.mrb[0].mxu0
        %v2930 = vadd.f32 %v2858, %v2929
        %v2931 = vpop.f32.mrb[0].mxu0
        %2932 = vdwg.mxu0
        %v2933 = vmul.f32 %v2930, 0.5
        %v2934 = vmul.f32 %v2930, 0.70710677
        %v2935 = verf.f32.pop %v2934
        %v2936 = vadd.f32 %v2935, 1.0
        %v2937 = vmul.f32 %v2933, %v2936
        %s2938 = scalar_lea.vmem %s10, 64
        %v2939 = vld [vmem:[%s2938] sm:$0xff]
        %v2940 = vld [vmem:[%s2938 + $0x8] sm:$0xff]
        %v2941 = vld [vmem:[%s2938 + $0x10] sm:$0xff]
        %v2942 = vld [vmem:[%s2938 + $0x18] sm:$0xff]
        %v2943 = vld [vmem:[%s2938 + $0x20] sm:$0xff]
        %v2944 = vld [vmem:[%s2938 + $0x28] sm:$0xff]
        %v2945 = vld [vmem:[%s2938 + $0x30] sm:$0xff]
        %v2946 = vld [vmem:[%s2938 + $0x38] sm:$0xff]
        %s2947 = scalar_lea.vmem [#allocation14], 1
        %v2948 = vld [vmem:[%s2947] sm:$0x1]
        %v2950 = vlaneseq
        %v2951 = vshrl.u32 %v2950, 7
        %v2952 = vsub.s32 0, %v2951
        %v2953 = vrot.slane %v2948, %v2952
        %v2956 = vsel %vm1857, %v2937, 0
        %2958 = vmatprep.subr.mxu0 0.0
        %2959 = vmatpush1.msra.mxu0 %v2939
        %2960 = vmatprep.subr.mxu0 0.0
        %2961 = vmatpush1.msra.mxu0 %v2940
        %2962 = vmatprep.subr.mxu0 0.0
        %2963 = vmatpush1.msra.mxu0 %v2941
        %2964 = vmatprep.subr.mxu0 0.0
        %2965 = vmatpush1.msra.mxu0 %v2942
        %2966 = vmatprep.subr.mxu0 0.0
        %2967 = vmatpush1.msra.mxu0 %v2943
        %2968 = vmatprep.subr.mxu0 0.0
        %2969 = vmatpush1.msra.mxu0 %v2944
        %2970 = vmatprep.subr.mxu0 0.0
        %2971 = vmatpush1.msra.mxu0 %v2945
        %2972 = vmatprep.subr.mxu0 0.0
        %2973 = vmatpush1.msra.mxu0 %v2946
        %2974 = vmatprep.subr.mxu0 0.0
        %2975 = vmatpush1.msra.mxu0 0.0
        %2976 = vmatprep.subr.mxu0 0.0
        %2977 = vmatpush1.msra.mxu0 0.0
        %2978 = vmatprep.subr.mxu0 0.0
        %2979 = vmatpush1.msra.mxu0 0.0
        %2980 = vmatprep.subr.mxu0 0.0
        %2981 = vmatpush1.msra.mxu0 0.0
        %2982 = vmatprep.subr.mxu0 0.0
        %2983 = vmatpush1.msra.mxu0 0.0
        %2984 = vmatprep.subr.mxu0 0.0
        %2985 = vmatpush1.msra.mxu0 0.0
        %2986 = vmatprep.subr.mxu0 0.0
        %2987 = vmatpush1.msra.mxu0 0.0
        %2988 = vmatprep.subr.mxu0 0.0
        %2989 = vmatpush1.msra.mxu0 0.0
        %2990 = vmatprep.subr.mxu0 0.0
        %2991 = vmatpush1.msra.mxu0 0.0
        %2992 = vmatprep.subr.mxu0 0.0
        %2993 = vmatpush1.msra.mxu0 0.0
        %2994 = vmatprep.subr.mxu0 0.0
        %2995 = vmatpush1.msra.mxu0 0.0
        %2996 = vmatprep.subr.mxu0 0.0
        %2997 = vmatpush1.msra.mxu0 0.0
        %2998 = vmatprep.subr.mxu0 0.0
        %2999 = vmatpush1.msra.mxu0 0.0
        %3000 = vmatprep.subr.mxu0 0.0
        %3001 = vmatpush1.msra.mxu0 0.0
        %3002 = vmatprep.subr.mxu0 0.0
        %3003 = vmatpush1.msra.mxu0 0.0
        %3004 = vmatprep.subr.mxu0 0.0
        %3005 = vmatpush1.msra.mxu0 0.0
        %3006 = vmatprep.subr.mxu0 0.0
        %3007 = vmatpush1.msra.mxu0 0.0
        %3008 = vmatprep.subr.mxu0 0.0
        %3009 = vmatpush1.msra.mxu0 0.0
        %3010 = vmatprep.subr.mxu0 0.0
        %3011 = vmatpush1.msra.mxu0 0.0
        %3012 = vmatprep.subr.mxu0 0.0
        %3013 = vmatpush1.msra.mxu0 0.0
        %3014 = vmatprep.subr.mxu0 0.0
        %3015 = vmatpush1.msra.mxu0 0.0
        %3016 = vmatprep.subr.mxu0 0.0
        %3017 = vmatpush1.msra.mxu0 0.0
        %3018 = vmatprep.subr.mxu0 0.0
        %3019 = vmatpush1.msra.mxu0 0.0
        %3020 = vmatprep.subr.mxu0 0.0
        %3021 = vmatpush1.msra.mxu0 0.0
        %3022 = vmatprep.mubr.f32.mxu0 0.0
        %3023 = vmatmul.mubr.f32.gmra.mrb[0].mxu0 %v2956
        %v3024 = vpop.f32.mrb[0].mxu0
        %v3025 = vadd.f32 %v2953, %v3024
        %v3026 = vpop.f32.mrb[0].mxu0
        %3027 = vdwg.mxu0
        %v3028 = vadd.f32 %v2846, %v3025
        %s3029 = scalar_lea.vmem [#allocation16], 1
        %v3030 = vld [vmem:[%s3029] sm:$0x1]
        %s3031 = scalar_lea.vmem [#allocation17], 1
        %v3032 = vld [vmem:[%s3031] sm:$0x1]
        %v3033 = vsel %vm835, %v3028, 0.0
        %3034 = vadd.xlane.f32.xlu0 %v3033
        %v3035 = vpop.xlane.xlu0 %3034
        %v3036 = vmul.f32 %v3035, %v839
        %v3037 = vsub.f32 %v3028, %v3036
        %v3038 = vmul.f32 %v3037, %v3037
        %v3039 = vsel %vm835, %v3038, 0.0
        %3040 = vadd.xlane.f32.xlu0 %v3039
        %v3041 = vpop.xlane.xlu0 %3040
        %v3042 = vmul.f32 %v3041, %v839
        %v3043 = vadd.f32 %v3042, 1e-12
        %v3044 = vrsqrt.pop %v3043
        %v3045 = vmul.f32 %v3037, %v3044
        %v3047 = vlaneseq
        %v3048 = vshrl.u32 %v3047, 7
        %v3049 = vsub.s32 0, %v3048
        %v3050 = vrot.slane %v3030, %v3049
        %v3052 = vmul.f32 %v3045, %v3050
        %v3054 = vlaneseq
        %v3055 = vshrl.u32 %v3054, 7
        %v3056 = vsub.s32 0, %v3055
        %v3057 = vrot.slane %v3032, %v3056
        %v3059 = vadd.f32 %v3052, %v3057
        %v3060 = vld [vmem:[%s16] sm:$0xff]
        %v3061 = vld [vmem:[%s16 + $0x8] sm:$0xff]
        %v3062 = vld [vmem:[%s16 + $0x10] sm:$0xff]
        %v3063 = vld [vmem:[%s16 + $0x18] sm:$0xff]
        %v3064 = vld [vmem:[#allocation22] sm:$0x1]
        %v3066 = vsel %vm835, %v3059, 0
        %3068 = vmatprep.subr.mxu0 0.0
        %3069 = vmatpush1.msra.mxu0 %v3060
        %3070 = vmatprep.subr.mxu0 0.0
        %3071 = vmatpush1.msra.mxu0 %v3061
        %3072 = vmatprep.subr.mxu0 0.0
        %3073 = vmatpush1.msra.mxu0 %v3062
        %3074 = vmatprep.subr.mxu0 0.0
        %3075 = vmatpush1.msra.mxu0 %v3063
        %3076 = vmatprep.subr.mxu0 0.0
        %3077 = vmatpush1.msra.mxu0 0.0
        %3078 = vmatprep.subr.mxu0 0.0
        %3079 = vmatpush1.msra.mxu0 0.0
        %3080 = vmatprep.subr.mxu0 0.0
        %3081 = vmatpush1.msra.mxu0 0.0
        %3082 = vmatprep.subr.mxu0 0.0
        %3083 = vmatpush1.msra.mxu0 0.0
        %3084 = vmatprep.subr.mxu0 0.0
        %3085 = vmatpush1.msra.mxu0 0.0
        %3086 = vmatprep.subr.mxu0 0.0
        %3087 = vmatpush1.msra.mxu0 0.0
        %3088 = vmatprep.subr.mxu0 0.0
        %3089 = vmatpush1.msra.mxu0 0.0
        %3090 = vmatprep.subr.mxu0 0.0
        %3091 = vmatpush1.msra.mxu0 0.0
        %3092 = vmatprep.subr.mxu0 0.0
        %3093 = vmatpush1.msra.mxu0 0.0
        %3094 = vmatprep.subr.mxu0 0.0
        %3095 = vmatpush1.msra.mxu0 0.0
        %3096 = vmatprep.subr.mxu0 0.0
        %3097 = vmatpush1.msra.mxu0 0.0
        %3098 = vmatprep.subr.mxu0 0.0
        %3099 = vmatpush1.msra.mxu0 0.0
        %3100 = vmatprep.subr.mxu0 0.0
        %3101 = vmatpush1.msra.mxu0 0.0
        %3102 = vmatprep.subr.mxu0 0.0
        %3103 = vmatpush1.msra.mxu0 0.0
        %3104 = vmatprep.subr.mxu0 0.0
        %3105 = vmatpush1.msra.mxu0 0.0
        %3106 = vmatprep.subr.mxu0 0.0
        %3107 = vmatpush1.msra.mxu0 0.0
        %3108 = vmatprep.subr.mxu0 0.0
        %3109 = vmatpush1.msra.mxu0 0.0
        %3110 = vmatprep.subr.mxu0 0.0
        %3111 = vmatpush1.msra.mxu0 0.0
        %3112 = vmatprep.subr.mxu0 0.0
        %3113 = vmatpush1.msra.mxu0 0.0
        %3114 = vmatprep.subr.mxu0 0.0
        %3115 = vmatpush1.msra.mxu0 0.0
        %3116 = vmatprep.subr.mxu0 0.0
        %3117 = vmatpush1.msra.mxu0 0.0
        %3118 = vmatprep.subr.mxu0 0.0
        %3119 = vmatpush1.msra.mxu0 0.0
        %3120 = vmatprep.subr.mxu0 0.0
        %3121 = vmatpush1.msra.mxu0 0.0
        %3122 = vmatprep.subr.mxu0 0.0
        %3123 = vmatpush1.msra.mxu0 0.0
        %3124 = vmatprep.subr.mxu0 0.0
        %3125 = vmatpush1.msra.mxu0 0.0
        %3126 = vmatprep.subr.mxu0 0.0
        %3127 = vmatpush1.msra.mxu0 0.0
        %3128 = vmatprep.subr.mxu0 0.0
        %3129 = vmatpush1.msra.mxu0 0.0
        %3130 = vmatprep.subr.mxu0 0.0
        %3131 = vmatpush1.msra.mxu0 0.0
        %3132 = vmatprep.mubr.f32.mxu0 0.0
        %3133 = vmatmul.mubr.f32.gmra.mrb[0].mxu0 %v3066
        %v3134 = vpop.f32.mrb[0].mxu0
        %v3135 = vadd.f32 %v3064, %v3134
        %v3136 = vpop.f32.mrb[0].mxu0
        %3137 = vdwg.mxu0
        %v3138 = vtanh.pop %v3135
        %v3139 = vld [vmem:[%s18] sm:$0xff]
        %v3140 = vld [vmem:[%s18 + $0x8] sm:$0xff]
        %v3141 = vld [vmem:[%s18 + $0x10] sm:$0xff]
        %v3142 = vld [vmem:[%s18 + $0x18] sm:$0xff]
        %v3143 = vld [vmem:[%s19] sm:$0x1]
        %v3145 = vsel %vm835, %v3138, 0
        %3147 = vmatprep.subr.mxu0 0.0
        %3148 = vmatpush1.msra.mxu0 %v3139
        %3149 = vmatprep.subr.mxu0 0.0
        %3150 = vmatpush1.msra.mxu0 %v3140
        %3151 = vmatprep.subr.mxu0 0.0
        %3152 = vmatpush1.msra.mxu0 %v3141
        %3153 = vmatprep.subr.mxu0 0.0
        %3154 = vmatpush1.msra.mxu0 %v3142
        %3155 = vmatprep.subr.mxu0 0.0
        %3156 = vmatpush1.msra.mxu0 0.0
        %3157 = vmatprep.subr.mxu0 0.0
        %3158 = vmatpush1.msra.mxu0 0.0
        %3159 = vmatprep.subr.mxu0 0.0
        %3160 = vmatpush1.msra.mxu0 0.0
        %3161 = vmatprep.subr.mxu0 0.0
        %3162 = vmatpush1.msra.mxu0 0.0
        %3163 = vmatprep.subr.mxu0 0.0
        %3164 = vmatpush1.msra.mxu0 0.0
        %3165 = vmatprep.subr.mxu0 0.0
        %3166 = vmatpush1.msra.mxu0 0.0
        %3167 = vmatprep.subr.mxu0 0.0
        %3168 = vmatpush1.msra.mxu0 0.0
        %3169 = vmatprep.subr.mxu0 0.0
        %3170 = vmatpush1.msra.mxu0 0.0
        %3171 = vmatprep.subr.mxu0 0.0
        %3172 = vmatpush1.msra.mxu0 0.0
        %3173 = vmatprep.subr.mxu0 0.0
        %3174 = vmatpush1.msra.mxu0 0.0
        %3175 = vmatprep.subr.mxu0 0.0
        %3176 = vmatpush1.msra.mxu0 0.0
        %3177 = vmatprep.subr.mxu0 0.0
        %3178 = vmatpush1.msra.mxu0 0.0
        %3179 = vmatprep.subr.mxu0 0.0
        %3180 = vmatpush1.msra.mxu0 0.0
        %3181 = vmatprep.subr.mxu0 0.0
        %3182 = vmatpush1.msra.mxu0 0.0
        %3183 = vmatprep.subr.mxu0 0.0
        %3184 = vmatpush1.msra.mxu0 0.0
        %3185 = vmatprep.subr.mxu0 0.0
        %3186 = vmatpush1.msra.mxu0 0.0
        %3187 = vmatprep.subr.mxu0 0.0
        %3188 = vmatpush1.msra.mxu0 0.0
        %3189 = vmatprep.subr.mxu0 0.0
        %3190 = vmatpush1.msra.mxu0 0.0
        %3191 = vmatprep.subr.mxu0 0.0
        %3192 = vmatpush1.msra.mxu0 0.0
        %3193 = vmatprep.subr.mxu0 0.0
        %3194 = vmatpush1.msra.mxu0 0.0
        %3195 = vmatprep.subr.mxu0 0.0
        %3196 = vmatpush1.msra.mxu0 0.0
        %3197 = vmatprep.subr.mxu0 0.0
        %3198 = vmatpush1.msra.mxu0 0.0
        %3199 = vmatprep.subr.mxu0 0.0
        %3200 = vmatpush1.msra.mxu0 0.0
        %3201 = vmatprep.subr.mxu0 0.0
        %3202 = vmatpush1.msra.mxu0 0.0
        %3203 = vmatprep.subr.mxu0 0.0
        %3204 = vmatpush1.msra.mxu0 0.0
        %3205 = vmatprep.subr.mxu0 0.0
        %3206 = vmatpush1.msra.mxu0 0.0
        %3207 = vmatprep.subr.mxu0 0.0
        %3208 = vmatpush1.msra.mxu0 0.0
        %3209 = vmatprep.subr.mxu0 0.0
        %3210 = vmatpush1.msra.mxu0 0.0
        %3211 = vmatprep.mubr.f32.mxu0 0.0
        %3212 = vmatmul.mubr.f32.gmra.mrb[0].mxu0 %v3145
        %v3213 = vpop.f32.mrb[0].mxu0
        %v3214 = vadd.f32 %v3143, %v3213
        %v3215 = vpop.f32.mrb[0].mxu0
        %3216 = vdwg.mxu0
        %3217 = vst [vmem:[%s830] sm:$0x1] %v3214
        %s3218 = sand.u32 %s483, 1
        %s3219 = scalar_lea.sflag [#allocation4], %s3218
        %s3220 = sand.u32 %s483, 1
        %s3221 = scalar_lea.vmem [#allocation23], %s3220
        // Predicated region
        $region153: #{tpu_custom_call.1} parent=99 // pred_check
          %p3222 = pneg %p493
        $region154: #{tpu_custom_call.1} parent=99 // pred_check_branch
          %3224 = sbr.rel (%p3222) target = $region156
        $region155: #{tpu_custom_call.1} parent=99 // pred_region
          %s3226 = ssub.s32 16, 16
          %3227 = vsyncadd %s3219, %s3226
          %s3228 = smul.addr %s45, 16
          %s3229 = scalar_lea.hbm %s20, %s3228
          %s3231 = sshll.u32 %s3221, 4
          %s3232 = int_to_ptr.vmem [resolvable:$true] %s3231
          %3234 = dma.vmem_to_hbm [thread:$0]  %s3232, 16, %s3229, %s3219
        $region156: #{tpu_custom_call.1} parent=99 // pred_fallthru
          _
      $region100: #{tpu_custom_call.1} parent=5 // pred_fallthru
        _
      %p3235 = scmp.le.s32.totalorder 2, %s40
      // Predicated region
      $region157: #{tpu_custom_call.1} parent=5 // pred_check
        %p3236 = pneg %p3235
      $region158: #{tpu_custom_call.1} parent=5 // pred_check_branch
        %3238 = sbr.rel (%p3236) target = $region160
      $region159: #{tpu_custom_call.1} parent=5 // pred_region
        %s3239 = ssub.s32 %s40, 2
        // Predicated region
        $region161: #{tpu_custom_call.1} parent=159 // pred_check
          %p3240 = pneg %p499
        $region162: #{tpu_custom_call.1} parent=159 // pred_check_branch
          %3242 = sbr.rel (%p3240) target = $region164
        $region163: #{tpu_custom_call.1} parent=159 // pred_region
          %s3243 = sand.u32 %s484, 1
          %s3244 = scalar_lea.sflag [#allocation4], %s3243
          %s3245 = sand.u32 %s484, 1
          %s3246 = scalar_lea.vmem [#allocation23], %s3245
          %3247 = dma.done %s3244, 16
        $region164: #{tpu_custom_call.1} parent=159 // pred_fallthru
          _
      $region160: #{tpu_custom_call.1} parent=5 // pred_fallthru
        _
    $region6: #{tpu_custom_call.1} parent=1 // loop_footer
      %s44 = sadd.s32 1, %s40
    $region7: #{tpu_custom_call.1} parent=1 // loop_footer_branch
      %39 = sbr.rel target = $region3
    $region8: #{tpu_custom_call.1} parent=1 // loop_exit
      _
    %3248 = vsyncpa [#allocation3], 1
    %s3249 = scalar_lea.sflag [#allocation3], 1
    %3250 = vsyncpa %s3249, 1
    %3251 = vsyncpa [#allocation6], 1
    %s3252 = scalar_lea.sflag [#allocation6], 1
    %3253 = vsyncpa %s3252, 1
    %3254 = vsyncpa [#allocation9], 1
    %3255 = vsyncpa [#allocation12], 1
    %3256 = vsyncpa [#allocation15], 1
    %3257 = vsyncpa [#allocation18], 1
    %3258 = vsyncpa [#allocation21], 1
    %3259 = vsyncpa [#allocation4], 1
    %s3260 = scalar_lea.sflag [#allocation4], 1
    %3261 = vsyncpa %s3260, 1

</llo_original>
